<compile_context>
chip_gen: v5e
topology: v5e:2x2
jax: 0.10.0
libtpu: 0.0.40
codegen_flags: <defaults>
</compile_context>

<pallas_src>
import functools

import jax
import jax.numpy as jnp
from jax.experimental import pallas as pl
from jax.experimental.pallas import tpu as pltpu


# Masked (non-edge) additive bias and the running-max floor.  The floor is far
# above the mask value, so a fully-masked column block keeps m == floor and
# exp(mask - floor) underflows to exactly 0 (no spurious attention weight).
_NEG_MASK = -1e38
_M_FLOOR = -1e30


# ----------------------------------------------------------------------------
# Kernel 1: hoisted node-wide projection (one MXU matmul per row tile, run once)
# ----------------------------------------------------------------------------
def gat_proj_kernel(x_ref, w_ref, out_ref):
    """x:(Tn,Fin) f32, w:(Fin, heads*Fout+2*heads) bf16 -> out:(Tn, .) f32."""
    out_ref[...] = jnp.dot(x_ref[...].astype(jnp.bfloat16), w_ref[...],
                           preferred_element_type=jnp.float32)


# ----------------------------------------------------------------------------
# Kernel 2: attention + aggregation, online softmax over source-column blocks
# ----------------------------------------------------------------------------
def gat_attn_kernel(s_dst_ref, s_src_ref, h_src_ref, adjb_ref, b_ref, out_ref,
                    m_sc, l_sc, acc_sc, *, heads, fout, activation):
    """
    Grid: (row tiles [parallel], source column blocks [arbitrary]).
    s_dst_ref: (Tn, heads)  f32   target-side scores for this tile's rows
    s_src_ref: (heads, Tc)  f32   source-side scores, lane-dense
    h_src_ref: (Tc, heads*Fout) bf16  projected source features (column block)
    adjb_ref:  (Tn, Tc)     bf16  additive adjacency bias (0 / -1e38)
    b_ref:     (1, heads*Fout) f32
    out_ref:   (Tn, heads*Fout) f32  (resident across the column axis)
    m_sc/l_sc: (Tn, heads)  f32   running max / running denominator
    acc_sc:    (Tn, heads*Fout) f32  running un-normalised aggregate
    """
    j = pl.program_id(1)

    @pl.when(j == 0)
    def _():
        m_sc[...] = jnp.full_like(m_sc, _M_FLOOR)
        l_sc[...] = jnp.zeros_like(l_sc)
        acc_sc[...] = jnp.zeros_like(acc_sc)

    s_dst = s_dst_ref[...]                              # (Tn, heads)
    s_src = s_src_ref[...]                              # (heads, Tc)
    adjb = adjb_ref[...].astype(jnp.float32)            # (Tn, Tc)
    h_src = h_src_ref[...]                              # (Tc, heads*Fout) bf16

    for hd in range(heads):                             # heads is small & static
        csl = slice(hd * fout, (hd + 1) * fout)
        e = s_dst[:, hd:hd + 1] + s_src[hd:hd + 1, :]   # (Tn, Tc)
        e = jnp.where(e > 0, e, 0.2 * e)                # LeakyReLU(0.2)
        e = e + adjb                                    # mask non-edges

        m_old = m_sc[:, hd:hd + 1]
        m_new = jnp.maximum(m_old, jnp.max(e, axis=1, keepdims=True))
        alpha = jnp.exp(m_old - m_new)
        p = jnp.exp(e - m_new)                          # un-normalised attention
        l_sc[:, hd:hd + 1] = (alpha * l_sc[:, hd:hd + 1]
                              + jnp.sum(p, axis=1, keepdims=True))
        acc_sc[:, csl] = (alpha * acc_sc[:, csl]
                          + jnp.dot(p.astype(jnp.bfloat16), h_src[:, csl],
                                    preferred_element_type=jnp.float32))
        m_sc[:, hd:hd + 1] = m_new

    @pl.when(j == pl.num_programs(1) - 1)
    def _():
        # Deferred softmax normalisation, per-head column slice (no concat).
        for hd in range(heads):
            csl = slice(hd * fout, (hd + 1) * fout)
            inv = pl.reciprocal(l_sc[:, hd:hd + 1], approx=True)
            acc_sc[:, csl] = acc_sc[:, csl] * inv
        out = acc_sc[...] + b_ref[...]
        if activation == "relu":                        # fused F.relu (layer 1)
            out = jnp.maximum(out, 0.0)
        elif activation == "log_softmax":               # fused F.log_softmax (layer 2)
            mm = jnp.max(out, axis=1, keepdims=True)
            s = out - mm
            out = s - jnp.log(jnp.sum(jnp.exp(s), axis=1, keepdims=True))
        out_ref[...] = out.astype(out_ref.dtype)


# ----------------------------------------------------------------------------
# Wrappers
# ----------------------------------------------------------------------------
def _round_up(n, m):
    return ((n + m - 1) // m) * m


def _choose_tiles(n):
    """Pick (n_pad, row_tile, col_tile) with n_pad % row_tile == n_pad % col_tile == 0."""
    # TODO(synk): prefer row_tile=128 on v5e (4x128^2 MXU, smaller scoped-VMEM default).
    n128 = _round_up(n, 128)
    if n128 <= 512:
        col_tile = n128
        row_tile = min(256, n128)
        if n128 % row_tile != 0:
            row_tile = 128
        return n128, row_tile, col_tile
    return _round_up(n, 512), 256, 512


def gat_conv(x, params, adj_bias, *, activation, row_tile, col_tile):
    """One GATConv layer (concat=True). x is (Np, Fin) padded; returns (Np, heads*Fout)."""
    heads, fin, fout = params["w"].shape
    n_pad = x.shape[0]
    hf = heads * fout
    wtot = hf + 2 * heads

    # Head-concat weight with the per-head attention vectors folded in as extra
    # columns: [W_cat | W_h @ a_src_h | W_h @ a_dst_h].
    w_cat = jnp.transpose(params["w"], (1, 0, 2)).reshape(fin, hf)      # (Fin, hf)
    wa_src = jnp.einsum("hif,hf->ih", params["w"], params["a_src"])     # (Fin, heads)
    wa_dst = jnp.einsum("hif,hf->ih", params["w"], params["a_dst"])     # (Fin, heads)
    w_all = jnp.concatenate([w_cat, wa_src, wa_dst], axis=1).astype(jnp.bfloat16)
    bias = params["b"].reshape(1, hf).astype(jnp.float32)

    num_row = n_pad // row_tile
    num_col = n_pad // col_tile

    # --- (1) hoisted projection: one pass over all nodes -----------------------------
    proj = pl.pallas_call(
        gat_proj_kernel,
        out_shape=jax.ShapeDtypeStruct((n_pad, wtot), jnp.float32),
        grid_spec=pltpu.PrefetchScalarGridSpec(
            num_scalar_prefetch=0,
            grid=(num_row,),
            in_specs=[
                pl.BlockSpec((row_tile, fin), lambda i: (i, 0)),
                pl.BlockSpec((fin, wtot), lambda i: (0, 0)),
            ],
            out_specs=pl.BlockSpec((row_tile, wtot), lambda i: (i, 0)),
        ),
        compiler_params=pltpu.CompilerParams(dimension_semantics=("parallel",)),
    )(x, w_all)

    # Cheap wrapper-side layout plumbing (one-time per layer).
    h_all = proj[:, :hf].astype(jnp.bfloat16)           # (Np, hf) streamed per col block
    s_src = proj[:, hf:hf + heads].T                    # (heads, Np) lane-dense
    s_dst = proj[:, hf + heads:hf + 2 * heads]          # (Np, heads)

    # --- (2) attention + aggregation (flash-style over source columns) ---------------
    kernel = functools.partial(gat_attn_kernel, heads=heads, fout=fout,
                               activation=activation)
    return pl.pallas_call(
        kernel,
        out_shape=jax.ShapeDtypeStruct((n_pad, hf), jnp.float32),
        grid_spec=pltpu.PrefetchScalarGridSpec(
            num_scalar_prefetch=0,
            grid=(num_row, num_col),
            in_specs=[
                pl.BlockSpec((row_tile, heads), lambda i, j: (i, 0)),     # s_dst rows
                pl.BlockSpec((heads, col_tile), lambda i, j: (0, j)),     # s_src cols
                pl.BlockSpec((col_tile, hf), lambda i, j: (j, 0)),        # h_all col block
                pl.BlockSpec((row_tile, col_tile), lambda i, j: (i, j)),  # adjacency bias
                pl.BlockSpec((1, hf), lambda i, j: (0, 0)),               # bias
            ],
            out_specs=pl.BlockSpec((row_tile, hf), lambda i, j: (i, 0)),
            scratch_shapes=[
                pltpu.VMEM((row_tile, heads), jnp.float32),   # running max
                pltpu.VMEM((row_tile, heads), jnp.float32),   # running denom
                pltpu.VMEM((row_tile, hf), jnp.float32),      # running aggregate
            ],
        ),
        compiler_params=pltpu.CompilerParams(
            dimension_semantics=("parallel", "arbitrary"),
            vmem_limit_bytes=32 * 1024 * 1024),
    )(s_dst, s_src, h_all, adj_bias, bias)


def edge_index_to_adj_bias(edge_index, n_pad):
    """Additive adjacency bias (bf16): 0 where edge j->i or self-loop, -1e38 otherwise."""
    # TODO(synk): duplicate edges collapse to one entry in this dense mask (PyG's
    # edge-list softmax would count them twice for multigraphs).
    src, dst = edge_index[0], edge_index[1]
    adj = jnp.zeros((n_pad, n_pad), jnp.float32).at[dst, src].set(1.0)
    adj = adj + jnp.eye(n_pad, dtype=jnp.float32)        # add_self_loops (also pad rows)
    return jnp.where(adj > 0, 0.0, _NEG_MASK).astype(jnp.bfloat16)


def gat_forward(x, edge_index, edge_attr, params1, params2):
    del edge_attr  # unpacked but unused in the reference forward
    n = x.shape[0]
    n_pad, row_tile, col_tile = _choose_tiles(n)
    x_pad = jnp.pad(x, ((0, n_pad - n), (0, 0)))
    adj_bias = edge_index_to_adj_bias(edge_index, n_pad)  # shared by both layers

    h = gat_conv(x_pad, params1, adj_bias, activation="relu",
                 row_tile=row_tile, col_tile=col_tile)
    # F.dropout(p=0.6, training=False) -> identity (inference mode).
    # TODO(synk): training-mode dropout (features AND attention coefficients in
    # PyG) would need pltpu.prng_* stochastic masking inside both kernels.
    out = gat_conv(h, params2, adj_bias, activation="log_softmax",
                   row_tile=row_tile, col_tile=col_tile)
    return out[:n]


# ----------------------------------------------------------------------------
# Deterministic parameter init (Glorot uniform, zero bias — PyG GATConv style)
# ----------------------------------------------------------------------------
def glorot(key, shape, fan_in, fan_out):
    limit = (6.0 / (fan_in + fan_out)) ** 0.5
    return jax.random.uniform(key, shape, jnp.float32, -limit, limit)


def init_gatconv(key, fin, fout, heads):
    kw, ks, kd = jax.random.split(key, 3)
    return {
        "w": glorot(kw, (heads, fin, fout), fin, heads * fout),
        "a_src": glorot(ks, (heads, fout), fout, 1),
        "a_dst": glorot(kd, (heads, fout), fout, 1),
        "b": jnp.zeros((heads * fout,), jnp.float32),
    }


# ----------------------------------------------------------------------------
if __name__ == "__main__":
    key = jax.random.PRNGKey(0)
    k_x, k_src, k_dst, k_p1, k_p2 = jax.random.split(key, 5)

    N, in_feats, h_feats, out_feats, heads = 12, 8, 16, 4, 2
    num_edges = 40

    x = jax.random.normal(k_x, (N, in_feats), jnp.float32)
    src = jax.random.randint(k_src, (num_edges,), 0, N)
    dst = jax.random.randint(k_dst, (num_edges,), 0, N)
    edge_index = jnp.stack([src, dst]).astype(jnp.int32)   # (2, E)
    edge_attr = jnp.ones((num_edges, 1), jnp.float32)      # unused by forward

    params1 = init_gatconv(k_p1, in_feats, h_feats, heads)
    params2 = init_gatconv(k_p2, heads * h_feats, out_feats, heads)

    out = jax.jit(gat_forward)(x, edge_index, edge_attr, params1, params2)
    out = jax.block_until_ready(out)
    assert out.shape == (N, heads * out_feats)
    assert bool(jnp.all(jnp.isfinite(out)))
    print("KERNEL_OK")
</pallas_src>

<mosaic_0001>
module attributes {stable_mosaic.version = 11 : i64} {
  func.func @gat_proj_kernel(%arg0: i32, %arg1: memref<128x8xf32, #tpu.memory_space<vmem>>, %arg2: memref<8x36xbf16, #tpu.memory_space<vmem>>, %arg3: memref<128x36xf32, #tpu.memory_space<vmem>>) attributes {dimension_semantics = [#tpu.dimension_semantics<parallel>], iteration_bounds = array<i64: 1>, scalar_prefetch = 0 : i64, scratch_operands = 0 : i64, tpu.core_type = #tpu.core_type<tc>, window_params = [{transform_indices = @transform_0, window_bounds = array<i64: 128, 8>}, {pipeline_mode = #tpu.pipeline_mode<synchronous>, transform_indices = @transform_1, window_bounds = array<i64: 8, 36>}, {transform_indices = @transform_2, window_bounds = array<i64: 128, 36>}]} {
    %c0 = arith.constant 0 : index
    %c0_0 = arith.constant 0 : index
    %0 = vector.load %arg1[%c0, %c0_0] : memref<128x8xf32, #tpu.memory_space<vmem>>, vector<128x8xf32>
    %1 = arith.truncf %0 : vector<128x8xf32> to vector<128x8xbf16>
    %c0_1 = arith.constant 0 : index
    %c0_2 = arith.constant 0 : index
    %2 = vector.load %arg2[%c0_1, %c0_2] : memref<8x36xbf16, #tpu.memory_space<vmem>>, vector<8x36xbf16>
    %cst = arith.constant dense<0.000000e+00> : vector<128x36xf32>
    %3 = tpu.matmul %1, %2, %cst {dimension_numbers = #tpu.dot_dimension_numbers<[1], [0], [0], [1], [0, 0, 1, 1], [], []>} : vector<128x8xbf16>, vector<8x36xbf16>, vector<128x36xf32> -> vector<128x36xf32>
    %c0_3 = arith.constant 0 : index
    %c0_4 = arith.constant 0 : index
    %4 = vector.load %arg3[%c0_3, %c0_4] : memref<128x36xf32, #tpu.memory_space<vmem>>, vector<128x36xf32>
    tpu.vector_store %arg3[%c0_3, %c0_4], %3 {strides = array<i32>} : memref<128x36xf32, #tpu.memory_space<vmem>>, vector<128x36xf32>,
    return
  }
  func.func @transform_0(%arg0: i32) -> (i32, i32) {
    %c0_i32 = arith.constant 0 : i32
    %c0_i32_0 = arith.constant 0 : i32
    return %arg0, %c0_i32 : i32, i32
  }
  func.func @transform_1(%arg0: i32) -> (i32, i32) {
    %c0_i32 = arith.constant 0 : i32
    %c0_i32_0 = arith.constant 0 : i32
    %c0_i32_1 = arith.constant 0 : i32
    return %c0_i32, %c0_i32_0 : i32, i32
  }
  func.func @transform_2(%arg0: i32) -> (i32, i32) {
    %c0_i32 = arith.constant 0 : i32
    %c0_i32_0 = arith.constant 0 : i32
    return %arg0, %c0_i32 : i32, i32
  }
}

module attributes {stable_mosaic.version = 11 : i64} {
  func.func @gat_attn_kernel(%arg0: i32, %arg1: i32, %arg2: memref<128x2xf32, #tpu.memory_space<vmem>>, %arg3: memref<2x128xf32, #tpu.memory_space<vmem>>, %arg4: memref<128x32xbf16, #tpu.memory_space<vmem>>, %arg5: memref<128x128xbf16, #tpu.memory_space<vmem>>, %arg6: memref<1x32xf32, #tpu.memory_space<vmem>>, %arg7: memref<128x32xf32, #tpu.memory_space<vmem>>, %arg8: memref<128x2xf32, #tpu.memory_space<vmem>>, %arg9: memref<128x2xf32, #tpu.memory_space<vmem>>, %arg10: memref<128x32xf32, #tpu.memory_space<vmem>>) attributes {dimension_semantics = [#tpu.dimension_semantics<parallel>, #tpu.dimension_semantics<arbitrary>], iteration_bounds = array<i64: 1, 1>, scalar_prefetch = 0 : i64, scratch_operands = 3 : i64, tpu.core_type = #tpu.core_type<tc>, window_params = [{transform_indices = @transform_0, window_bounds = array<i64: 128, 2>}, {transform_indices = @transform_1, window_bounds = array<i64: 2, 128>}, {transform_indices = @transform_2, window_bounds = array<i64: 128, 32>}, {transform_indices = @transform_3, window_bounds = array<i64: 128, 128>}, {pipeline_mode = #tpu.pipeline_mode<synchronous>, transform_indices = @transform_4, window_bounds = array<i64: 1, 32>}, {transform_indices = @transform_5, window_bounds = array<i64: 128, 32>}]} {
    %c0_i32 = arith.constant 0 : i32
    %0 = arith.cmpi eq, %arg1, %c0_i32 : i32
    %1 = arith.extui %0 : i1 to i32
    %c0_i32_0 = arith.constant 0 : i32
    %2 = arith.cmpi ne, %1, %c0_i32_0 : i32
    scf.if %2 {
      %cst_41 = arith.constant -1.000000e+30 : f32
      %81 = vector.broadcast %cst_41 : f32 to vector<128x2xf32>
      %c0_42 = arith.constant 0 : index
      %c0_43 = arith.constant 0 : index
      %82 = vector.load %arg8[%c0_42, %c0_43] : memref<128x2xf32, #tpu.memory_space<vmem>>, vector<128x2xf32>
      tpu.vector_store %arg8[%c0_42, %c0_43], %81 {strides = array<i32>} : memref<128x2xf32, #tpu.memory_space<vmem>>, vector<128x2xf32>,
      %cst_44 = arith.constant 0.000000e+00 : f32
      %83 = vector.broadcast %cst_44 : f32 to vector<128x2xf32>
      %c0_45 = arith.constant 0 : index
      %c0_46 = arith.constant 0 : index
      %84 = vector.load %arg9[%c0_45, %c0_46] : memref<128x2xf32, #tpu.memory_space<vmem>>, vector<128x2xf32>
      tpu.vector_store %arg9[%c0_45, %c0_46], %83 {strides = array<i32>} : memref<128x2xf32, #tpu.memory_space<vmem>>, vector<128x2xf32>,
      %cst_47 = arith.constant 0.000000e+00 : f32
      %85 = vector.broadcast %cst_47 : f32 to vector<128x32xf32>
      %c0_48 = arith.constant 0 : index
      %c0_49 = arith.constant 0 : index
      %86 = vector.load %arg10[%c0_48, %c0_49] : memref<128x32xf32, #tpu.memory_space<vmem>>, vector<128x32xf32>
      tpu.vector_store %arg10[%c0_48, %c0_49], %85 {strides = array<i32>} : memref<128x32xf32, #tpu.memory_space<vmem>>, vector<128x32xf32>,
    } else {
    }
    %c0 = arith.constant 0 : index
    %c0_1 = arith.constant 0 : index
    %3 = vector.load %arg2[%c0, %c0_1] : memref<128x2xf32, #tpu.memory_space<vmem>>, vector<128x2xf32>
    %c0_2 = arith.constant 0 : index
    %c0_3 = arith.constant 0 : index
    %4 = vector.load %arg3[%c0_2, %c0_3] : memref<2x128xf32, #tpu.memory_space<vmem>>, vector<2x128xf32>
    %c0_4 = arith.constant 0 : index
    %c0_5 = arith.constant 0 : index
    %5 = vector.load %arg5[%c0_4, %c0_5] : memref<128x128xbf16, #tpu.memory_space<vmem>>, vector<128x128xbf16>
    %6 = arith.extf %5 : vector<128x128xbf16> to vector<128x128xf32>
    %c0_6 = arith.constant 0 : index
    %c0_7 = arith.constant 0 : index
    %7 = vector.load %arg4[%c0_6, %c0_7] : memref<128x32xbf16, #tpu.memory_space<vmem>>, vector<128x32xbf16>
    %8 = vector.extract_strided_slice %3 {offsets = [0, 0], sizes = [128, 1], strides = [1, 1]} : vector<128x2xf32> to vector<128x1xf32>
    %9 = vector.extract_strided_slice %4 {offsets = [0, 0], sizes = [1, 128], strides = [1, 1]} : vector<2x128xf32> to vector<1x128xf32>
    %10 = vector.broadcast %8 : vector<128x1xf32> to vector<128x128xf32>
    %11 = vector.broadcast %9 : vector<1x128xf32> to vector<128x128xf32>
    %12 = arith.addf %10, %11 : vector<128x128xf32>
    %cst = arith.constant 0.000000e+00 : f32
    %13 = vector.broadcast %cst : f32 to vector<128x128xf32>
    %14 = arith.cmpf ogt, %12, %13 : vector<128x128xf32>
    %cst_8 = arith.constant 2.000000e-01 : f32
    %15 = vector.broadcast %cst_8 : f32 to vector<128x128xf32>
    %16 = arith.mulf %15, %12 : vector<128x128xf32>
    %17 = arith.select %14, %12, %16 : vector<128x128xi1>, vector<128x128xf32>
    %18 = arith.addf %17, %6 : vector<128x128xf32>
    %c0_9 = arith.constant 0 : index
    %c0_10 = arith.constant 0 : index
    %19 = vector.load %arg8[%c0_9, %c0_10] : memref<128x2xf32, #tpu.memory_space<vmem>>, vector<128x1xf32>
    %cst_11 = arith.constant dense<0xFF800000> : vector<128xf32>
    %20 = vector.multi_reduction <maximumf>, %18, %cst_11 [1] : vector<128x128xf32> to vector<128xf32>
    %21 = vector.shape_cast %20 : vector<128xf32> to vector<128x1xf32>
    %22 = arith.maximumf %19, %21 : vector<128x1xf32>
    %23 = arith.subf %19, %22 : vector<128x1xf32>
    %24 = math.exp %23 : vector<128x1xf32>
    %25 = vector.broadcast %22 : vector<128x1xf32> to vector<128x128xf32>
    %26 = arith.subf %18, %25 : vector<128x128xf32>
    %27 = math.exp %26 : vector<128x128xf32>
    %c0_12 = arith.constant 0 : index
    %c0_13 = arith.constant 0 : index
    %28 = vector.load %arg9[%c0_12, %c0_13] : memref<128x2xf32, #tpu.memory_space<vmem>>, vector<128x1xf32>
    %29 = arith.mulf %24, %28 : vector<128x1xf32>
    %cst_14 = arith.constant dense<0.000000e+00> : vector<128xf32>
    %30 = vector.multi_reduction <add>, %27, %cst_14 [1] : vector<128x128xf32> to vector<128xf32>
    %31 = vector.shape_cast %30 : vector<128xf32> to vector<128x1xf32>
    %32 = arith.addf %29, %31 : vector<128x1xf32>
    %c0_15 = arith.constant 0 : index
    %c0_16 = arith.constant 0 : index
    %33 = vector.load %arg9[%c0_15, %c0_16] : memref<128x2xf32, #tpu.memory_space<vmem>>, vector<128x1xf32>
    tpu.vector_store %arg9[%c0_15, %c0_16], %32 {strides = array<i32>} : memref<128x2xf32, #tpu.memory_space<vmem>>, vector<128x1xf32>,
    %c0_17 = arith.constant 0 : index
    %c0_18 = arith.constant 0 : index
    %34 = vector.load %arg10[%c0_17, %c0_18] : memref<128x32xf32, #tpu.memory_space<vmem>>, vector<128x16xf32>
    %35 = vector.broadcast %24 : vector<128x1xf32> to vector<128x16xf32>
    %36 = arith.mulf %35, %34 : vector<128x16xf32>
    %37 = arith.truncf %27 : vector<128x128xf32> to vector<128x128xbf16>
    %38 = vector.extract_strided_slice %7 {offsets = [0, 0], sizes = [128, 16], strides = [1, 1]} : vector<128x32xbf16> to vector<128x16xbf16>
    %cst_19 = arith.constant dense<0.000000e+00> : vector<128x16xf32>
    %39 = tpu.matmul %37, %38, %cst_19 {dimension_numbers = #tpu.dot_dimension_numbers<[1], [0], [0], [1], [0, 0, 1, 1], [], []>} : vector<128x128xbf16>, vector<128x16xbf16>, vector<128x16xf32> -> vector<128x16xf32>
    %40 = arith.addf %36, %39 : vector<128x16xf32>
    %c0_20 = arith.constant 0 : index
    %c0_21 = arith.constant 0 : index
    %41 = vector.load %arg10[%c0_20, %c0_21] : memref<128x32xf32, #tpu.memory_space<vmem>>, vector<128x16xf32>
    tpu.vector_store %arg10[%c0_20, %c0_21], %40 {strides = array<i32>} : memref<128x32xf32, #tpu.memory_space<vmem>>, vector<128x16xf32>,
    %c0_22 = arith.constant 0 : index
    %c0_23 = arith.constant 0 : index
    %42 = vector.load %arg8[%c0_22, %c0_23] : memref<128x2xf32, #tpu.memory_space<vmem>>, vector<128x1xf32>
    tpu.vector_store %arg8[%c0_22, %c0_23], %22 {strides = array<i32>} : memref<128x2xf32, #tpu.memory_space<vmem>>, vector<128x1xf32>,
    %43 = vector.extract_strided_slice %3 {offsets = [0, 1], sizes = [128, 1], strides = [1, 1]} : vector<128x2xf32> to vector<128x1xf32>
    %44 = vector.extract_strided_slice %4 {offsets = [1, 0], sizes = [1, 128], strides = [1, 1]} : vector<2x128xf32> to vector<1x128xf32>
    %45 = vector.broadcast %43 : vector<128x1xf32> to vector<128x128xf32>
    %46 = vector.broadcast %44 : vector<1x128xf32> to vector<128x128xf32>
    %47 = arith.addf %45, %46 : vector<128x128xf32>
    %cst_24 = arith.constant 0.000000e+00 : f32
    %48 = vector.broadcast %cst_24 : f32 to vector<128x128xf32>
    %49 = arith.cmpf ogt, %47, %48 : vector<128x128xf32>
    %cst_25 = arith.constant 2.000000e-01 : f32
    %50 = vector.broadcast %cst_25 : f32 to vector<128x128xf32>
    %51 = arith.mulf %50, %47 : vector<128x128xf32>
    %52 = arith.select %49, %47, %51 : vector<128x128xi1>, vector<128x128xf32>
    %53 = arith.addf %52, %6 : vector<128x128xf32>
    %c0_26 = arith.constant 0 : index
    %c1 = arith.constant 1 : index
    %54 = vector.load %arg8[%c0_26, %c1] : memref<128x2xf32, #tpu.memory_space<vmem>>, vector<128x1xf32>
    %cst_27 = arith.constant dense<0xFF800000> : vector<128xf32>
    %55 = vector.multi_reduction <maximumf>, %53, %cst_27 [1] : vector<128x128xf32> to vector<128xf32>
    %56 = vector.shape_cast %55 : vector<128xf32> to vector<128x1xf32>
    %57 = arith.maximumf %54, %56 : vector<128x1xf32>
    %58 = arith.subf %54, %57 : vector<128x1xf32>
    %59 = math.exp %58 : vector<128x1xf32>
    %60 = vector.broadcast %57 : vector<128x1xf32> to vector<128x128xf32>
    %61 = arith.subf %53, %60 : vector<128x128xf32>
    %62 = math.exp %61 : vector<128x128xf32>
    %c0_28 = arith.constant 0 : index
    %c1_29 = arith.constant 1 : index
    %63 = vector.load %arg9[%c0_28, %c1_29] : memref<128x2xf32, #tpu.memory_space<vmem>>, vector<128x1xf32>
    %64 = arith.mulf %59, %63 : vector<128x1xf32>
    %cst_30 = arith.constant dense<0.000000e+00> : vector<128xf32>
    %65 = vector.multi_reduction <add>, %62, %cst_30 [1] : vector<128x128xf32> to vector<128xf32>
    %66 = vector.shape_cast %65 : vector<128xf32> to vector<128x1xf32>
    %67 = arith.addf %64, %66 : vector<128x1xf32>
    %c0_31 = arith.constant 0 : index
    %c1_32 = arith.constant 1 : index
    %68 = vector.load %arg9[%c0_31, %c1_32] : memref<128x2xf32, #tpu.memory_space<vmem>>, vector<128x1xf32>
    tpu.vector_store %arg9[%c0_31, %c1_32], %67 {strides = array<i32>} : memref<128x2xf32, #tpu.memory_space<vmem>>, vector<128x1xf32>,
    %c0_33 = arith.constant 0 : index
    %c16 = arith.constant 16 : index
    %69 = vector.load %arg10[%c0_33, %c16] : memref<128x32xf32, #tpu.memory_space<vmem>>, vector<128x16xf32>
    %70 = vector.broadcast %59 : vector<128x1xf32> to vector<128x16xf32>
    %71 = arith.mulf %70, %69 : vector<128x16xf32>
    %72 = arith.truncf %62 : vector<128x128xf32> to vector<128x128xbf16>
    %73 = vector.extract_strided_slice %7 {offsets = [0, 16], sizes = [128, 16], strides = [1, 1]} : vector<128x32xbf16> to vector<128x16xbf16>
    %cst_34 = arith.constant dense<0.000000e+00> : vector<128x16xf32>
    %74 = tpu.matmul %72, %73, %cst_34 {dimension_numbers = #tpu.dot_dimension_numbers<[1], [0], [0], [1], [0, 0, 1, 1], [], []>} : vector<128x128xbf16>, vector<128x16xbf16>, vector<128x16xf32> -> vector<128x16xf32>
    %75 = arith.addf %71, %74 : vector<128x16xf32>
    %c0_35 = arith.constant 0 : index
    %c16_36 = arith.constant 16 : index
    %76 = vector.load %arg10[%c0_35, %c16_36] : memref<128x32xf32, #tpu.memory_space<vmem>>, vector<128x16xf32>
    tpu.vector_store %arg10[%c0_35, %c16_36], %75 {strides = array<i32>} : memref<128x32xf32, #tpu.memory_space<vmem>>, vector<128x16xf32>,
    %c0_37 = arith.constant 0 : index
    %c1_38 = arith.constant 1 : index
    %77 = vector.load %arg8[%c0_37, %c1_38] : memref<128x2xf32, #tpu.memory_space<vmem>>, vector<128x1xf32>
    tpu.vector_store %arg8[%c0_37, %c1_38], %57 {strides = array<i32>} : memref<128x2xf32, #tpu.memory_space<vmem>>, vector<128x1xf32>,
    %c0_i32_39 = arith.constant 0 : i32
    %78 = arith.cmpi eq, %arg1, %c0_i32_39 : i32
    %79 = arith.extui %78 : i1 to i32
    %c0_i32_40 = arith.constant 0 : i32
    %80 = arith.cmpi ne, %79, %c0_i32_40 : i32
    scf.if %80 {
      %c0_41 = arith.constant 0 : index
      %c0_42 = arith.constant 0 : index
      %81 = vector.load %arg9[%c0_41, %c0_42] : memref<128x2xf32, #tpu.memory_space<vmem>>, vector<128x1xf32>
      %82 = tpu.reciprocal %81 {approx = true} : vector<128x1xf32> -> vector<128x1xf32>
      %c0_43 = arith.constant 0 : index
      %c0_44 = arith.constant 0 : index
      %83 = vector.load %arg10[%c0_43, %c0_44] : memref<128x32xf32, #tpu.memory_space<vmem>>, vector<128x16xf32>
      %84 = vector.broadcast %82 : vector<128x1xf32> to vector<128x16xf32>
      %85 = arith.mulf %83, %84 : vector<128x16xf32>
      %c0_45 = arith.constant 0 : index
      %c0_46 = arith.constant 0 : index
      %86 = vector.load %arg10[%c0_45, %c0_46] : memref<128x32xf32, #tpu.memory_space<vmem>>, vector<128x16xf32>
      tpu.vector_store %arg10[%c0_45, %c0_46], %85 {strides = array<i32>} : memref<128x32xf32, #tpu.memory_space<vmem>>, vector<128x16xf32>,
      %c0_47 = arith.constant 0 : index
      %c1_48 = arith.constant 1 : index
      %87 = vector.load %arg9[%c0_47, %c1_48] : memref<128x2xf32, #tpu.memory_space<vmem>>, vector<128x1xf32>
      %88 = tpu.reciprocal %87 {approx = true} : vector<128x1xf32> -> vector<128x1xf32>
      %c0_49 = arith.constant 0 : index
      %c16_50 = arith.constant 16 : index
      %89 = vector.load %arg10[%c0_49, %c16_50] : memref<128x32xf32, #tpu.memory_space<vmem>>, vector<128x16xf32>
      %90 = vector.broadcast %88 : vector<128x1xf32> to vector<128x16xf32>
      %91 = arith.mulf %89, %90 : vector<128x16xf32>
      %c0_51 = arith.constant 0 : index
      %c16_52 = arith.constant 16 : index
      %92 = vector.load %arg10[%c0_51, %c16_52] : memref<128x32xf32, #tpu.memory_space<vmem>>, vector<128x16xf32>
      tpu.vector_store %arg10[%c0_51, %c16_52], %91 {strides = array<i32>} : memref<128x32xf32, #tpu.memory_space<vmem>>, vector<128x16xf32>,
      %c0_53 = arith.constant 0 : index
      %c0_54 = arith.constant 0 : index
      %93 = vector.load %arg10[%c0_53, %c0_54] : memref<128x32xf32, #tpu.memory_space<vmem>>, vector<128x32xf32>
      %c0_55 = arith.constant 0 : index
      %c0_56 = arith.constant 0 : index
      %94 = vector.load %arg6[%c0_55, %c0_56] : memref<1x32xf32, #tpu.memory_space<vmem>>, vector<1x32xf32>
      %95 = vector.broadcast %94 : vector<1x32xf32> to vector<128x32xf32>
      %96 = arith.addf %93, %95 : vector<128x32xf32>
      %cst_57 = arith.constant 0.000000e+00 : f32
      %97 = vector.broadcast %cst_57 : f32 to vector<128x32xf32>
      %98 = arith.maximumf %96, %97 : vector<128x32xf32>
      %c0_58 = arith.constant 0 : index
      %c0_59 = arith.constant 0 : index
      %99 = vector.load %arg7[%c0_58, %c0_59] : memref<128x32xf32, #tpu.memory_space<vmem>>, vector<128x32xf32>
      tpu.vector_store %arg7[%c0_58, %c0_59], %98 {strides = array<i32>} : memref<128x32xf32, #tpu.memory_space<vmem>>, vector<128x32xf32>,
    } else {
    }
    return
  }
  func.func @transform_0(%arg0: i32, %arg1: i32) -> (i32, i32) {
    %c0_i32 = arith.constant 0 : i32
    %c0_i32_0 = arith.constant 0 : i32
    return %arg0, %c0_i32 : i32, i32
  }
  func.func @transform_1(%arg0: i32, %arg1: i32) -> (i32, i32) {
    %c0_i32 = arith.constant 0 : i32
    %c0_i32_0 = arith.constant 0 : i32
    return %c0_i32, %arg1 : i32, i32
  }
  func.func @transform_2(%arg0: i32, %arg1: i32) -> (i32, i32) {
    %c0_i32 = arith.constant 0 : i32
    %c0_i32_0 = arith.constant 0 : i32
    return %arg1, %c0_i32 : i32, i32
  }
  func.func @transform_3(%arg0: i32, %arg1: i32) -> (i32, i32) {
    %c0_i32 = arith.constant 0 : i32
    return %arg0, %arg1 : i32, i32
  }
  func.func @transform_4(%arg0: i32, %arg1: i32) -> (i32, i32) {
    %c0_i32 = arith.constant 0 : i32
    %c0_i32_0 = arith.constant 0 : i32
    %c0_i32_1 = arith.constant 0 : i32
    return %c0_i32, %c0_i32_0 : i32, i32
  }
  func.func @transform_5(%arg0: i32, %arg1: i32) -> (i32, i32) {
    %c0_i32 = arith.constant 0 : i32
    %c0_i32_0 = arith.constant 0 : i32
    return %arg0, %c0_i32 : i32, i32
  }
}

module attributes {stable_mosaic.version = 11 : i64} {
  func.func @gat_proj_kernel(%arg0: i32, %arg1: memref<128x32xf32, #tpu.memory_space<vmem>>, %arg2: memref<32x12xbf16, #tpu.memory_space<vmem>>, %arg3: memref<128x12xf32, #tpu.memory_space<vmem>>) attributes {dimension_semantics = [#tpu.dimension_semantics<parallel>], iteration_bounds = array<i64: 1>, scalar_prefetch = 0 : i64, scratch_operands = 0 : i64, tpu.core_type = #tpu.core_type<tc>, window_params = [{transform_indices = @transform_0, window_bounds = array<i64: 128, 32>}, {pipeline_mode = #tpu.pipeline_mode<synchronous>, transform_indices = @transform_1, window_bounds = array<i64: 32, 12>}, {transform_indices = @transform_2, window_bounds = array<i64: 128, 12>}]} {
    %c0 = arith.constant 0 : index
    %c0_0 = arith.constant 0 : index
    %0 = vector.load %arg1[%c0, %c0_0] : memref<128x32xf32, #tpu.memory_space<vmem>>, vector<128x32xf32>
    %1 = arith.truncf %0 : vector<128x32xf32> to vector<128x32xbf16>
    %c0_1 = arith.constant 0 : index
    %c0_2 = arith.constant 0 : index
    %2 = vector.load %arg2[%c0_1, %c0_2] : memref<32x12xbf16, #tpu.memory_space<vmem>>, vector<32x12xbf16>
    %cst = arith.constant dense<0.000000e+00> : vector<128x12xf32>
    %3 = tpu.matmul %1, %2, %cst {dimension_numbers = #tpu.dot_dimension_numbers<[1], [0], [0], [1], [0, 0, 1, 1], [], []>} : vector<128x32xbf16>, vector<32x12xbf16>, vector<128x12xf32> -> vector<128x12xf32>
    %c0_3 = arith.constant 0 : index
    %c0_4 = arith.constant 0 : index
    %4 = vector.load %arg3[%c0_3, %c0_4] : memref<128x12xf32, #tpu.memory_space<vmem>>, vector<128x12xf32>
    tpu.vector_store %arg3[%c0_3, %c0_4], %3 {strides = array<i32>} : memref<128x12xf32, #tpu.memory_space<vmem>>, vector<128x12xf32>,
    return
  }
  func.func @transform_0(%arg0: i32) -> (i32, i32) {
    %c0_i32 = arith.constant 0 : i32
    %c0_i32_0 = arith.constant 0 : i32
    return %arg0, %c0_i32 : i32, i32
  }
  func.func @transform_1(%arg0: i32) -> (i32, i32) {
    %c0_i32 = arith.constant 0 : i32
    %c0_i32_0 = arith.constant 0 : i32
    %c0_i32_1 = arith.constant 0 : i32
    return %c0_i32, %c0_i32_0 : i32, i32
  }
  func.func @transform_2(%arg0: i32) -> (i32, i32) {
    %c0_i32 = arith.constant 0 : i32
    %c0_i32_0 = arith.constant 0 : i32
    return %arg0, %c0_i32 : i32, i32
  }
}

module attributes {stable_mosaic.version = 11 : i64} {
  func.func @gat_attn_kernel(%arg0: i32, %arg1: i32, %arg2: memref<128x2xf32, #tpu.memory_space<vmem>>, %arg3: memref<2x128xf32, #tpu.memory_space<vmem>>, %arg4: memref<128x8xbf16, #tpu.memory_space<vmem>>, %arg5: memref<128x128xbf16, #tpu.memory_space<vmem>>, %arg6: memref<1x8xf32, #tpu.memory_space<vmem>>, %arg7: memref<128x8xf32, #tpu.memory_space<vmem>>, %arg8: memref<128x2xf32, #tpu.memory_space<vmem>>, %arg9: memref<128x2xf32, #tpu.memory_space<vmem>>, %arg10: memref<128x8xf32, #tpu.memory_space<vmem>>) attributes {dimension_semantics = [#tpu.dimension_semantics<parallel>, #tpu.dimension_semantics<arbitrary>], iteration_bounds = array<i64: 1, 1>, scalar_prefetch = 0 : i64, scratch_operands = 3 : i64, tpu.core_type = #tpu.core_type<tc>, window_params = [{transform_indices = @transform_0, window_bounds = array<i64: 128, 2>}, {transform_indices = @transform_1, window_bounds = array<i64: 2, 128>}, {transform_indices = @transform_2, window_bounds = array<i64: 128, 8>}, {transform_indices = @transform_3, window_bounds = array<i64: 128, 128>}, {pipeline_mode = #tpu.pipeline_mode<synchronous>, transform_indices = @transform_4, window_bounds = array<i64: 1, 8>}, {transform_indices = @transform_5, window_bounds = array<i64: 128, 8>}]} {
    %c0_i32 = arith.constant 0 : i32
    %0 = arith.cmpi eq, %arg1, %c0_i32 : i32
    %1 = arith.extui %0 : i1 to i32
    %c0_i32_0 = arith.constant 0 : i32
    %2 = arith.cmpi ne, %1, %c0_i32_0 : i32
    scf.if %2 {
      %cst_41 = arith.constant -1.000000e+30 : f32
      %81 = vector.broadcast %cst_41 : f32 to vector<128x2xf32>
      %c0_42 = arith.constant 0 : index
      %c0_43 = arith.constant 0 : index
      %82 = vector.load %arg8[%c0_42, %c0_43] : memref<128x2xf32, #tpu.memory_space<vmem>>, vector<128x2xf32>
      tpu.vector_store %arg8[%c0_42, %c0_43], %81 {strides = array<i32>} : memref<128x2xf32, #tpu.memory_space<vmem>>, vector<128x2xf32>,
      %cst_44 = arith.constant 0.000000e+00 : f32
      %83 = vector.broadcast %cst_44 : f32 to vector<128x2xf32>
      %c0_45 = arith.constant 0 : index
      %c0_46 = arith.constant 0 : index
      %84 = vector.load %arg9[%c0_45, %c0_46] : memref<128x2xf32, #tpu.memory_space<vmem>>, vector<128x2xf32>
      tpu.vector_store %arg9[%c0_45, %c0_46], %83 {strides = array<i32>} : memref<128x2xf32, #tpu.memory_space<vmem>>, vector<128x2xf32>,
      %cst_47 = arith.constant 0.000000e+00 : f32
      %85 = vector.broadcast %cst_47 : f32 to vector<128x8xf32>
      %c0_48 = arith.constant 0 : index
      %c0_49 = arith.constant 0 : index
      %86 = vector.load %arg10[%c0_48, %c0_49] : memref<128x8xf32, #tpu.memory_space<vmem>>, vector<128x8xf32>
      tpu.vector_store %arg10[%c0_48, %c0_49], %85 {strides = array<i32>} : memref<128x8xf32, #tpu.memory_space<vmem>>, vector<128x8xf32>,
    } else {
    }
    %c0 = arith.constant 0 : index
    %c0_1 = arith.constant 0 : index
    %3 = vector.load %arg2[%c0, %c0_1] : memref<128x2xf32, #tpu.memory_space<vmem>>, vector<128x2xf32>
    %c0_2 = arith.constant 0 : index
    %c0_3 = arith.constant 0 : index
    %4 = vector.load %arg3[%c0_2, %c0_3] : memref<2x128xf32, #tpu.memory_space<vmem>>, vector<2x128xf32>
    %c0_4 = arith.constant 0 : index
    %c0_5 = arith.constant 0 : index
    %5 = vector.load %arg5[%c0_4, %c0_5] : memref<128x128xbf16, #tpu.memory_space<vmem>>, vector<128x128xbf16>
    %6 = arith.extf %5 : vector<128x128xbf16> to vector<128x128xf32>
    %c0_6 = arith.constant 0 : index
    %c0_7 = arith.constant 0 : index
    %7 = vector.load %arg4[%c0_6, %c0_7] : memref<128x8xbf16, #tpu.memory_space<vmem>>, vector<128x8xbf16>
    %8 = vector.extract_strided_slice %3 {offsets = [0, 0], sizes = [128, 1], strides = [1, 1]} : vector<128x2xf32> to vector<128x1xf32>
    %9 = vector.extract_strided_slice %4 {offsets = [0, 0], sizes = [1, 128], strides = [1, 1]} : vector<2x128xf32> to vector<1x128xf32>
    %10 = vector.broadcast %8 : vector<128x1xf32> to vector<128x128xf32>
    %11 = vector.broadcast %9 : vector<1x128xf32> to vector<128x128xf32>
    %12 = arith.addf %10, %11 : vector<128x128xf32>
    %cst = arith.constant 0.000000e+00 : f32
    %13 = vector.broadcast %cst : f32 to vector<128x128xf32>
    %14 = arith.cmpf ogt, %12, %13 : vector<128x128xf32>
    %cst_8 = arith.constant 2.000000e-01 : f32
    %15 = vector.broadcast %cst_8 : f32 to vector<128x128xf32>
    %16 = arith.mulf %15, %12 : vector<128x128xf32>
    %17 = arith.select %14, %12, %16 : vector<128x128xi1>, vector<128x128xf32>
    %18 = arith.addf %17, %6 : vector<128x128xf32>
    %c0_9 = arith.constant 0 : index
    %c0_10 = arith.constant 0 : index
    %19 = vector.load %arg8[%c0_9, %c0_10] : memref<128x2xf32, #tpu.memory_space<vmem>>, vector<128x1xf32>
    %cst_11 = arith.constant dense<0xFF800000> : vector<128xf32>
    %20 = vector.multi_reduction <maximumf>, %18, %cst_11 [1] : vector<128x128xf32> to vector<128xf32>
    %21 = vector.shape_cast %20 : vector<128xf32> to vector<128x1xf32>
    %22 = arith.maximumf %19, %21 : vector<128x1xf32>
    %23 = arith.subf %19, %22 : vector<128x1xf32>
    %24 = math.exp %23 : vector<128x1xf32>
    %25 = vector.broadcast %22 : vector<128x1xf32> to vector<128x128xf32>
    %26 = arith.subf %18, %25 : vector<128x128xf32>
    %27 = math.exp %26 : vector<128x128xf32>
    %c0_12 = arith.constant 0 : index
    %c0_13 = arith.constant 0 : index
    %28 = vector.load %arg9[%c0_12, %c0_13] : memref<128x2xf32, #tpu.memory_space<vmem>>, vector<128x1xf32>
    %29 = arith.mulf %24, %28 : vector<128x1xf32>
    %cst_14 = arith.constant dense<0.000000e+00> : vector<128xf32>
    %30 = vector.multi_reduction <add>, %27, %cst_14 [1] : vector<128x128xf32> to vector<128xf32>
    %31 = vector.shape_cast %30 : vector<128xf32> to vector<128x1xf32>
    %32 = arith.addf %29, %31 : vector<128x1xf32>
    %c0_15 = arith.constant 0 : index
    %c0_16 = arith.constant 0 : index
    %33 = vector.load %arg9[%c0_15, %c0_16] : memref<128x2xf32, #tpu.memory_space<vmem>>, vector<128x1xf32>
    tpu.vector_store %arg9[%c0_15, %c0_16], %32 {strides = array<i32>} : memref<128x2xf32, #tpu.memory_space<vmem>>, vector<128x1xf32>,
    %c0_17 = arith.constant 0 : index
    %c0_18 = arith.constant 0 : index
    %34 = vector.load %arg10[%c0_17, %c0_18] : memref<128x8xf32, #tpu.memory_space<vmem>>, vector<128x4xf32>
    %35 = vector.broadcast %24 : vector<128x1xf32> to vector<128x4xf32>
    %36 = arith.mulf %35, %34 : vector<128x4xf32>
    %37 = arith.truncf %27 : vector<128x128xf32> to vector<128x128xbf16>
    %38 = vector.extract_strided_slice %7 {offsets = [0, 0], sizes = [128, 4], strides = [1, 1]} : vector<128x8xbf16> to vector<128x4xbf16>
    %cst_19 = arith.constant dense<0.000000e+00> : vector<128x4xf32>
    %39 = tpu.matmul %37, %38, %cst_19 {dimension_numbers = #tpu.dot_dimension_numbers<[1], [0], [0], [1], [0, 0, 1, 1], [], []>} : vector<128x128xbf16>, vector<128x4xbf16>, vector<128x4xf32> -> vector<128x4xf32>
    %40 = arith.addf %36, %39 : vector<128x4xf32>
    %c0_20 = arith.constant 0 : index
    %c0_21 = arith.constant 0 : index
    %41 = vector.load %arg10[%c0_20, %c0_21] : memref<128x8xf32, #tpu.memory_space<vmem>>, vector<128x4xf32>
    tpu.vector_store %arg10[%c0_20, %c0_21], %40 {strides = array<i32>} : memref<128x8xf32, #tpu.memory_space<vmem>>, vector<128x4xf32>,
    %c0_22 = arith.constant 0 : index
    %c0_23 = arith.constant 0 : index
    %42 = vector.load %arg8[%c0_22, %c0_23] : memref<128x2xf32, #tpu.memory_space<vmem>>, vector<128x1xf32>
    tpu.vector_store %arg8[%c0_22, %c0_23], %22 {strides = array<i32>} : memref<128x2xf32, #tpu.memory_space<vmem>>, vector<128x1xf32>,
    %43 = vector.extract_strided_slice %3 {offsets = [0, 1], sizes = [128, 1], strides = [1, 1]} : vector<128x2xf32> to vector<128x1xf32>
    %44 = vector.extract_strided_slice %4 {offsets = [1, 0], sizes = [1, 128], strides = [1, 1]} : vector<2x128xf32> to vector<1x128xf32>
    %45 = vector.broadcast %43 : vector<128x1xf32> to vector<128x128xf32>
    %46 = vector.broadcast %44 : vector<1x128xf32> to vector<128x128xf32>
    %47 = arith.addf %45, %46 : vector<128x128xf32>
    %cst_24 = arith.constant 0.000000e+00 : f32
    %48 = vector.broadcast %cst_24 : f32 to vector<128x128xf32>
    %49 = arith.cmpf ogt, %47, %48 : vector<128x128xf32>
    %cst_25 = arith.constant 2.000000e-01 : f32
    %50 = vector.broadcast %cst_25 : f32 to vector<128x128xf32>
    %51 = arith.mulf %50, %47 : vector<128x128xf32>
    %52 = arith.select %49, %47, %51 : vector<128x128xi1>, vector<128x128xf32>
    %53 = arith.addf %52, %6 : vector<128x128xf32>
    %c0_26 = arith.constant 0 : index
    %c1 = arith.constant 1 : index
    %54 = vector.load %arg8[%c0_26, %c1] : memref<128x2xf32, #tpu.memory_space<vmem>>, vector<128x1xf32>
    %cst_27 = arith.constant dense<0xFF800000> : vector<128xf32>
    %55 = vector.multi_reduction <maximumf>, %53, %cst_27 [1] : vector<128x128xf32> to vector<128xf32>
    %56 = vector.shape_cast %55 : vector<128xf32> to vector<128x1xf32>
    %57 = arith.maximumf %54, %56 : vector<128x1xf32>
    %58 = arith.subf %54, %57 : vector<128x1xf32>
    %59 = math.exp %58 : vector<128x1xf32>
    %60 = vector.broadcast %57 : vector<128x1xf32> to vector<128x128xf32>
    %61 = arith.subf %53, %60 : vector<128x128xf32>
    %62 = math.exp %61 : vector<128x128xf32>
    %c0_28 = arith.constant 0 : index
    %c1_29 = arith.constant 1 : index
    %63 = vector.load %arg9[%c0_28, %c1_29] : memref<128x2xf32, #tpu.memory_space<vmem>>, vector<128x1xf32>
    %64 = arith.mulf %59, %63 : vector<128x1xf32>
    %cst_30 = arith.constant dense<0.000000e+00> : vector<128xf32>
    %65 = vector.multi_reduction <add>, %62, %cst_30 [1] : vector<128x128xf32> to vector<128xf32>
    %66 = vector.shape_cast %65 : vector<128xf32> to vector<128x1xf32>
    %67 = arith.addf %64, %66 : vector<128x1xf32>
    %c0_31 = arith.constant 0 : index
    %c1_32 = arith.constant 1 : index
    %68 = vector.load %arg9[%c0_31, %c1_32] : memref<128x2xf32, #tpu.memory_space<vmem>>, vector<128x1xf32>
    tpu.vector_store %arg9[%c0_31, %c1_32], %67 {strides = array<i32>} : memref<128x2xf32, #tpu.memory_space<vmem>>, vector<128x1xf32>,
    %c0_33 = arith.constant 0 : index
    %c4 = arith.constant 4 : index
    %69 = vector.load %arg10[%c0_33, %c4] : memref<128x8xf32, #tpu.memory_space<vmem>>, vector<128x4xf32>
    %70 = vector.broadcast %59 : vector<128x1xf32> to vector<128x4xf32>
    %71 = arith.mulf %70, %69 : vector<128x4xf32>
    %72 = arith.truncf %62 : vector<128x128xf32> to vector<128x128xbf16>
    %73 = vector.extract_strided_slice %7 {offsets = [0, 4], sizes = [128, 4], strides = [1, 1]} : vector<128x8xbf16> to vector<128x4xbf16>
    %cst_34 = arith.constant dense<0.000000e+00> : vector<128x4xf32>
    %74 = tpu.matmul %72, %73, %cst_34 {dimension_numbers = #tpu.dot_dimension_numbers<[1], [0], [0], [1], [0, 0, 1, 1], [], []>} : vector<128x128xbf16>, vector<128x4xbf16>, vector<128x4xf32> -> vector<128x4xf32>
    %75 = arith.addf %71, %74 : vector<128x4xf32>
    %c0_35 = arith.constant 0 : index
    %c4_36 = arith.constant 4 : index
    %76 = vector.load %arg10[%c0_35, %c4_36] : memref<128x8xf32, #tpu.memory_space<vmem>>, vector<128x4xf32>
    tpu.vector_store %arg10[%c0_35, %c4_36], %75 {strides = array<i32>} : memref<128x8xf32, #tpu.memory_space<vmem>>, vector<128x4xf32>,
    %c0_37 = arith.constant 0 : index
    %c1_38 = arith.constant 1 : index
    %77 = vector.load %arg8[%c0_37, %c1_38] : memref<128x2xf32, #tpu.memory_space<vmem>>, vector<128x1xf32>
    tpu.vector_store %arg8[%c0_37, %c1_38], %57 {strides = array<i32>} : memref<128x2xf32, #tpu.memory_space<vmem>>, vector<128x1xf32>,
    %c0_i32_39 = arith.constant 0 : i32
    %78 = arith.cmpi eq, %arg1, %c0_i32_39 : i32
    %79 = arith.extui %78 : i1 to i32
    %c0_i32_40 = arith.constant 0 : i32
    %80 = arith.cmpi ne, %79, %c0_i32_40 : i32
    scf.if %80 {
      %c0_41 = arith.constant 0 : index
      %c0_42 = arith.constant 0 : index
      %81 = vector.load %arg9[%c0_41, %c0_42] : memref<128x2xf32, #tpu.memory_space<vmem>>, vector<128x1xf32>
      %82 = tpu.reciprocal %81 {approx = true} : vector<128x1xf32> -> vector<128x1xf32>
      %c0_43 = arith.constant 0 : index
      %c0_44 = arith.constant 0 : index
      %83 = vector.load %arg10[%c0_43, %c0_44] : memref<128x8xf32, #tpu.memory_space<vmem>>, vector<128x4xf32>
      %84 = vector.broadcast %82 : vector<128x1xf32> to vector<128x4xf32>
      %85 = arith.mulf %83, %84 : vector<128x4xf32>
      %c0_45 = arith.constant 0 : index
      %c0_46 = arith.constant 0 : index
      %86 = vector.load %arg10[%c0_45, %c0_46] : memref<128x8xf32, #tpu.memory_space<vmem>>, vector<128x4xf32>
      tpu.vector_store %arg10[%c0_45, %c0_46], %85 {strides = array<i32>} : memref<128x8xf32, #tpu.memory_space<vmem>>, vector<128x4xf32>,
      %c0_47 = arith.constant 0 : index
      %c1_48 = arith.constant 1 : index
      %87 = vector.load %arg9[%c0_47, %c1_48] : memref<128x2xf32, #tpu.memory_space<vmem>>, vector<128x1xf32>
      %88 = tpu.reciprocal %87 {approx = true} : vector<128x1xf32> -> vector<128x1xf32>
      %c0_49 = arith.constant 0 : index
      %c4_50 = arith.constant 4 : index
      %89 = vector.load %arg10[%c0_49, %c4_50] : memref<128x8xf32, #tpu.memory_space<vmem>>, vector<128x4xf32>
      %90 = vector.broadcast %88 : vector<128x1xf32> to vector<128x4xf32>
      %91 = arith.mulf %89, %90 : vector<128x4xf32>
      %c0_51 = arith.constant 0 : index
      %c4_52 = arith.constant 4 : index
      %92 = vector.load %arg10[%c0_51, %c4_52] : memref<128x8xf32, #tpu.memory_space<vmem>>, vector<128x4xf32>
      tpu.vector_store %arg10[%c0_51, %c4_52], %91 {strides = array<i32>} : memref<128x8xf32, #tpu.memory_space<vmem>>, vector<128x4xf32>,
      %c0_53 = arith.constant 0 : index
      %c0_54 = arith.constant 0 : index
      %93 = vector.load %arg10[%c0_53, %c0_54] : memref<128x8xf32, #tpu.memory_space<vmem>>, vector<128x8xf32>
      %c0_55 = arith.constant 0 : index
      %c0_56 = arith.constant 0 : index
      %94 = vector.load %arg6[%c0_55, %c0_56] : memref<1x8xf32, #tpu.memory_space<vmem>>, vector<1x8xf32>
      %95 = vector.broadcast %94 : vector<1x8xf32> to vector<128x8xf32>
      %96 = arith.addf %93, %95 : vector<128x8xf32>
      %cst_57 = arith.constant dense<0xFF800000> : vector<128xf32>
      %97 = vector.multi_reduction <maximumf>, %96, %cst_57 [1] : vector<128x8xf32> to vector<128xf32>
      %98 = vector.shape_cast %97 : vector<128xf32> to vector<128x1xf32>
      %99 = vector.broadcast %98 : vector<128x1xf32> to vector<128x8xf32>
      %100 = arith.subf %96, %99 : vector<128x8xf32>
      %101 = math.exp %100 : vector<128x8xf32>
      %cst_58 = arith.constant dense<0.000000e+00> : vector<128xf32>
      %102 = vector.multi_reduction <add>, %101, %cst_58 [1] : vector<128x8xf32> to vector<128xf32>
      %103 = vector.shape_cast %102 : vector<128xf32> to vector<128x1xf32>
      %104 = math.log %103 : vector<128x1xf32>
      %105 = vector.broadcast %104 : vector<128x1xf32> to vector<128x8xf32>
      %106 = arith.subf %100, %105 : vector<128x8xf32>
      %c0_59 = arith.constant 0 : index
      %c0_60 = arith.constant 0 : index
      %107 = vector.load %arg7[%c0_59, %c0_60] : memref<128x8xf32, #tpu.memory_space<vmem>>, vector<128x8xf32>
      tpu.vector_store %arg7[%c0_59, %c0_60], %106 {strides = array<i32>} : memref<128x8xf32, #tpu.memory_space<vmem>>, vector<128x8xf32>,
    } else {
    }
    return
  }
  func.func @transform_0(%arg0: i32, %arg1: i32) -> (i32, i32) {
    %c0_i32 = arith.constant 0 : i32
    %c0_i32_0 = arith.constant 0 : i32
    return %arg0, %c0_i32 : i32, i32
  }
  func.func @transform_1(%arg0: i32, %arg1: i32) -> (i32, i32) {
    %c0_i32 = arith.constant 0 : i32
    %c0_i32_0 = arith.constant 0 : i32
    return %c0_i32, %arg1 : i32, i32
  }
  func.func @transform_2(%arg0: i32, %arg1: i32) -> (i32, i32) {
    %c0_i32 = arith.constant 0 : i32
    %c0_i32_0 = arith.constant 0 : i32
    return %arg1, %c0_i32 : i32, i32
  }
  func.func @transform_3(%arg0: i32, %arg1: i32) -> (i32, i32) {
    %c0_i32 = arith.constant 0 : i32
    return %arg0, %arg1 : i32, i32
  }
  func.func @transform_4(%arg0: i32, %arg1: i32) -> (i32, i32) {
    %c0_i32 = arith.constant 0 : i32
    %c0_i32_0 = arith.constant 0 : i32
    %c0_i32_1 = arith.constant 0 : i32
    return %c0_i32, %c0_i32_0 : i32, i32
  }
  func.func @transform_5(%arg0: i32, %arg1: i32) -> (i32, i32) {
    %c0_i32 = arith.constant 0 : i32
    %c0_i32_0 = arith.constant 0 : i32
    return %arg0, %c0_i32 : i32, i32
  }
}

</mosaic_0001>

<llo_original>
// kernel: gat_forward.4
$region0: #{gat_forward.4}
  #allocation0 [shape = 'u32[]', space=smem, size = 0x4, offset = 0x4, fixed_abs, tag = 'smem constant byte address 0x4 - core index']
  #allocation1 [shape = 'u32[72,128]{1,0:T(1,128)}', space=vmem, size = 0x9000, scoped, tag = 'internal scratch']
  %s0 = inlined_call_operand.vmem [shape: f32[128,8], index: 0, kind: input, shape index: {}]
  %s1 = inlined_call_operand.vmem [shape: bf16[8,36], index: 1, kind: input, shape index: {}]
  %s2 = inlined_call_operand.vmem [shape: f32[128,36], index: 2, kind: output, shape index: {}]
  %s3 = sld [smem:[#allocation0]]
  $region18: #{gat_forward.4} parent=0
    _
  %s5 = ssub.s32 1, %s3
  %s6 = scalar_select 0, %s5, %s3
  // Predicated region
  $region2: #{gat_forward.4} parent=0 // pred_check
    _
  $region3: #{gat_forward.4} parent=0 // pred_check_branch
    %8 = sbr.rel (0) target = $region5
  $region4: #{gat_forward.4} parent=0 // pred_region
    _
  $region5: #{gat_forward.4} parent=0 // pred_fallthru
    _
  // Predicated region
  $region6: #{gat_forward.4} parent=0 // pred_check
    _
  $region7: #{gat_forward.4} parent=0 // pred_check_branch
    %10 = sbr.rel (0) target = $region9
  $region8: #{gat_forward.4} parent=0 // pred_region
    _
  $region9: #{gat_forward.4} parent=0 // pred_fallthru
    _
  %v12 = vld [vmem:[%s0] sm:$0xff]
  %v13 = vld [vmem:[%s0 + $0x8] sm:$0xff]
  %v14 = vld [vmem:[%s0 + $0x10] sm:$0xff]
  %v15 = vld [vmem:[%s0 + $0x18] sm:$0xff]
  %v16 = vld [vmem:[%s0 + $0x20] sm:$0xff]
  %v17 = vld [vmem:[%s0 + $0x28] sm:$0xff]
  %v18 = vld [vmem:[%s0 + $0x30] sm:$0xff]
  %v19 = vld [vmem:[%s0 + $0x38] sm:$0xff]
  %v20 = vld [vmem:[%s0 + $0x40] sm:$0xff]
  %v21 = vld [vmem:[%s0 + $0x48] sm:$0xff]
  %v22 = vld [vmem:[%s0 + $0x50] sm:$0xff]
  %v23 = vld [vmem:[%s0 + $0x58] sm:$0xff]
  %v24 = vld [vmem:[%s0 + $0x60] sm:$0xff]
  %v25 = vld [vmem:[%s0 + $0x68] sm:$0xff]
  %v26 = vld [vmem:[%s0 + $0x70] sm:$0xff]
  %v27 = vld [vmem:[%s0 + $0x78] sm:$0xff]
  %v28 = vpack.c.bf16 %v13, %v12
  %v29 = vpack.c.bf16 %v15, %v14
  %v30 = vpack.c.bf16 %v17, %v16
  %v31 = vpack.c.bf16 %v19, %v18
  %v32 = vpack.c.bf16 %v21, %v20
  %v33 = vpack.c.bf16 %v23, %v22
  %v34 = vpack.c.bf16 %v25, %v24
  %v35 = vpack.c.bf16 %v27, %v26
  %v36 = vld [vmem:[%s1] sm:$0xf]
  %vm37 = vcmask 64512
  %v39 = vsel %vm37, %v28, 0
  %v42 = vsel %vm37, %v29, 0
  %v45 = vsel %vm37, %v30, 0
  %v48 = vsel %vm37, %v31, 0
  %v51 = vsel %vm37, %v32, 0
  %v54 = vsel %vm37, %v33, 0
  %v57 = vsel %vm37, %v34, 0
  %v60 = vsel %vm37, %v35, 0
  %vm62 = vcmask 1043456
  %v64 = vsel %vm62, %v36, 0
  %66 = vmatpush.bf16.msra.mxu0 0
  %67 = vmatpush.bf16.msra.mxu0 0
  %68 = vmatpush.bf16.msra.mxu0 0
  %69 = vmatpush.bf16.msra.mxu0 0
  %70 = vmatpush.bf16.msra.mxu0 0
  %71 = vmatpush.bf16.msra.mxu0 0
  %72 = vmatpush.bf16.msra.mxu0 0
  %73 = vmatpush.bf16.msra.mxu0 %v64
  %74 = vmatmul.bf16.gmra.mxu0 %v39
  %v75 = vpop.f32.mrf.mxu0
  %v76 = vadd.f32 0.0, %v75
  %v77 = vpop.f32.mrf.mxu0
  %v78 = vadd.f32 0.0, %v77
  %79 = vmatmul.bf16.gmra.mxu0 %v42
  %v80 = vpop.f32.mrf.mxu0
  %v81 = vadd.f32 0.0, %v80
  %v82 = vpop.f32.mrf.mxu0
  %v83 = vadd.f32 0.0, %v82
  %84 = vmatmul.bf16.gmra.mxu0 %v45
  %v85 = vpop.f32.mrf.mxu0
  %v86 = vadd.f32 0.0, %v85
  %v87 = vpop.f32.mrf.mxu0
  %v88 = vadd.f32 0.0, %v87
  %89 = vmatmul.bf16.gmra.mxu0 %v48
  %v90 = vpop.f32.mrf.mxu0
  %v91 = vadd.f32 0.0, %v90
  %v92 = vpop.f32.mrf.mxu0
  %v93 = vadd.f32 0.0, %v92
  %94 = vmatmul.bf16.gmra.mxu0 %v51
  %v95 = vpop.f32.mrf.mxu0
  %v96 = vadd.f32 0.0, %v95
  %v97 = vpop.f32.mrf.mxu0
  %v98 = vadd.f32 0.0, %v97
  %99 = vmatmul.bf16.gmra.mxu0 %v54
  %v100 = vpop.f32.mrf.mxu0
  %v101 = vadd.f32 0.0, %v100
  %v102 = vpop.f32.mrf.mxu0
  %v103 = vadd.f32 0.0, %v102
  %104 = vmatmul.bf16.gmra.mxu0 %v57
  %v105 = vpop.f32.mrf.mxu0
  %v106 = vadd.f32 0.0, %v105
  %v107 = vpop.f32.mrf.mxu0
  %v108 = vadd.f32 0.0, %v107
  %109 = vmatmul.bf16.gmra.mxu0 %v60
  %v110 = vpop.f32.mrf.mxu0
  %v111 = vadd.f32 0.0, %v110
  %v112 = vpop.f32.mrf.mxu0
  %v113 = vadd.f32 0.0, %v112
  %114 = vdwg.mxu0
  %vm115 = vcmask 293888
  %116 = vst.msk [vmem:[%s2] sm:$0xff] %vm115, %v76
  %117 = vst.msk [vmem:[%s2 + $0x8] sm:$0xff] %vm115, %v78
  %118 = vst.msk [vmem:[%s2 + $0x10] sm:$0xff] %vm115, %v81
  %119 = vst.msk [vmem:[%s2 + $0x18] sm:$0xff] %vm115, %v83
  %120 = vst.msk [vmem:[%s2 + $0x20] sm:$0xff] %vm115, %v86
  %121 = vst.msk [vmem:[%s2 + $0x28] sm:$0xff] %vm115, %v88
  %122 = vst.msk [vmem:[%s2 + $0x30] sm:$0xff] %vm115, %v91
  %123 = vst.msk [vmem:[%s2 + $0x38] sm:$0xff] %vm115, %v93
  %124 = vst.msk [vmem:[%s2 + $0x40] sm:$0xff] %vm115, %v96
  %125 = vst.msk [vmem:[%s2 + $0x48] sm:$0xff] %vm115, %v98
  %126 = vst.msk [vmem:[%s2 + $0x50] sm:$0xff] %vm115, %v101
  %127 = vst.msk [vmem:[%s2 + $0x58] sm:$0xff] %vm115, %v103
  %128 = vst.msk [vmem:[%s2 + $0x60] sm:$0xff] %vm115, %v106
  %129 = vst.msk [vmem:[%s2 + $0x68] sm:$0xff] %vm115, %v108
  %130 = vst.msk [vmem:[%s2 + $0x70] sm:$0xff] %vm115, %v111
  %131 = vst.msk [vmem:[%s2 + $0x78] sm:$0xff] %vm115, %v113
  // Predicated region
  $region10: #{gat_forward.4} parent=0 // pred_check
    _
  $region11: #{gat_forward.4} parent=0 // pred_check_branch
    %133 = sbr.rel (0) target = $region13
  $region12: #{gat_forward.4} parent=0 // pred_region
    _
  $region13: #{gat_forward.4} parent=0 // pred_fallthru
    _
  // Predicated region
  $region14: #{gat_forward.4} parent=0 // pred_check
    _
  $region15: #{gat_forward.4} parent=0 // pred_check_branch
    %135 = sbr.rel (0) target = $region17
  $region16: #{gat_forward.4} parent=0 // pred_region
    _
  $region17: #{gat_forward.4} parent=0 // pred_fallthru
    _

// kernel: gat_forward.6
$region0: #{gat_forward.6}
  #allocation0 [shape = 'u32[]', space=smem, size = 0x4, offset = 0x4, fixed_abs, tag = 'smem constant byte address 0x4 - core index']
  #allocation1 [shape = 'u32[72,128]{1,0:T(1,128)}', space=vmem, size = 0x9000, scoped, tag = 'internal scratch']
  %s0 = inlined_call_operand.vmem [shape: f32[128,32], index: 0, kind: input, shape index: {}]
  %s1 = inlined_call_operand.vmem [shape: bf16[32,12], index: 1, kind: input, shape index: {}]
  %s2 = inlined_call_operand.vmem [shape: f32[128,12], index: 2, kind: output, shape index: {}]
  %s3 = sld [smem:[#allocation0]]
  $region18: #{gat_forward.6} parent=0
    _
  %s5 = ssub.s32 1, %s3
  %s6 = scalar_select 0, %s5, %s3
  // Predicated region
  $region2: #{gat_forward.6} parent=0 // pred_check
    _
  $region3: #{gat_forward.6} parent=0 // pred_check_branch
    %8 = sbr.rel (0) target = $region5
  $region4: #{gat_forward.6} parent=0 // pred_region
    _
  $region5: #{gat_forward.6} parent=0 // pred_fallthru
    _
  // Predicated region
  $region6: #{gat_forward.6} parent=0 // pred_check
    _
  $region7: #{gat_forward.6} parent=0 // pred_check_branch
    %10 = sbr.rel (0) target = $region9
  $region8: #{gat_forward.6} parent=0 // pred_region
    _
  $region9: #{gat_forward.6} parent=0 // pred_fallthru
    _
  %v12 = vld [vmem:[%s0] sm:$0xff]
  %v13 = vld [vmem:[%s0 + $0x8] sm:$0xff]
  %v14 = vld [vmem:[%s0 + $0x10] sm:$0xff]
  %v15 = vld [vmem:[%s0 + $0x18] sm:$0xff]
  %v16 = vld [vmem:[%s0 + $0x20] sm:$0xff]
  %v17 = vld [vmem:[%s0 + $0x28] sm:$0xff]
  %v18 = vld [vmem:[%s0 + $0x30] sm:$0xff]
  %v19 = vld [vmem:[%s0 + $0x38] sm:$0xff]
  %v20 = vld [vmem:[%s0 + $0x40] sm:$0xff]
  %v21 = vld [vmem:[%s0 + $0x48] sm:$0xff]
  %v22 = vld [vmem:[%s0 + $0x50] sm:$0xff]
  %v23 = vld [vmem:[%s0 + $0x58] sm:$0xff]
  %v24 = vld [vmem:[%s0 + $0x60] sm:$0xff]
  %v25 = vld [vmem:[%s0 + $0x68] sm:$0xff]
  %v26 = vld [vmem:[%s0 + $0x70] sm:$0xff]
  %v27 = vld [vmem:[%s0 + $0x78] sm:$0xff]
  %v28 = vpack.c.bf16 %v13, %v12
  %v29 = vpack.c.bf16 %v15, %v14
  %v30 = vpack.c.bf16 %v17, %v16
  %v31 = vpack.c.bf16 %v19, %v18
  %v32 = vpack.c.bf16 %v21, %v20
  %v33 = vpack.c.bf16 %v23, %v22
  %v34 = vpack.c.bf16 %v25, %v24
  %v35 = vpack.c.bf16 %v27, %v26
  %v36 = vld [vmem:[%s1] sm:$0xf]
  %v37 = vld [vmem:[%s1 + $0x4] sm:$0xf]
  %v38 = vld [vmem:[%s1 + $0x8] sm:$0xf]
  %v39 = vld [vmem:[%s1 + $0xc] sm:$0xf]
  %v44 = vunpack.c.l.b16 %v36
  %v45 = vunpack.c.l.b16 %v37
  %v46 = vunpack.c.l.b16 %v38
  %v47 = vunpack.c.l.b16 %v39
  %v48 = vpack.c.b16 %v45, %v44
  %v49 = vpack.c.b16 %v47, %v46
  %vm52 = vcmask 261120
  %v54 = vsel %vm52, %v28, 0
  %v57 = vsel %vm52, %v29, 0
  %v60 = vsel %vm52, %v30, 0
  %v63 = vsel %vm52, %v31, 0
  %v66 = vsel %vm52, %v32, 0
  %v69 = vsel %vm52, %v33, 0
  %v72 = vsel %vm52, %v34, 0
  %v75 = vsel %vm52, %v35, 0
  %77 = vmatpush.bf16.msra.mxu0 0
  %78 = vmatpush.bf16.msra.mxu0 0
  %79 = vmatpush.bf16.msra.mxu0 0
  %80 = vmatpush.bf16.msra.mxu0 0
  %81 = vmatpush.bf16.msra.mxu0 0
  %82 = vmatpush.bf16.msra.mxu0 0
  %83 = vmatpush.bf16.msra.mxu0 %v49
  %84 = vmatpush.bf16.msra.mxu0 %v48
  %85 = vmatmul.bf16.gmra.mxu0 %v54
  %v86 = vpop.f32.mrf.mxu0
  %v87 = vadd.f32 0.0, %v86
  %v88 = vpop.f32.mrf.mxu0
  %v89 = vadd.f32 0.0, %v88
  %90 = vmatmul.bf16.gmra.mxu0 %v57
  %v91 = vpop.f32.mrf.mxu0
  %v92 = vadd.f32 0.0, %v91
  %v93 = vpop.f32.mrf.mxu0
  %v94 = vadd.f32 0.0, %v93
  %95 = vmatmul.bf16.gmra.mxu0 %v60
  %v96 = vpop.f32.mrf.mxu0
  %v97 = vadd.f32 0.0, %v96
  %v98 = vpop.f32.mrf.mxu0
  %v99 = vadd.f32 0.0, %v98
  %100 = vmatmul.bf16.gmra.mxu0 %v63
  %v101 = vpop.f32.mrf.mxu0
  %v102 = vadd.f32 0.0, %v101
  %v103 = vpop.f32.mrf.mxu0
  %v104 = vadd.f32 0.0, %v103
  %105 = vmatmul.bf16.gmra.mxu0 %v66
  %v106 = vpop.f32.mrf.mxu0
  %v107 = vadd.f32 0.0, %v106
  %v108 = vpop.f32.mrf.mxu0
  %v109 = vadd.f32 0.0, %v108
  %110 = vmatmul.bf16.gmra.mxu0 %v69
  %v111 = vpop.f32.mrf.mxu0
  %v112 = vadd.f32 0.0, %v111
  %v113 = vpop.f32.mrf.mxu0
  %v114 = vadd.f32 0.0, %v113
  %115 = vmatmul.bf16.gmra.mxu0 %v72
  %v116 = vpop.f32.mrf.mxu0
  %v117 = vadd.f32 0.0, %v116
  %v118 = vpop.f32.mrf.mxu0
  %v119 = vadd.f32 0.0, %v118
  %120 = vmatmul.bf16.gmra.mxu0 %v75
  %v121 = vpop.f32.mrf.mxu0
  %v122 = vadd.f32 0.0, %v121
  %v123 = vpop.f32.mrf.mxu0
  %v124 = vadd.f32 0.0, %v123
  %125 = vdwg.mxu0
  %vm126 = vcmask 97280
  %127 = vst.msk [vmem:[%s2] sm:$0xff] %vm126, %v87
  %128 = vst.msk [vmem:[%s2 + $0x8] sm:$0xff] %vm126, %v89
  %129 = vst.msk [vmem:[%s2 + $0x10] sm:$0xff] %vm126, %v92
  %130 = vst.msk [vmem:[%s2 + $0x18] sm:$0xff] %vm126, %v94
  %131 = vst.msk [vmem:[%s2 + $0x20] sm:$0xff] %vm126, %v97
  %132 = vst.msk [vmem:[%s2 + $0x28] sm:$0xff] %vm126, %v99
  %133 = vst.msk [vmem:[%s2 + $0x30] sm:$0xff] %vm126, %v102
  %134 = vst.msk [vmem:[%s2 + $0x38] sm:$0xff] %vm126, %v104
  %135 = vst.msk [vmem:[%s2 + $0x40] sm:$0xff] %vm126, %v107
  %136 = vst.msk [vmem:[%s2 + $0x48] sm:$0xff] %vm126, %v109
  %137 = vst.msk [vmem:[%s2 + $0x50] sm:$0xff] %vm126, %v112
  %138 = vst.msk [vmem:[%s2 + $0x58] sm:$0xff] %vm126, %v114
  %139 = vst.msk [vmem:[%s2 + $0x60] sm:$0xff] %vm126, %v117
  %140 = vst.msk [vmem:[%s2 + $0x68] sm:$0xff] %vm126, %v119
  %141 = vst.msk [vmem:[%s2 + $0x70] sm:$0xff] %vm126, %v122
  %142 = vst.msk [vmem:[%s2 + $0x78] sm:$0xff] %vm126, %v124
  // Predicated region
  $region10: #{gat_forward.6} parent=0 // pred_check
    _
  $region11: #{gat_forward.6} parent=0 // pred_check_branch
    %144 = sbr.rel (0) target = $region13
  $region12: #{gat_forward.6} parent=0 // pred_region
    _
  $region13: #{gat_forward.6} parent=0 // pred_fallthru
    _
  // Predicated region
  $region14: #{gat_forward.6} parent=0 // pred_check
    _
  $region15: #{gat_forward.6} parent=0 // pred_check_branch
    %146 = sbr.rel (0) target = $region17
  $region16: #{gat_forward.6} parent=0 // pred_region
    _
  $region17: #{gat_forward.6} parent=0 // pred_fallthru
    _

// kernel: gat_forward.5
$region0: #{gat_forward.5}
  #allocation0 [shape = 'u32[]', space=smem, size = 0x4, offset = 0x4, fixed_abs, tag = 'smem constant byte address 0x4 - core index']
  #allocation1 [shape = 'u32[72,128]{1,0:T(1,128)}', space=vmem, size = 0x9000, scoped, tag = 'internal scratch']
  #allocation2 [shape = 'f32[128,2]{1,0:T(8,128)}', space=vmem, size = 0x10000, scoped, tag = 'scratch operand']
  #allocation3 [shape = 'f32[128,2]{1,0:T(8,128)}', space=vmem, size = 0x10000, scoped, tag = 'scratch operand']
  #allocation4 [shape = 'f32[128,32]{1,0:T(8,128)}', space=vmem, size = 0x10000, scoped, tag = 'scratch operand']
  %s0 = inlined_call_operand.vmem [shape: f32[128,2], index: 0, kind: input, shape index: {}]
  %s1 = inlined_call_operand.vmem [shape: f32[2,128], index: 1, kind: input, shape index: {}]
  %s2 = inlined_call_operand.vmem [shape: bf16[128,32], index: 2, kind: input, shape index: {}]
  %s3 = inlined_call_operand.vmem [shape: bf16[128,128], index: 3, kind: input, shape index: {}]
  %s4 = inlined_call_operand.vmem [shape: f32[1,32], index: 4, kind: input, shape index: {}]
  %s5 = inlined_call_operand.vmem [shape: f32[128,32], index: 5, kind: output, shape index: {}]
  %s6 = sld [smem:[#allocation0]]
  $region38: #{gat_forward.5} parent=0
    _
  %s8 = ssub.s32 1, %s6
  %s9 = scalar_select 0, %s8, %s6
  // Predicated region
  $region2: #{gat_forward.5} parent=0 // pred_check
    _
  $region3: #{gat_forward.5} parent=0 // pred_check_branch
    %11 = sbr.rel (0) target = $region5
  $region4: #{gat_forward.5} parent=0 // pred_region
    _
  $region5: #{gat_forward.5} parent=0 // pred_fallthru
    _
  // Predicated region
  $region6: #{gat_forward.5} parent=0 // pred_check
    _
  $region7: #{gat_forward.5} parent=0 // pred_check_branch
    %13 = sbr.rel (0) target = $region9
  $region8: #{gat_forward.5} parent=0 // pred_region
    _
  $region9: #{gat_forward.5} parent=0 // pred_fallthru
    _
  // Predicated region
  $region10: #{gat_forward.5} parent=0 // pred_check
    _
  $region11: #{gat_forward.5} parent=0 // pred_check_branch
    %15 = sbr.rel (0) target = $region13
  $region12: #{gat_forward.5} parent=0 // pred_region
    _
  $region13: #{gat_forward.5} parent=0 // pred_fallthru
    _
  // Predicated region
  $region14: #{gat_forward.5} parent=0 // pred_check
    _
  $region15: #{gat_forward.5} parent=0 // pred_check_branch
    %17 = sbr.rel (0) target = $region17
  $region16: #{gat_forward.5} parent=0 // pred_region
    _
  $region17: #{gat_forward.5} parent=0 // pred_fallthru
    _
  // Predicated region
  $region18: #{gat_forward.5} parent=0 // pred_check
    _
  $region19: #{gat_forward.5} parent=0 // pred_check_branch
    %19 = sbr.rel (0) target = $region21
  $region20: #{gat_forward.5} parent=0 // pred_region
    _
  $region21: #{gat_forward.5} parent=0 // pred_fallthru
    _
  %p20 = scmp.eq.s32.totalorder 0, 0
  // Predicated region
  $region22: #{gat_forward.5} parent=0 // pred_check
    %p21 = pneg %p20
  $region23: #{gat_forward.5} parent=0 // pred_check_branch
    %23 = sbr.rel (%p21) target = $region25
  $region24: #{gat_forward.5} parent=0 // pred_region
    %vm24 = vcmask 15360
    %25 = vst.msk [vmem:[#allocation2] sm:$0xff] %vm24, -1e+30
    %26 = vst.msk [vmem:[#allocation2 + $0x8] sm:$0xff] %vm24, -1e+30
    %27 = vst.msk [vmem:[#allocation2 + $0x10] sm:$0xff] %vm24, -1e+30
    %28 = vst.msk [vmem:[#allocation2 + $0x18] sm:$0xff] %vm24, -1e+30
    %29 = vst.msk [vmem:[#allocation2 + $0x20] sm:$0xff] %vm24, -1e+30
    %30 = vst.msk [vmem:[#allocation2 + $0x28] sm:$0xff] %vm24, -1e+30
    %31 = vst.msk [vmem:[#allocation2 + $0x30] sm:$0xff] %vm24, -1e+30
    %32 = vst.msk [vmem:[#allocation2 + $0x38] sm:$0xff] %vm24, -1e+30
    %33 = vst.msk [vmem:[#allocation2 + $0x40] sm:$0xff] %vm24, -1e+30
    %34 = vst.msk [vmem:[#allocation2 + $0x48] sm:$0xff] %vm24, -1e+30
    %35 = vst.msk [vmem:[#allocation2 + $0x50] sm:$0xff] %vm24, -1e+30
    %36 = vst.msk [vmem:[#allocation2 + $0x58] sm:$0xff] %vm24, -1e+30
    %37 = vst.msk [vmem:[#allocation2 + $0x60] sm:$0xff] %vm24, -1e+30
    %38 = vst.msk [vmem:[#allocation2 + $0x68] sm:$0xff] %vm24, -1e+30
    %39 = vst.msk [vmem:[#allocation2 + $0x70] sm:$0xff] %vm24, -1e+30
    %40 = vst.msk [vmem:[#allocation2 + $0x78] sm:$0xff] %vm24, -1e+30
    %41 = vst.msk [vmem:[#allocation3] sm:$0xff] %vm24, 0.0
    %42 = vst.msk [vmem:[#allocation3 + $0x8] sm:$0xff] %vm24, 0.0
    %43 = vst.msk [vmem:[#allocation3 + $0x10] sm:$0xff] %vm24, 0.0
    %44 = vst.msk [vmem:[#allocation3 + $0x18] sm:$0xff] %vm24, 0.0
    %45 = vst.msk [vmem:[#allocation3 + $0x20] sm:$0xff] %vm24, 0.0
    %46 = vst.msk [vmem:[#allocation3 + $0x28] sm:$0xff] %vm24, 0.0
    %47 = vst.msk [vmem:[#allocation3 + $0x30] sm:$0xff] %vm24, 0.0
    %48 = vst.msk [vmem:[#allocation3 + $0x38] sm:$0xff] %vm24, 0.0
    %49 = vst.msk [vmem:[#allocation3 + $0x40] sm:$0xff] %vm24, 0.0
    %50 = vst.msk [vmem:[#allocation3 + $0x48] sm:$0xff] %vm24, 0.0
    %51 = vst.msk [vmem:[#allocation3 + $0x50] sm:$0xff] %vm24, 0.0
    %52 = vst.msk [vmem:[#allocation3 + $0x58] sm:$0xff] %vm24, 0.0
    %53 = vst.msk [vmem:[#allocation3 + $0x60] sm:$0xff] %vm24, 0.0
    %54 = vst.msk [vmem:[#allocation3 + $0x68] sm:$0xff] %vm24, 0.0
    %55 = vst.msk [vmem:[#allocation3 + $0x70] sm:$0xff] %vm24, 0.0
    %56 = vst.msk [vmem:[#allocation3 + $0x78] sm:$0xff] %vm24, 0.0
    %vm57 = vcmask 261120
    %58 = vst.msk [vmem:[#allocation4] sm:$0xff] %vm57, 0.0
    %59 = vst.msk [vmem:[#allocation4 + $0x8] sm:$0xff] %vm57, 0.0
    %60 = vst.msk [vmem:[#allocation4 + $0x10] sm:$0xff] %vm57, 0.0
    %61 = vst.msk [vmem:[#allocation4 + $0x18] sm:$0xff] %vm57, 0.0
    %62 = vst.msk [vmem:[#allocation4 + $0x20] sm:$0xff] %vm57, 0.0
    %63 = vst.msk [vmem:[#allocation4 + $0x28] sm:$0xff] %vm57, 0.0
    %64 = vst.msk [vmem:[#allocation4 + $0x30] sm:$0xff] %vm57, 0.0
    %65 = vst.msk [vmem:[#allocation4 + $0x38] sm:$0xff] %vm57, 0.0
    %66 = vst.msk [vmem:[#allocation4 + $0x40] sm:$0xff] %vm57, 0.0
    %67 = vst.msk [vmem:[#allocation4 + $0x48] sm:$0xff] %vm57, 0.0
    %68 = vst.msk [vmem:[#allocation4 + $0x50] sm:$0xff] %vm57, 0.0
    %69 = vst.msk [vmem:[#allocation4 + $0x58] sm:$0xff] %vm57, 0.0
    %70 = vst.msk [vmem:[#allocation4 + $0x60] sm:$0xff] %vm57, 0.0
    %71 = vst.msk [vmem:[#allocation4 + $0x68] sm:$0xff] %vm57, 0.0
    %72 = vst.msk [vmem:[#allocation4 + $0x70] sm:$0xff] %vm57, 0.0
    %73 = vst.msk [vmem:[#allocation4 + $0x78] sm:$0xff] %vm57, 0.0
  $region25: #{gat_forward.5} parent=0 // pred_fallthru
    _
  %v74 = vld [vmem:[%s0] sm:$0xff]
  %v75 = vld [vmem:[%s0 + $0x8] sm:$0xff]
  %v76 = vld [vmem:[%s0 + $0x10] sm:$0xff]
  %v77 = vld [vmem:[%s0 + $0x18] sm:$0xff]
  %v78 = vld [vmem:[%s0 + $0x20] sm:$0xff]
  %v79 = vld [vmem:[%s0 + $0x28] sm:$0xff]
  %v80 = vld [vmem:[%s0 + $0x30] sm:$0xff]
  %v81 = vld [vmem:[%s0 + $0x38] sm:$0xff]
  %v82 = vld [vmem:[%s0 + $0x40] sm:$0xff]
  %v83 = vld [vmem:[%s0 + $0x48] sm:$0xff]
  %v84 = vld [vmem:[%s0 + $0x50] sm:$0xff]
  %v85 = vld [vmem:[%s0 + $0x58] sm:$0xff]
  %v86 = vld [vmem:[%s0 + $0x60] sm:$0xff]
  %v87 = vld [vmem:[%s0 + $0x68] sm:$0xff]
  %v88 = vld [vmem:[%s0 + $0x70] sm:$0xff]
  %v89 = vld [vmem:[%s0 + $0x78] sm:$0xff]
  %v90 = vld [vmem:[%s1] sm:$0x3]
  %v91 = vld [vmem:[%s3] sm:$0xf]
  %v92 = vld [vmem:[%s3 + $0x4] sm:$0xf]
  %v93 = vld [vmem:[%s3 + $0x8] sm:$0xf]
  %v94 = vld [vmem:[%s3 + $0xc] sm:$0xf]
  %v95 = vld [vmem:[%s3 + $0x10] sm:$0xf]
  %v96 = vld [vmem:[%s3 + $0x14] sm:$0xf]
  %v97 = vld [vmem:[%s3 + $0x18] sm:$0xf]
  %v98 = vld [vmem:[%s3 + $0x1c] sm:$0xf]
  %v99 = vld [vmem:[%s3 + $0x20] sm:$0xf]
  %v100 = vld [vmem:[%s3 + $0x24] sm:$0xf]
  %v101 = vld [vmem:[%s3 + $0x28] sm:$0xf]
  %v102 = vld [vmem:[%s3 + $0x2c] sm:$0xf]
  %v103 = vld [vmem:[%s3 + $0x30] sm:$0xf]
  %v104 = vld [vmem:[%s3 + $0x34] sm:$0xf]
  %v105 = vld [vmem:[%s3 + $0x38] sm:$0xf]
  %v106 = vld [vmem:[%s3 + $0x3c] sm:$0xf]
  %v107 = vunpack.c.l.bf16 %v91
  %v108 = vunpack.c.l.bf16 %v92
  %v109 = vunpack.c.l.bf16 %v93
  %v110 = vunpack.c.l.bf16 %v94
  %v111 = vunpack.c.l.bf16 %v95
  %v112 = vunpack.c.l.bf16 %v96
  %v113 = vunpack.c.l.bf16 %v97
  %v114 = vunpack.c.l.bf16 %v98
  %v115 = vunpack.c.l.bf16 %v99
  %v116 = vunpack.c.l.bf16 %v100
  %v117 = vunpack.c.l.bf16 %v101
  %v118 = vunpack.c.l.bf16 %v102
  %v119 = vunpack.c.l.bf16 %v103
  %v120 = vunpack.c.l.bf16 %v104
  %v121 = vunpack.c.l.bf16 %v105
  %v122 = vunpack.c.l.bf16 %v106
  %v123 = vld [vmem:[%s2] sm:$0xf]
  %v124 = vld [vmem:[%s2 + $0x4] sm:$0xf]
  %v125 = vld [vmem:[%s2 + $0x8] sm:$0xf]
  %v126 = vld [vmem:[%s2 + $0xc] sm:$0xf]
  %v127 = vld [vmem:[%s2 + $0x10] sm:$0xf]
  %v128 = vld [vmem:[%s2 + $0x14] sm:$0xf]
  %v129 = vld [vmem:[%s2 + $0x18] sm:$0xf]
  %v130 = vld [vmem:[%s2 + $0x1c] sm:$0xf]
  %v131 = vld [vmem:[%s2 + $0x20] sm:$0xf]
  %v132 = vld [vmem:[%s2 + $0x24] sm:$0xf]
  %v133 = vld [vmem:[%s2 + $0x28] sm:$0xf]
  %v134 = vld [vmem:[%s2 + $0x2c] sm:$0xf]
  %v135 = vld [vmem:[%s2 + $0x30] sm:$0xf]
  %v136 = vld [vmem:[%s2 + $0x34] sm:$0xf]
  %v137 = vld [vmem:[%s2 + $0x38] sm:$0xf]
  %v138 = vld [vmem:[%s2 + $0x3c] sm:$0xf]
  %140 = vset.pattern.permute.xlu0 0
  %141 = vperm.xlu0 %140, %v74
  %v142 = vpop.permute.xlu0 %141
  %145 = vset.pattern.permute.xlu0 0
  %146 = vperm.xlu0 %145, %v75
  %v147 = vpop.permute.xlu0 %146
  %150 = vset.pattern.permute.xlu0 0
  %151 = vperm.xlu0 %150, %v76
  %v152 = vpop.permute.xlu0 %151
  %155 = vset.pattern.permute.xlu0 0
  %156 = vperm.xlu0 %155, %v77
  %v157 = vpop.permute.xlu0 %156
  %160 = vset.pattern.permute.xlu0 0
  %161 = vperm.xlu0 %160, %v78
  %v162 = vpop.permute.xlu0 %161
  %165 = vset.pattern.permute.xlu0 0
  %166 = vperm.xlu0 %165, %v79
  %v167 = vpop.permute.xlu0 %166
  %170 = vset.pattern.permute.xlu0 0
  %171 = vperm.xlu0 %170, %v80
  %v172 = vpop.permute.xlu0 %171
  %175 = vset.pattern.permute.xlu0 0
  %176 = vperm.xlu0 %175, %v81
  %v177 = vpop.permute.xlu0 %176
  %180 = vset.pattern.permute.xlu0 0
  %181 = vperm.xlu0 %180, %v82
  %v182 = vpop.permute.xlu0 %181
  %185 = vset.pattern.permute.xlu0 0
  %186 = vperm.xlu0 %185, %v83
  %v187 = vpop.permute.xlu0 %186
  %190 = vset.pattern.permute.xlu0 0
  %191 = vperm.xlu0 %190, %v84
  %v192 = vpop.permute.xlu0 %191
  %195 = vset.pattern.permute.xlu0 0
  %196 = vperm.xlu0 %195, %v85
  %v197 = vpop.permute.xlu0 %196
  %200 = vset.pattern.permute.xlu0 0
  %201 = vperm.xlu0 %200, %v86
  %v202 = vpop.permute.xlu0 %201
  %205 = vset.pattern.permute.xlu0 0
  %206 = vperm.xlu0 %205, %v87
  %v207 = vpop.permute.xlu0 %206
  %210 = vset.pattern.permute.xlu0 0
  %211 = vperm.xlu0 %210, %v88
  %v212 = vpop.permute.xlu0 %211
  %215 = vset.pattern.permute.xlu0 0
  %216 = vperm.xlu0 %215, %v89
  %v217 = vpop.permute.xlu0 %216
  %v219 = vperm.slane %v90, 0
  %v220 = vadd.f32 %v142, %v219
  %v221 = vadd.f32 %v147, %v219
  %v222 = vadd.f32 %v152, %v219
  %v223 = vadd.f32 %v157, %v219
  %v224 = vadd.f32 %v162, %v219
  %v225 = vadd.f32 %v167, %v219
  %v226 = vadd.f32 %v172, %v219
  %v227 = vadd.f32 %v177, %v219
  %v228 = vadd.f32 %v182, %v219
  %v229 = vadd.f32 %v187, %v219
  %v230 = vadd.f32 %v192, %v219
  %v231 = vadd.f32 %v197, %v219
  %v232 = vadd.f32 %v202, %v219
  %v233 = vadd.f32 %v207, %v219
  %v234 = vadd.f32 %v212, %v219
  %v235 = vadd.f32 %v217, %v219
  %vm236 = vcmp.gt.f32.partialorder %v220, 0.0
  %vm237 = vcmp.gt.f32.partialorder %v221, 0.0
  %vm238 = vcmp.gt.f32.partialorder %v222, 0.0
  %vm239 = vcmp.gt.f32.partialorder %v223, 0.0
  %vm240 = vcmp.gt.f32.partialorder %v224, 0.0
  %vm241 = vcmp.gt.f32.partialorder %v225, 0.0
  %vm242 = vcmp.gt.f32.partialorder %v226, 0.0
  %vm243 = vcmp.gt.f32.partialorder %v227, 0.0
  %vm244 = vcmp.gt.f32.partialorder %v228, 0.0
  %vm245 = vcmp.gt.f32.partialorder %v229, 0.0
  %vm246 = vcmp.gt.f32.partialorder %v230, 0.0
  %vm247 = vcmp.gt.f32.partialorder %v231, 0.0
  %vm248 = vcmp.gt.f32.partialorder %v232, 0.0
  %vm249 = vcmp.gt.f32.partialorder %v233, 0.0
  %vm250 = vcmp.gt.f32.partialorder %v234, 0.0
  %vm251 = vcmp.gt.f32.partialorder %v235, 0.0
  %v252 = vmul.f32 %v220, 0.2
  %v253 = vmul.f32 %v221, 0.2
  %v254 = vmul.f32 %v222, 0.2
  %v255 = vmul.f32 %v223, 0.2
  %v256 = vmul.f32 %v224, 0.2
  %v257 = vmul.f32 %v225, 0.2
  %v258 = vmul.f32 %v226, 0.2
  %v259 = vmul.f32 %v227, 0.2
  %v260 = vmul.f32 %v228, 0.2
  %v261 = vmul.f32 %v229, 0.2
  %v262 = vmul.f32 %v230, 0.2
  %v263 = vmul.f32 %v231, 0.2
  %v264 = vmul.f32 %v232, 0.2
  %v265 = vmul.f32 %v233, 0.2
  %v266 = vmul.f32 %v234, 0.2
  %v267 = vmul.f32 %v235, 0.2
  %v268 = vsel %vm236, %v220, %v252
  %v269 = vsel %vm237, %v221, %v253
  %v270 = vsel %vm238, %v222, %v254
  %v271 = vsel %vm239, %v223, %v255
  %v272 = vsel %vm240, %v224, %v256
  %v273 = vsel %vm241, %v225, %v257
  %v274 = vsel %vm242, %v226, %v258
  %v275 = vsel %vm243, %v227, %v259
  %v276 = vsel %vm244, %v228, %v260
  %v277 = vsel %vm245, %v229, %v261
  %v278 = vsel %vm246, %v230, %v262
  %v279 = vsel %vm247, %v231, %v263
  %v280 = vsel %vm248, %v232, %v264
  %v281 = vsel %vm249, %v233, %v265
  %v282 = vsel %vm250, %v234, %v266
  %v283 = vsel %vm251, %v235, %v267
  %v284 = vadd.f32 %v268, %v107
  %v285 = vadd.f32 %v269, %v108
  %v286 = vadd.f32 %v270, %v109
  %v287 = vadd.f32 %v271, %v110
  %v288 = vadd.f32 %v272, %v111
  %v289 = vadd.f32 %v273, %v112
  %v290 = vadd.f32 %v274, %v113
  %v291 = vadd.f32 %v275, %v114
  %v292 = vadd.f32 %v276, %v115
  %v293 = vadd.f32 %v277, %v116
  %v294 = vadd.f32 %v278, %v117
  %v295 = vadd.f32 %v279, %v118
  %v296 = vadd.f32 %v280, %v119
  %v297 = vadd.f32 %v281, %v120
  %v298 = vadd.f32 %v282, %v121
  %v299 = vadd.f32 %v283, %v122
  %v300 = vld [vmem:[#allocation2] sm:$0xff]
  %v301 = vld [vmem:[#allocation2 + $0x8] sm:$0xff]
  %v302 = vld [vmem:[#allocation2 + $0x10] sm:$0xff]
  %v303 = vld [vmem:[#allocation2 + $0x18] sm:$0xff]
  %v304 = vld [vmem:[#allocation2 + $0x20] sm:$0xff]
  %v305 = vld [vmem:[#allocation2 + $0x28] sm:$0xff]
  %v306 = vld [vmem:[#allocation2 + $0x30] sm:$0xff]
  %v307 = vld [vmem:[#allocation2 + $0x38] sm:$0xff]
  %v308 = vld [vmem:[#allocation2 + $0x40] sm:$0xff]
  %v309 = vld [vmem:[#allocation2 + $0x48] sm:$0xff]
  %v310 = vld [vmem:[#allocation2 + $0x50] sm:$0xff]
  %v311 = vld [vmem:[#allocation2 + $0x58] sm:$0xff]
  %v312 = vld [vmem:[#allocation2 + $0x60] sm:$0xff]
  %v313 = vld [vmem:[#allocation2 + $0x68] sm:$0xff]
  %v314 = vld [vmem:[#allocation2 + $0x70] sm:$0xff]
  %v315 = vld [vmem:[#allocation2 + $0x78] sm:$0xff]
  %316 = vmax.xlane.f32.xlu0 %v284
  %v317 = vpop.xlane.xlu0 %316
  %318 = vmax.xlane.f32.xlu0 %v285
  %v319 = vpop.xlane.xlu0 %318
  %320 = vmax.xlane.f32.xlu0 %v286
  %v321 = vpop.xlane.xlu0 %320
  %322 = vmax.xlane.f32.xlu0 %v287
  %v323 = vpop.xlane.xlu0 %322
  %324 = vmax.xlane.f32.xlu0 %v288
  %v325 = vpop.xlane.xlu0 %324
  %326 = vmax.xlane.f32.xlu0 %v289
  %v327 = vpop.xlane.xlu0 %326
  %328 = vmax.xlane.f32.xlu0 %v290
  %v329 = vpop.xlane.xlu0 %328
  %330 = vmax.xlane.f32.xlu0 %v291
  %v331 = vpop.xlane.xlu0 %330
  %332 = vmax.xlane.f32.xlu0 %v292
  %v333 = vpop.xlane.xlu0 %332
  %334 = vmax.xlane.f32.xlu0 %v293
  %v335 = vpop.xlane.xlu0 %334
  %336 = vmax.xlane.f32.xlu0 %v294
  %v337 = vpop.xlane.xlu0 %336
  %338 = vmax.xlane.f32.xlu0 %v295
  %v339 = vpop.xlane.xlu0 %338
  %340 = vmax.xlane.f32.xlu0 %v296
  %v341 = vpop.xlane.xlu0 %340
  %342 = vmax.xlane.f32.xlu0 %v297
  %v343 = vpop.xlane.xlu0 %342
  %344 = vmax.xlane.f32.xlu0 %v298
  %v345 = vpop.xlane.xlu0 %344
  %346 = vmax.xlane.f32.xlu0 %v299
  %v347 = vpop.xlane.xlu0 %346
  %v348 = vmax.f32 %v300, %v317
  %v349 = vmax.f32 %v301, %v319
  %v350 = vmax.f32 %v302, %v321
  %v351 = vmax.f32 %v303, %v323
  %v352 = vmax.f32 %v304, %v325
  %v353 = vmax.f32 %v305, %v327
  %v354 = vmax.f32 %v306, %v329
  %v355 = vmax.f32 %v307, %v331
  %v356 = vmax.f32 %v308, %v333
  %v357 = vmax.f32 %v309, %v335
  %v358 = vmax.f32 %v310, %v337
  %v359 = vmax.f32 %v311, %v339
  %v360 = vmax.f32 %v312, %v341
  %v361 = vmax.f32 %v313, %v343
  %v362 = vmax.f32 %v314, %v345
  %v363 = vmax.f32 %v315, %v347
  %v364 = vsub.f32 %v300, %v348
  %v365 = vsub.f32 %v301, %v349
  %v366 = vsub.f32 %v302, %v350
  %v367 = vsub.f32 %v303, %v351
  %v368 = vsub.f32 %v304, %v352
  %v369 = vsub.f32 %v305, %v353
  %v370 = vsub.f32 %v306, %v354
  %v371 = vsub.f32 %v307, %v355
  %v372 = vsub.f32 %v308, %v356
  %v373 = vsub.f32 %v309, %v357
  %v374 = vsub.f32 %v310, %v358
  %v375 = vsub.f32 %v311, %v359
  %v376 = vsub.f32 %v312, %v360
  %v377 = vsub.f32 %v313, %v361
  %v378 = vsub.f32 %v314, %v362
  %v379 = vsub.f32 %v315, %v363
  %v380 = vmul.f32 %v364, 1.442695
  %v381 = vpow.pop %v380
  %v382 = vmul.f32 %v365, 1.442695
  %v383 = vpow.pop %v382
  %v384 = vmul.f32 %v366, 1.442695
  %v385 = vpow.pop %v384
  %v386 = vmul.f32 %v367, 1.442695
  %v387 = vpow.pop %v386
  %v388 = vmul.f32 %v368, 1.442695
  %v389 = vpow.pop %v388
  %v390 = vmul.f32 %v369, 1.442695
  %v391 = vpow.pop %v390
  %v392 = vmul.f32 %v370, 1.442695
  %v393 = vpow.pop %v392
  %v394 = vmul.f32 %v371, 1.442695
  %v395 = vpow.pop %v394
  %v396 = vmul.f32 %v372, 1.442695
  %v397 = vpow.pop %v396
  %v398 = vmul.f32 %v373, 1.442695
  %v399 = vpow.pop %v398
  %v400 = vmul.f32 %v374, 1.442695
  %v401 = vpow.pop %v400
  %v402 = vmul.f32 %v375, 1.442695
  %v403 = vpow.pop %v402
  %v404 = vmul.f32 %v376, 1.442695
  %v405 = vpow.pop %v404
  %v406 = vmul.f32 %v377, 1.442695
  %v407 = vpow.pop %v406
  %v408 = vmul.f32 %v378, 1.442695
  %v409 = vpow.pop %v408
  %v410 = vmul.f32 %v379, 1.442695
  %v411 = vpow.pop %v410
  %413 = vset.pattern.permute.xlu0 0
  %414 = vperm.xlu0 %413, %v348
  %v415 = vpop.permute.xlu0 %414
  %418 = vset.pattern.permute.xlu0 0
  %419 = vperm.xlu0 %418, %v349
  %v420 = vpop.permute.xlu0 %419
  %423 = vset.pattern.permute.xlu0 0
  %424 = vperm.xlu0 %423, %v350
  %v425 = vpop.permute.xlu0 %424
  %428 = vset.pattern.permute.xlu0 0
  %429 = vperm.xlu0 %428, %v351
  %v430 = vpop.permute.xlu0 %429
  %433 = vset.pattern.permute.xlu0 0
  %434 = vperm.xlu0 %433, %v352
  %v435 = vpop.permute.xlu0 %434
  %438 = vset.pattern.permute.xlu0 0
  %439 = vperm.xlu0 %438, %v353
  %v440 = vpop.permute.xlu0 %439
  %443 = vset.pattern.permute.xlu0 0
  %444 = vperm.xlu0 %443, %v354
  %v445 = vpop.permute.xlu0 %444
  %448 = vset.pattern.permute.xlu0 0
  %449 = vperm.xlu0 %448, %v355
  %v450 = vpop.permute.xlu0 %449
  %453 = vset.pattern.permute.xlu0 0
  %454 = vperm.xlu0 %453, %v356
  %v455 = vpop.permute.xlu0 %454
  %458 = vset.pattern.permute.xlu0 0
  %459 = vperm.xlu0 %458, %v357
  %v460 = vpop.permute.xlu0 %459
  %463 = vset.pattern.permute.xlu0 0
  %464 = vperm.xlu0 %463, %v358
  %v465 = vpop.permute.xlu0 %464
  %468 = vset.pattern.permute.xlu0 0
  %469 = vperm.xlu0 %468, %v359
  %v470 = vpop.permute.xlu0 %469
  %473 = vset.pattern.permute.xlu0 0
  %474 = vperm.xlu0 %473, %v360
  %v475 = vpop.permute.xlu0 %474
  %478 = vset.pattern.permute.xlu0 0
  %479 = vperm.xlu0 %478, %v361
  %v480 = vpop.permute.xlu0 %479
  %483 = vset.pattern.permute.xlu0 0
  %484 = vperm.xlu0 %483, %v362
  %v485 = vpop.permute.xlu0 %484
  %488 = vset.pattern.permute.xlu0 0
  %489 = vperm.xlu0 %488, %v363
  %v490 = vpop.permute.xlu0 %489
  %v492 = vsub.f32 %v284, %v415
  %v493 = vsub.f32 %v285, %v420
  %v494 = vsub.f32 %v286, %v425
  %v495 = vsub.f32 %v287, %v430
  %v496 = vsub.f32 %v288, %v435
  %v497 = vsub.f32 %v289, %v440
  %v498 = vsub.f32 %v290, %v445
  %v499 = vsub.f32 %v291, %v450
  %v500 = vsub.f32 %v292, %v455
  %v501 = vsub.f32 %v293, %v460
  %v502 = vsub.f32 %v294, %v465
  %v503 = vsub.f32 %v295, %v470
  %v504 = vsub.f32 %v296, %v475
  %v505 = vsub.f32 %v297, %v480
  %v506 = vsub.f32 %v298, %v485
  %v507 = vsub.f32 %v299, %v490
  %v508 = vmul.f32 %v492, 1.442695
  %v509 = vpow.pop %v508
  %v510 = vmul.f32 %v493, 1.442695
  %v511 = vpow.pop %v510
  %v512 = vmul.f32 %v494, 1.442695
  %v513 = vpow.pop %v512
  %v514 = vmul.f32 %v495, 1.442695
  %v515 = vpow.pop %v514
  %v516 = vmul.f32 %v496, 1.442695
  %v517 = vpow.pop %v516
  %v518 = vmul.f32 %v497, 1.442695
  %v519 = vpow.pop %v518
  %v520 = vmul.f32 %v498, 1.442695
  %v521 = vpow.pop %v520
  %v522 = vmul.f32 %v499, 1.442695
  %v523 = vpow.pop %v522
  %v524 = vmul.f32 %v500, 1.442695
  %v525 = vpow.pop %v524
  %v526 = vmul.f32 %v501, 1.442695
  %v527 = vpow.pop %v526
  %v528 = vmul.f32 %v502, 1.442695
  %v529 = vpow.pop %v528
  %v530 = vmul.f32 %v503, 1.442695
  %v531 = vpow.pop %v530
  %v532 = vmul.f32 %v504, 1.442695
  %v533 = vpow.pop %v532
  %v534 = vmul.f32 %v505, 1.442695
  %v535 = vpow.pop %v534
  %v536 = vmul.f32 %v506, 1.442695
  %v537 = vpow.pop %v536
  %v538 = vmul.f32 %v507, 1.442695
  %v539 = vpow.pop %v538
  %v540 = vld [vmem:[#allocation3] sm:$0xff]
  %v541 = vld [vmem:[#allocation3 + $0x8] sm:$0xff]
  %v542 = vld [vmem:[#allocation3 + $0x10] sm:$0xff]
  %v543 = vld [vmem:[#allocation3 + $0x18] sm:$0xff]
  %v544 = vld [vmem:[#allocation3 + $0x20] sm:$0xff]
  %v545 = vld [vmem:[#allocation3 + $0x28] sm:$0xff]
  %v546 = vld [vmem:[#allocation3 + $0x30] sm:$0xff]
  %v547 = vld [vmem:[#allocation3 + $0x38] sm:$0xff]
  %v548 = vld [vmem:[#allocation3 + $0x40] sm:$0xff]
  %v549 = vld [vmem:[#allocation3 + $0x48] sm:$0xff]
  %v550 = vld [vmem:[#allocation3 + $0x50] sm:$0xff]
  %v551 = vld [vmem:[#allocation3 + $0x58] sm:$0xff]
  %v552 = vld [vmem:[#allocation3 + $0x60] sm:$0xff]
  %v553 = vld [vmem:[#allocation3 + $0x68] sm:$0xff]
  %v554 = vld [vmem:[#allocation3 + $0x70] sm:$0xff]
  %v555 = vld [vmem:[#allocation3 + $0x78] sm:$0xff]
  %v556 = vmul.f32 %v381, %v540
  %v557 = vmul.f32 %v383, %v541
  %v558 = vmul.f32 %v385, %v542
  %v559 = vmul.f32 %v387, %v543
  %v560 = vmul.f32 %v389, %v544
  %v561 = vmul.f32 %v391, %v545
  %v562 = vmul.f32 %v393, %v546
  %v563 = vmul.f32 %v395, %v547
  %v564 = vmul.f32 %v397, %v548
  %v565 = vmul.f32 %v399, %v549
  %v566 = vmul.f32 %v401, %v550
  %v567 = vmul.f32 %v403, %v551
  %v568 = vmul.f32 %v405, %v552
  %v569 = vmul.f32 %v407, %v553
  %v570 = vmul.f32 %v409, %v554
  %v571 = vmul.f32 %v411, %v555
  %572 = vadd.xlane.f32.xlu0 %v509
  %v573 = vpop.xlane.xlu0 %572
  %574 = vadd.xlane.f32.xlu0 %v511
  %v575 = vpop.xlane.xlu0 %574
  %576 = vadd.xlane.f32.xlu0 %v513
  %v577 = vpop.xlane.xlu0 %576
  %578 = vadd.xlane.f32.xlu0 %v515
  %v579 = vpop.xlane.xlu0 %578
  %580 = vadd.xlane.f32.xlu0 %v517
  %v581 = vpop.xlane.xlu0 %580
  %582 = vadd.xlane.f32.xlu0 %v519
  %v583 = vpop.xlane.xlu0 %582
  %584 = vadd.xlane.f32.xlu0 %v521
  %v585 = vpop.xlane.xlu0 %584
  %586 = vadd.xlane.f32.xlu0 %v523
  %v587 = vpop.xlane.xlu0 %586
  %588 = vadd.xlane.f32.xlu0 %v525
  %v589 = vpop.xlane.xlu0 %588
  %590 = vadd.xlane.f32.xlu0 %v527
  %v591 = vpop.xlane.xlu0 %590
  %592 = vadd.xlane.f32.xlu0 %v529
  %v593 = vpop.xlane.xlu0 %592
  %594 = vadd.xlane.f32.xlu0 %v531
  %v595 = vpop.xlane.xlu0 %594
  %596 = vadd.xlane.f32.xlu0 %v533
  %v597 = vpop.xlane.xlu0 %596
  %598 = vadd.xlane.f32.xlu0 %v535
  %v599 = vpop.xlane.xlu0 %598
  %600 = vadd.xlane.f32.xlu0 %v537
  %v601 = vpop.xlane.xlu0 %600
  %602 = vadd.xlane.f32.xlu0 %v539
  %v603 = vpop.xlane.xlu0 %602
  %v604 = vadd.f32 %v556, %v573
  %v605 = vadd.f32 %v557, %v575
  %v606 = vadd.f32 %v558, %v577
  %v607 = vadd.f32 %v559, %v579
  %v608 = vadd.f32 %v560, %v581
  %v609 = vadd.f32 %v561, %v583
  %v610 = vadd.f32 %v562, %v585
  %v611 = vadd.f32 %v563, %v587
  %v612 = vadd.f32 %v564, %v589
  %v613 = vadd.f32 %v565, %v591
  %v614 = vadd.f32 %v566, %v593
  %v615 = vadd.f32 %v567, %v595
  %v616 = vadd.f32 %v568, %v597
  %v617 = vadd.f32 %v569, %v599
  %v618 = vadd.f32 %v570, %v601
  %v619 = vadd.f32 %v571, %v603
  %vm620 = vcmask 7168
  %621 = vst.msk [vmem:[#allocation3] sm:$0xff] %vm620, %v604
  %622 = vst.msk [vmem:[#allocation3 + $0x8] sm:$0xff] %vm620, %v605
  %623 = vst.msk [vmem:[#allocation3 + $0x10] sm:$0xff] %vm620, %v606
  %624 = vst.msk [vmem:[#allocation3 + $0x18] sm:$0xff] %vm620, %v607
  %625 = vst.msk [vmem:[#allocation3 + $0x20] sm:$0xff] %vm620, %v608
  %626 = vst.msk [vmem:[#allocation3 + $0x28] sm:$0xff] %vm620, %v609
  %627 = vst.msk [vmem:[#allocation3 + $0x30] sm:$0xff] %vm620, %v610
  %628 = vst.msk [vmem:[#allocation3 + $0x38] sm:$0xff] %vm620, %v611
  %629 = vst.msk [vmem:[#allocation3 + $0x40] sm:$0xff] %vm620, %v612
  %630 = vst.msk [vmem:[#allocation3 + $0x48] sm:$0xff] %vm620, %v613
  %631 = vst.msk [vmem:[#allocation3 + $0x50] sm:$0xff] %vm620, %v614
  %632 = vst.msk [vmem:[#allocation3 + $0x58] sm:$0xff] %vm620, %v615
  %633 = vst.msk [vmem:[#allocation3 + $0x60] sm:$0xff] %vm620, %v616
  %634 = vst.msk [vmem:[#allocation3 + $0x68] sm:$0xff] %vm620, %v617
  %635 = vst.msk [vmem:[#allocation3 + $0x70] sm:$0xff] %vm620, %v618
  %636 = vst.msk [vmem:[#allocation3 + $0x78] sm:$0xff] %vm620, %v619
  %v637 = vld [vmem:[#allocation4] sm:$0xff]
  %v638 = vld [vmem:[#allocation4 + $0x8] sm:$0xff]
  %v639 = vld [vmem:[#allocation4 + $0x10] sm:$0xff]
  %v640 = vld [vmem:[#allocation4 + $0x18] sm:$0xff]
  %v641 = vld [vmem:[#allocation4 + $0x20] sm:$0xff]
  %v642 = vld [vmem:[#allocation4 + $0x28] sm:$0xff]
  %v643 = vld [vmem:[#allocation4 + $0x30] sm:$0xff]
  %v644 = vld [vmem:[#allocation4 + $0x38] sm:$0xff]
  %v645 = vld [vmem:[#allocation4 + $0x40] sm:$0xff]
  %v646 = vld [vmem:[#allocation4 + $0x48] sm:$0xff]
  %v647 = vld [vmem:[#allocation4 + $0x50] sm:$0xff]
  %v648 = vld [vmem:[#allocation4 + $0x58] sm:$0xff]
  %v649 = vld [vmem:[#allocation4 + $0x60] sm:$0xff]
  %v650 = vld [vmem:[#allocation4 + $0x68] sm:$0xff]
  %v651 = vld [vmem:[#allocation4 + $0x70] sm:$0xff]
  %v652 = vld [vmem:[#allocation4 + $0x78] sm:$0xff]
  %654 = vset.pattern.permute.xlu0 0
  %655 = vperm.xlu0 %654, %v381
  %v656 = vpop.permute.xlu0 %655
  %659 = vset.pattern.permute.xlu0 0
  %660 = vperm.xlu0 %659, %v383
  %v661 = vpop.permute.xlu0 %660
  %664 = vset.pattern.permute.xlu0 0
  %665 = vperm.xlu0 %664, %v385
  %v666 = vpop.permute.xlu0 %665
  %669 = vset.pattern.permute.xlu0 0
  %670 = vperm.xlu0 %669, %v387
  %v671 = vpop.permute.xlu0 %670
  %674 = vset.pattern.permute.xlu0 0
  %675 = vperm.xlu0 %674, %v389
  %v676 = vpop.permute.xlu0 %675
  %679 = vset.pattern.permute.xlu0 0
  %680 = vperm.xlu0 %679, %v391
  %v681 = vpop.permute.xlu0 %680
  %684 = vset.pattern.permute.xlu0 0
  %685 = vperm.xlu0 %684, %v393
  %v686 = vpop.permute.xlu0 %685
  %689 = vset.pattern.permute.xlu0 0
  %690 = vperm.xlu0 %689, %v395
  %v691 = vpop.permute.xlu0 %690
  %694 = vset.pattern.permute.xlu0 0
  %695 = vperm.xlu0 %694, %v397
  %v696 = vpop.permute.xlu0 %695
  %699 = vset.pattern.permute.xlu0 0
  %700 = vperm.xlu0 %699, %v399
  %v701 = vpop.permute.xlu0 %700
  %704 = vset.pattern.permute.xlu0 0
  %705 = vperm.xlu0 %704, %v401
  %v706 = vpop.permute.xlu0 %705
  %709 = vset.pattern.permute.xlu0 0
  %710 = vperm.xlu0 %709, %v403
  %v711 = vpop.permute.xlu0 %710
  %714 = vset.pattern.permute.xlu0 0
  %715 = vperm.xlu0 %714, %v405
  %v716 = vpop.permute.xlu0 %715
  %719 = vset.pattern.permute.xlu0 0
  %720 = vperm.xlu0 %719, %v407
  %v721 = vpop.permute.xlu0 %720
  %724 = vset.pattern.permute.xlu0 0
  %725 = vperm.xlu0 %724, %v409
  %v726 = vpop.permute.xlu0 %725
  %729 = vset.pattern.permute.xlu0 0
  %730 = vperm.xlu0 %729, %v411
  %v731 = vpop.permute.xlu0 %730
  %v733 = vmul.f32 %v656, %v637
  %v734 = vmul.f32 %v661, %v638
  %v735 = vmul.f32 %v666, %v639
  %v736 = vmul.f32 %v671, %v640
  %v737 = vmul.f32 %v676, %v641
  %v738 = vmul.f32 %v681, %v642
  %v739 = vmul.f32 %v686, %v643
  %v740 = vmul.f32 %v691, %v644
  %v741 = vmul.f32 %v696, %v645
  %v742 = vmul.f32 %v701, %v646
  %v743 = vmul.f32 %v706, %v647
  %v744 = vmul.f32 %v711, %v648
  %v745 = vmul.f32 %v716, %v649
  %v746 = vmul.f32 %v721, %v650
  %v747 = vmul.f32 %v726, %v651
  %v748 = vmul.f32 %v731, %v652
  %v749 = vpack.c.bf16 %v511, %v509
  %v750 = vpack.c.bf16 %v515, %v513
  %v751 = vpack.c.bf16 %v519, %v517
  %v752 = vpack.c.bf16 %v523, %v521
  %v753 = vpack.c.bf16 %v527, %v525
  %v754 = vpack.c.bf16 %v531, %v529
  %v755 = vpack.c.bf16 %v535, %v533
  %v756 = vpack.c.bf16 %v539, %v537
  %v773 = vunpack.c.l.b16 %v123
  %v774 = vunpack.c.l.b16 %v124
  %v775 = vunpack.c.l.b16 %v125
  %v776 = vunpack.c.l.b16 %v126
  %v777 = vunpack.c.l.b16 %v127
  %v778 = vunpack.c.l.b16 %v128
  %v779 = vunpack.c.l.b16 %v129
  %v780 = vunpack.c.l.b16 %v130
  %v781 = vunpack.c.l.b16 %v131
  %v782 = vunpack.c.l.b16 %v132
  %v783 = vunpack.c.l.b16 %v133
  %v784 = vunpack.c.l.b16 %v134
  %v785 = vunpack.c.l.b16 %v135
  %v786 = vunpack.c.l.b16 %v136
  %v787 = vunpack.c.l.b16 %v137
  %v788 = vunpack.c.l.b16 %v138
  %v789 = vpack.c.b16 %v774, %v773
  %v790 = vpack.c.b16 %v776, %v775
  %v791 = vpack.c.b16 %v778, %v777
  %v792 = vpack.c.b16 %v780, %v779
  %v793 = vpack.c.b16 %v782, %v781
  %v794 = vpack.c.b16 %v784, %v783
  %v795 = vpack.c.b16 %v786, %v785
  %v796 = vpack.c.b16 %v788, %v787
  %805 = vmatpush.bf16.msra.mxu0 %v796
  %806 = vmatpush.bf16.msra.mxu0 %v795
  %807 = vmatpush.bf16.msra.mxu0 %v794
  %808 = vmatpush.bf16.msra.mxu0 %v793
  %809 = vmatpush.bf16.msra.mxu0 %v792
  %810 = vmatpush.bf16.msra.mxu0 %v791
  %811 = vmatpush.bf16.msra.mxu0 %v790
  %812 = vmatpush.bf16.msra.mxu0 %v789
  %813 = vmatmul.bf16.gmra.mxu0 %v749
  %v814 = vpop.f32.mrf.mxu0
  %v815 = vadd.f32 0.0, %v814
  %v816 = vpop.f32.mrf.mxu0
  %v817 = vadd.f32 0.0, %v816
  %818 = vmatmul.bf16.gmra.mxu0 %v750
  %v819 = vpop.f32.mrf.mxu0
  %v820 = vadd.f32 0.0, %v819
  %v821 = vpop.f32.mrf.mxu0
  %v822 = vadd.f32 0.0, %v821
  %823 = vmatmul.bf16.gmra.mxu0 %v751
  %v824 = vpop.f32.mrf.mxu0
  %v825 = vadd.f32 0.0, %v824
  %v826 = vpop.f32.mrf.mxu0
  %v827 = vadd.f32 0.0, %v826
  %828 = vmatmul.bf16.gmra.mxu0 %v752
  %v829 = vpop.f32.mrf.mxu0
  %v830 = vadd.f32 0.0, %v829
  %v831 = vpop.f32.mrf.mxu0
  %v832 = vadd.f32 0.0, %v831
  %833 = vmatmul.bf16.gmra.mxu0 %v753
  %v834 = vpop.f32.mrf.mxu0
  %v835 = vadd.f32 0.0, %v834
  %v836 = vpop.f32.mrf.mxu0
  %v837 = vadd.f32 0.0, %v836
  %838 = vmatmul.bf16.gmra.mxu0 %v754
  %v839 = vpop.f32.mrf.mxu0
  %v840 = vadd.f32 0.0, %v839
  %v841 = vpop.f32.mrf.mxu0
  %v842 = vadd.f32 0.0, %v841
  %843 = vmatmul.bf16.gmra.mxu0 %v755
  %v844 = vpop.f32.mrf.mxu0
  %v845 = vadd.f32 0.0, %v844
  %v846 = vpop.f32.mrf.mxu0
  %v847 = vadd.f32 0.0, %v846
  %848 = vmatmul.bf16.gmra.mxu0 %v756
  %v849 = vpop.f32.mrf.mxu0
  %v850 = vadd.f32 0.0, %v849
  %v851 = vpop.f32.mrf.mxu0
  %v852 = vadd.f32 0.0, %v851
  %853 = vdwg.mxu0
  %v854 = vadd.f32 %v733, %v815
  %v855 = vadd.f32 %v734, %v817
  %v856 = vadd.f32 %v735, %v820
  %v857 = vadd.f32 %v736, %v822
  %v858 = vadd.f32 %v737, %v825
  %v859 = vadd.f32 %v738, %v827
  %v860 = vadd.f32 %v739, %v830
  %v861 = vadd.f32 %v740, %v832
  %v862 = vadd.f32 %v741, %v835
  %v863 = vadd.f32 %v742, %v837
  %v864 = vadd.f32 %v743, %v840
  %v865 = vadd.f32 %v744, %v842
  %v866 = vadd.f32 %v745, %v845
  %v867 = vadd.f32 %v746, %v847
  %v868 = vadd.f32 %v747, %v850
  %v869 = vadd.f32 %v748, %v852
  %vm870 = vcmask 130048
  %871 = vst.msk [vmem:[#allocation4] sm:$0xff] %vm870, %v854
  %872 = vst.msk [vmem:[#allocation4 + $0x8] sm:$0xff] %vm870, %v855
  %873 = vst.msk [vmem:[#allocation4 + $0x10] sm:$0xff] %vm870, %v856
  %874 = vst.msk [vmem:[#allocation4 + $0x18] sm:$0xff] %vm870, %v857
  %875 = vst.msk [vmem:[#allocation4 + $0x20] sm:$0xff] %vm870, %v858
  %876 = vst.msk [vmem:[#allocation4 + $0x28] sm:$0xff] %vm870, %v859
  %877 = vst.msk [vmem:[#allocation4 + $0x30] sm:$0xff] %vm870, %v860
  %878 = vst.msk [vmem:[#allocation4 + $0x38] sm:$0xff] %vm870, %v861
  %879 = vst.msk [vmem:[#allocation4 + $0x40] sm:$0xff] %vm870, %v862
  %880 = vst.msk [vmem:[#allocation4 + $0x48] sm:$0xff] %vm870, %v863
  %881 = vst.msk [vmem:[#allocation4 + $0x50] sm:$0xff] %vm870, %v864
  %882 = vst.msk [vmem:[#allocation4 + $0x58] sm:$0xff] %vm870, %v865
  %883 = vst.msk [vmem:[#allocation4 + $0x60] sm:$0xff] %vm870, %v866
  %884 = vst.msk [vmem:[#allocation4 + $0x68] sm:$0xff] %vm870, %v867
  %885 = vst.msk [vmem:[#allocation4 + $0x70] sm:$0xff] %vm870, %v868
  %886 = vst.msk [vmem:[#allocation4 + $0x78] sm:$0xff] %vm870, %v869
  %887 = vst.msk [vmem:[#allocation2] sm:$0xff] %vm620, %v348
  %888 = vst.msk [vmem:[#allocation2 + $0x8] sm:$0xff] %vm620, %v349
  %889 = vst.msk [vmem:[#allocation2 + $0x10] sm:$0xff] %vm620, %v350
  %890 = vst.msk [vmem:[#allocation2 + $0x18] sm:$0xff] %vm620, %v351
  %891 = vst.msk [vmem:[#allocation2 + $0x20] sm:$0xff] %vm620, %v352
  %892 = vst.msk [vmem:[#allocation2 + $0x28] sm:$0xff] %vm620, %v353
  %893 = vst.msk [vmem:[#allocation2 + $0x30] sm:$0xff] %vm620, %v354
  %894 = vst.msk [vmem:[#allocation2 + $0x38] sm:$0xff] %vm620, %v355
  %895 = vst.msk [vmem:[#allocation2 + $0x40] sm:$0xff] %vm620, %v356
  %896 = vst.msk [vmem:[#allocation2 + $0x48] sm:$0xff] %vm620, %v357
  %897 = vst.msk [vmem:[#allocation2 + $0x50] sm:$0xff] %vm620, %v358
  %898 = vst.msk [vmem:[#allocation2 + $0x58] sm:$0xff] %vm620, %v359
  %899 = vst.msk [vmem:[#allocation2 + $0x60] sm:$0xff] %vm620, %v360
  %900 = vst.msk [vmem:[#allocation2 + $0x68] sm:$0xff] %vm620, %v361
  %901 = vst.msk [vmem:[#allocation2 + $0x70] sm:$0xff] %vm620, %v362
  %902 = vst.msk [vmem:[#allocation2 + $0x78] sm:$0xff] %vm620, %v363
  %903 = vset.pattern.permute.xlu0 1
  %904 = vperm.xlu0 %903, %v74
  %v905 = vpop.permute.xlu0 %904
  %907 = vset.pattern.permute.xlu0 1
  %908 = vperm.xlu0 %907, %v75
  %v909 = vpop.permute.xlu0 %908
  %911 = vset.pattern.permute.xlu0 1
  %912 = vperm.xlu0 %911, %v76
  %v913 = vpop.permute.xlu0 %912
  %915 = vset.pattern.permute.xlu0 1
  %916 = vperm.xlu0 %915, %v77
  %v917 = vpop.permute.xlu0 %916
  %919 = vset.pattern.permute.xlu0 1
  %920 = vperm.xlu0 %919, %v78
  %v921 = vpop.permute.xlu0 %920
  %923 = vset.pattern.permute.xlu0 1
  %924 = vperm.xlu0 %923, %v79
  %v925 = vpop.permute.xlu0 %924
  %927 = vset.pattern.permute.xlu0 1
  %928 = vperm.xlu0 %927, %v80
  %v929 = vpop.permute.xlu0 %928
  %931 = vset.pattern.permute.xlu0 1
  %932 = vperm.xlu0 %931, %v81
  %v933 = vpop.permute.xlu0 %932
  %935 = vset.pattern.permute.xlu0 1
  %936 = vperm.xlu0 %935, %v82
  %v937 = vpop.permute.xlu0 %936
  %939 = vset.pattern.permute.xlu0 1
  %940 = vperm.xlu0 %939, %v83
  %v941 = vpop.permute.xlu0 %940
  %943 = vset.pattern.permute.xlu0 1
  %944 = vperm.xlu0 %943, %v84
  %v945 = vpop.permute.xlu0 %944
  %947 = vset.pattern.permute.xlu0 1
  %948 = vperm.xlu0 %947, %v85
  %v949 = vpop.permute.xlu0 %948
  %951 = vset.pattern.permute.xlu0 1
  %952 = vperm.xlu0 %951, %v86
  %v953 = vpop.permute.xlu0 %952
  %955 = vset.pattern.permute.xlu0 1
  %956 = vperm.xlu0 %955, %v87
  %v957 = vpop.permute.xlu0 %956
  %959 = vset.pattern.permute.xlu0 1
  %960 = vperm.xlu0 %959, %v88
  %v961 = vpop.permute.xlu0 %960
  %963 = vset.pattern.permute.xlu0 1
  %964 = vperm.xlu0 %963, %v89
  %v965 = vpop.permute.xlu0 %964
  %v967 = vperm.slane %v90, 1
  %v968 = vadd.f32 %v905, %v967
  %v969 = vadd.f32 %v909, %v967
  %v970 = vadd.f32 %v913, %v967
  %v971 = vadd.f32 %v917, %v967
  %v972 = vadd.f32 %v921, %v967
  %v973 = vadd.f32 %v925, %v967
  %v974 = vadd.f32 %v929, %v967
  %v975 = vadd.f32 %v933, %v967
  %v976 = vadd.f32 %v937, %v967
  %v977 = vadd.f32 %v941, %v967
  %v978 = vadd.f32 %v945, %v967
  %v979 = vadd.f32 %v949, %v967
  %v980 = vadd.f32 %v953, %v967
  %v981 = vadd.f32 %v957, %v967
  %v982 = vadd.f32 %v961, %v967
  %v983 = vadd.f32 %v965, %v967
  %vm984 = vcmp.gt.f32.partialorder %v968, 0.0
  %vm985 = vcmp.gt.f32.partialorder %v969, 0.0
  %vm986 = vcmp.gt.f32.partialorder %v970, 0.0
  %vm987 = vcmp.gt.f32.partialorder %v971, 0.0
  %vm988 = vcmp.gt.f32.partialorder %v972, 0.0
  %vm989 = vcmp.gt.f32.partialorder %v973, 0.0
  %vm990 = vcmp.gt.f32.partialorder %v974, 0.0
  %vm991 = vcmp.gt.f32.partialorder %v975, 0.0
  %vm992 = vcmp.gt.f32.partialorder %v976, 0.0
  %vm993 = vcmp.gt.f32.partialorder %v977, 0.0
  %vm994 = vcmp.gt.f32.partialorder %v978, 0.0
  %vm995 = vcmp.gt.f32.partialorder %v979, 0.0
  %vm996 = vcmp.gt.f32.partialorder %v980, 0.0
  %vm997 = vcmp.gt.f32.partialorder %v981, 0.0
  %vm998 = vcmp.gt.f32.partialorder %v982, 0.0
  %vm999 = vcmp.gt.f32.partialorder %v983, 0.0
  %v1000 = vmul.f32 %v968, 0.2
  %v1001 = vmul.f32 %v969, 0.2
  %v1002 = vmul.f32 %v970, 0.2
  %v1003 = vmul.f32 %v971, 0.2
  %v1004 = vmul.f32 %v972, 0.2
  %v1005 = vmul.f32 %v973, 0.2
  %v1006 = vmul.f32 %v974, 0.2
  %v1007 = vmul.f32 %v975, 0.2
  %v1008 = vmul.f32 %v976, 0.2
  %v1009 = vmul.f32 %v977, 0.2
  %v1010 = vmul.f32 %v978, 0.2
  %v1011 = vmul.f32 %v979, 0.2
  %v1012 = vmul.f32 %v980, 0.2
  %v1013 = vmul.f32 %v981, 0.2
  %v1014 = vmul.f32 %v982, 0.2
  %v1015 = vmul.f32 %v983, 0.2
  %v1016 = vsel %vm984, %v968, %v1000
  %v1017 = vsel %vm985, %v969, %v1001
  %v1018 = vsel %vm986, %v970, %v1002
  %v1019 = vsel %vm987, %v971, %v1003
  %v1020 = vsel %vm988, %v972, %v1004
  %v1021 = vsel %vm989, %v973, %v1005
  %v1022 = vsel %vm990, %v974, %v1006
  %v1023 = vsel %vm991, %v975, %v1007
  %v1024 = vsel %vm992, %v976, %v1008
  %v1025 = vsel %vm993, %v977, %v1009
  %v1026 = vsel %vm994, %v978, %v1010
  %v1027 = vsel %vm995, %v979, %v1011
  %v1028 = vsel %vm996, %v980, %v1012
  %v1029 = vsel %vm997, %v981, %v1013
  %v1030 = vsel %vm998, %v982, %v1014
  %v1031 = vsel %vm999, %v983, %v1015
  %v1032 = vadd.f32 %v1016, %v107
  %v1033 = vadd.f32 %v1017, %v108
  %v1034 = vadd.f32 %v1018, %v109
  %v1035 = vadd.f32 %v1019, %v110
  %v1036 = vadd.f32 %v1020, %v111
  %v1037 = vadd.f32 %v1021, %v112
  %v1038 = vadd.f32 %v1022, %v113
  %v1039 = vadd.f32 %v1023, %v114
  %v1040 = vadd.f32 %v1024, %v115
  %v1041 = vadd.f32 %v1025, %v116
  %v1042 = vadd.f32 %v1026, %v117
  %v1043 = vadd.f32 %v1027, %v118
  %v1044 = vadd.f32 %v1028, %v119
  %v1045 = vadd.f32 %v1029, %v120
  %v1046 = vadd.f32 %v1030, %v121
  %v1047 = vadd.f32 %v1031, %v122
  %v1048 = vld [vmem:[#allocation2] sm:$0xff]
  %v1049 = vld [vmem:[#allocation2 + $0x8] sm:$0xff]
  %v1050 = vld [vmem:[#allocation2 + $0x10] sm:$0xff]
  %v1051 = vld [vmem:[#allocation2 + $0x18] sm:$0xff]
  %v1052 = vld [vmem:[#allocation2 + $0x20] sm:$0xff]
  %v1053 = vld [vmem:[#allocation2 + $0x28] sm:$0xff]
  %v1054 = vld [vmem:[#allocation2 + $0x30] sm:$0xff]
  %v1055 = vld [vmem:[#allocation2 + $0x38] sm:$0xff]
  %v1056 = vld [vmem:[#allocation2 + $0x40] sm:$0xff]
  %v1057 = vld [vmem:[#allocation2 + $0x48] sm:$0xff]
  %v1058 = vld [vmem:[#allocation2 + $0x50] sm:$0xff]
  %v1059 = vld [vmem:[#allocation2 + $0x58] sm:$0xff]
  %v1060 = vld [vmem:[#allocation2 + $0x60] sm:$0xff]
  %v1061 = vld [vmem:[#allocation2 + $0x68] sm:$0xff]
  %v1062 = vld [vmem:[#allocation2 + $0x70] sm:$0xff]
  %v1063 = vld [vmem:[#allocation2 + $0x78] sm:$0xff]
  %1064 = vmax.xlane.f32.xlu0 %v1032
  %v1065 = vpop.xlane.xlu0 %1064
  %1066 = vmax.xlane.f32.xlu0 %v1033
  %v1067 = vpop.xlane.xlu0 %1066
  %1068 = vmax.xlane.f32.xlu0 %v1034
  %v1069 = vpop.xlane.xlu0 %1068
  %1070 = vmax.xlane.f32.xlu0 %v1035
  %v1071 = vpop.xlane.xlu0 %1070
  %1072 = vmax.xlane.f32.xlu0 %v1036
  %v1073 = vpop.xlane.xlu0 %1072
  %1074 = vmax.xlane.f32.xlu0 %v1037
  %v1075 = vpop.xlane.xlu0 %1074
  %1076 = vmax.xlane.f32.xlu0 %v1038
  %v1077 = vpop.xlane.xlu0 %1076
  %1078 = vmax.xlane.f32.xlu0 %v1039
  %v1079 = vpop.xlane.xlu0 %1078
  %1080 = vmax.xlane.f32.xlu0 %v1040
  %v1081 = vpop.xlane.xlu0 %1080
  %1082 = vmax.xlane.f32.xlu0 %v1041
  %v1083 = vpop.xlane.xlu0 %1082
  %1084 = vmax.xlane.f32.xlu0 %v1042
  %v1085 = vpop.xlane.xlu0 %1084
  %1086 = vmax.xlane.f32.xlu0 %v1043
  %v1087 = vpop.xlane.xlu0 %1086
  %1088 = vmax.xlane.f32.xlu0 %v1044
  %v1089 = vpop.xlane.xlu0 %1088
  %1090 = vmax.xlane.f32.xlu0 %v1045
  %v1091 = vpop.xlane.xlu0 %1090
  %1092 = vmax.xlane.f32.xlu0 %v1046
  %v1093 = vpop.xlane.xlu0 %1092
  %1094 = vmax.xlane.f32.xlu0 %v1047
  %v1095 = vpop.xlane.xlu0 %1094
  %v1096 = vmax.f32 %v1048, %v1065
  %v1097 = vmax.f32 %v1049, %v1067
  %v1098 = vmax.f32 %v1050, %v1069
  %v1099 = vmax.f32 %v1051, %v1071
  %v1100 = vmax.f32 %v1052, %v1073
  %v1101 = vmax.f32 %v1053, %v1075
  %v1102 = vmax.f32 %v1054, %v1077
  %v1103 = vmax.f32 %v1055, %v1079
  %v1104 = vmax.f32 %v1056, %v1081
  %v1105 = vmax.f32 %v1057, %v1083
  %v1106 = vmax.f32 %v1058, %v1085
  %v1107 = vmax.f32 %v1059, %v1087
  %v1108 = vmax.f32 %v1060, %v1089
  %v1109 = vmax.f32 %v1061, %v1091
  %v1110 = vmax.f32 %v1062, %v1093
  %v1111 = vmax.f32 %v1063, %v1095
  %v1112 = vsub.f32 %v1048, %v1096
  %v1113 = vsub.f32 %v1049, %v1097
  %v1114 = vsub.f32 %v1050, %v1098
  %v1115 = vsub.f32 %v1051, %v1099
  %v1116 = vsub.f32 %v1052, %v1100
  %v1117 = vsub.f32 %v1053, %v1101
  %v1118 = vsub.f32 %v1054, %v1102
  %v1119 = vsub.f32 %v1055, %v1103
  %v1120 = vsub.f32 %v1056, %v1104
  %v1121 = vsub.f32 %v1057, %v1105
  %v1122 = vsub.f32 %v1058, %v1106
  %v1123 = vsub.f32 %v1059, %v1107
  %v1124 = vsub.f32 %v1060, %v1108
  %v1125 = vsub.f32 %v1061, %v1109
  %v1126 = vsub.f32 %v1062, %v1110
  %v1127 = vsub.f32 %v1063, %v1111
  %v1128 = vmul.f32 %v1112, 1.442695
  %v1129 = vpow.pop %v1128
  %v1130 = vmul.f32 %v1113, 1.442695
  %v1131 = vpow.pop %v1130
  %v1132 = vmul.f32 %v1114, 1.442695
  %v1133 = vpow.pop %v1132
  %v1134 = vmul.f32 %v1115, 1.442695
  %v1135 = vpow.pop %v1134
  %v1136 = vmul.f32 %v1116, 1.442695
  %v1137 = vpow.pop %v1136
  %v1138 = vmul.f32 %v1117, 1.442695
  %v1139 = vpow.pop %v1138
  %v1140 = vmul.f32 %v1118, 1.442695
  %v1141 = vpow.pop %v1140
  %v1142 = vmul.f32 %v1119, 1.442695
  %v1143 = vpow.pop %v1142
  %v1144 = vmul.f32 %v1120, 1.442695
  %v1145 = vpow.pop %v1144
  %v1146 = vmul.f32 %v1121, 1.442695
  %v1147 = vpow.pop %v1146
  %v1148 = vmul.f32 %v1122, 1.442695
  %v1149 = vpow.pop %v1148
  %v1150 = vmul.f32 %v1123, 1.442695
  %v1151 = vpow.pop %v1150
  %v1152 = vmul.f32 %v1124, 1.442695
  %v1153 = vpow.pop %v1152
  %v1154 = vmul.f32 %v1125, 1.442695
  %v1155 = vpow.pop %v1154
  %v1156 = vmul.f32 %v1126, 1.442695
  %v1157 = vpow.pop %v1156
  %v1158 = vmul.f32 %v1127, 1.442695
  %v1159 = vpow.pop %v1158
  %1161 = vset.pattern.permute.xlu0 1
  %1162 = vperm.xlu0 %1161, %v1096
  %v1163 = vpop.permute.xlu0 %1162
  %1166 = vset.pattern.permute.xlu0 1
  %1167 = vperm.xlu0 %1166, %v1097
  %v1168 = vpop.permute.xlu0 %1167
  %1171 = vset.pattern.permute.xlu0 1
  %1172 = vperm.xlu0 %1171, %v1098
  %v1173 = vpop.permute.xlu0 %1172
  %1176 = vset.pattern.permute.xlu0 1
  %1177 = vperm.xlu0 %1176, %v1099
  %v1178 = vpop.permute.xlu0 %1177
  %1181 = vset.pattern.permute.xlu0 1
  %1182 = vperm.xlu0 %1181, %v1100
  %v1183 = vpop.permute.xlu0 %1182
  %1186 = vset.pattern.permute.xlu0 1
  %1187 = vperm.xlu0 %1186, %v1101
  %v1188 = vpop.permute.xlu0 %1187
  %1191 = vset.pattern.permute.xlu0 1
  %1192 = vperm.xlu0 %1191, %v1102
  %v1193 = vpop.permute.xlu0 %1192
  %1196 = vset.pattern.permute.xlu0 1
  %1197 = vperm.xlu0 %1196, %v1103
  %v1198 = vpop.permute.xlu0 %1197
  %1201 = vset.pattern.permute.xlu0 1
  %1202 = vperm.xlu0 %1201, %v1104
  %v1203 = vpop.permute.xlu0 %1202
  %1206 = vset.pattern.permute.xlu0 1
  %1207 = vperm.xlu0 %1206, %v1105
  %v1208 = vpop.permute.xlu0 %1207
  %1211 = vset.pattern.permute.xlu0 1
  %1212 = vperm.xlu0 %1211, %v1106
  %v1213 = vpop.permute.xlu0 %1212
  %1216 = vset.pattern.permute.xlu0 1
  %1217 = vperm.xlu0 %1216, %v1107
  %v1218 = vpop.permute.xlu0 %1217
  %1221 = vset.pattern.permute.xlu0 1
  %1222 = vperm.xlu0 %1221, %v1108
  %v1223 = vpop.permute.xlu0 %1222
  %1226 = vset.pattern.permute.xlu0 1
  %1227 = vperm.xlu0 %1226, %v1109
  %v1228 = vpop.permute.xlu0 %1227
  %1231 = vset.pattern.permute.xlu0 1
  %1232 = vperm.xlu0 %1231, %v1110
  %v1233 = vpop.permute.xlu0 %1232
  %1236 = vset.pattern.permute.xlu0 1
  %1237 = vperm.xlu0 %1236, %v1111
  %v1238 = vpop.permute.xlu0 %1237
  %v1240 = vsub.f32 %v1032, %v1163
  %v1241 = vsub.f32 %v1033, %v1168
  %v1242 = vsub.f32 %v1034, %v1173
  %v1243 = vsub.f32 %v1035, %v1178
  %v1244 = vsub.f32 %v1036, %v1183
  %v1245 = vsub.f32 %v1037, %v1188
  %v1246 = vsub.f32 %v1038, %v1193
  %v1247 = vsub.f32 %v1039, %v1198
  %v1248 = vsub.f32 %v1040, %v1203
  %v1249 = vsub.f32 %v1041, %v1208
  %v1250 = vsub.f32 %v1042, %v1213
  %v1251 = vsub.f32 %v1043, %v1218
  %v1252 = vsub.f32 %v1044, %v1223
  %v1253 = vsub.f32 %v1045, %v1228
  %v1254 = vsub.f32 %v1046, %v1233
  %v1255 = vsub.f32 %v1047, %v1238
  %v1256 = vmul.f32 %v1240, 1.442695
  %v1257 = vpow.pop %v1256
  %v1258 = vmul.f32 %v1241, 1.442695
  %v1259 = vpow.pop %v1258
  %v1260 = vmul.f32 %v1242, 1.442695
  %v1261 = vpow.pop %v1260
  %v1262 = vmul.f32 %v1243, 1.442695
  %v1263 = vpow.pop %v1262
  %v1264 = vmul.f32 %v1244, 1.442695
  %v1265 = vpow.pop %v1264
  %v1266 = vmul.f32 %v1245, 1.442695
  %v1267 = vpow.pop %v1266
  %v1268 = vmul.f32 %v1246, 1.442695
  %v1269 = vpow.pop %v1268
  %v1270 = vmul.f32 %v1247, 1.442695
  %v1271 = vpow.pop %v1270
  %v1272 = vmul.f32 %v1248, 1.442695
  %v1273 = vpow.pop %v1272
  %v1274 = vmul.f32 %v1249, 1.442695
  %v1275 = vpow.pop %v1274
  %v1276 = vmul.f32 %v1250, 1.442695
  %v1277 = vpow.pop %v1276
  %v1278 = vmul.f32 %v1251, 1.442695
  %v1279 = vpow.pop %v1278
  %v1280 = vmul.f32 %v1252, 1.442695
  %v1281 = vpow.pop %v1280
  %v1282 = vmul.f32 %v1253, 1.442695
  %v1283 = vpow.pop %v1282
  %v1284 = vmul.f32 %v1254, 1.442695
  %v1285 = vpow.pop %v1284
  %v1286 = vmul.f32 %v1255, 1.442695
  %v1287 = vpow.pop %v1286
  %v1288 = vld [vmem:[#allocation3] sm:$0xff]
  %v1289 = vld [vmem:[#allocation3 + $0x8] sm:$0xff]
  %v1290 = vld [vmem:[#allocation3 + $0x10] sm:$0xff]
  %v1291 = vld [vmem:[#allocation3 + $0x18] sm:$0xff]
  %v1292 = vld [vmem:[#allocation3 + $0x20] sm:$0xff]
  %v1293 = vld [vmem:[#allocation3 + $0x28] sm:$0xff]
  %v1294 = vld [vmem:[#allocation3 + $0x30] sm:$0xff]
  %v1295 = vld [vmem:[#allocation3 + $0x38] sm:$0xff]
  %v1296 = vld [vmem:[#allocation3 + $0x40] sm:$0xff]
  %v1297 = vld [vmem:[#allocation3 + $0x48] sm:$0xff]
  %v1298 = vld [vmem:[#allocation3 + $0x50] sm:$0xff]
  %v1299 = vld [vmem:[#allocation3 + $0x58] sm:$0xff]
  %v1300 = vld [vmem:[#allocation3 + $0x60] sm:$0xff]
  %v1301 = vld [vmem:[#allocation3 + $0x68] sm:$0xff]
  %v1302 = vld [vmem:[#allocation3 + $0x70] sm:$0xff]
  %v1303 = vld [vmem:[#allocation3 + $0x78] sm:$0xff]
  %v1304 = vmul.f32 %v1129, %v1288
  %v1305 = vmul.f32 %v1131, %v1289
  %v1306 = vmul.f32 %v1133, %v1290
  %v1307 = vmul.f32 %v1135, %v1291
  %v1308 = vmul.f32 %v1137, %v1292
  %v1309 = vmul.f32 %v1139, %v1293
  %v1310 = vmul.f32 %v1141, %v1294
  %v1311 = vmul.f32 %v1143, %v1295
  %v1312 = vmul.f32 %v1145, %v1296
  %v1313 = vmul.f32 %v1147, %v1297
  %v1314 = vmul.f32 %v1149, %v1298
  %v1315 = vmul.f32 %v1151, %v1299
  %v1316 = vmul.f32 %v1153, %v1300
  %v1317 = vmul.f32 %v1155, %v1301
  %v1318 = vmul.f32 %v1157, %v1302
  %v1319 = vmul.f32 %v1159, %v1303
  %1320 = vadd.xlane.f32.xlu0 %v1257
  %v1321 = vpop.xlane.xlu0 %1320
  %1322 = vadd.xlane.f32.xlu0 %v1259
  %v1323 = vpop.xlane.xlu0 %1322
  %1324 = vadd.xlane.f32.xlu0 %v1261
  %v1325 = vpop.xlane.xlu0 %1324
  %1326 = vadd.xlane.f32.xlu0 %v1263
  %v1327 = vpop.xlane.xlu0 %1326
  %1328 = vadd.xlane.f32.xlu0 %v1265
  %v1329 = vpop.xlane.xlu0 %1328
  %1330 = vadd.xlane.f32.xlu0 %v1267
  %v1331 = vpop.xlane.xlu0 %1330
  %1332 = vadd.xlane.f32.xlu0 %v1269
  %v1333 = vpop.xlane.xlu0 %1332
  %1334 = vadd.xlane.f32.xlu0 %v1271
  %v1335 = vpop.xlane.xlu0 %1334
  %1336 = vadd.xlane.f32.xlu0 %v1273
  %v1337 = vpop.xlane.xlu0 %1336
  %1338 = vadd.xlane.f32.xlu0 %v1275
  %v1339 = vpop.xlane.xlu0 %1338
  %1340 = vadd.xlane.f32.xlu0 %v1277
  %v1341 = vpop.xlane.xlu0 %1340
  %1342 = vadd.xlane.f32.xlu0 %v1279
  %v1343 = vpop.xlane.xlu0 %1342
  %1344 = vadd.xlane.f32.xlu0 %v1281
  %v1345 = vpop.xlane.xlu0 %1344
  %1346 = vadd.xlane.f32.xlu0 %v1283
  %v1347 = vpop.xlane.xlu0 %1346
  %1348 = vadd.xlane.f32.xlu0 %v1285
  %v1349 = vpop.xlane.xlu0 %1348
  %1350 = vadd.xlane.f32.xlu0 %v1287
  %v1351 = vpop.xlane.xlu0 %1350
  %v1352 = vadd.f32 %v1304, %v1321
  %v1353 = vadd.f32 %v1305, %v1323
  %v1354 = vadd.f32 %v1306, %v1325
  %v1355 = vadd.f32 %v1307, %v1327
  %v1356 = vadd.f32 %v1308, %v1329
  %v1357 = vadd.f32 %v1309, %v1331
  %v1358 = vadd.f32 %v1310, %v1333
  %v1359 = vadd.f32 %v1311, %v1335
  %v1360 = vadd.f32 %v1312, %v1337
  %v1361 = vadd.f32 %v1313, %v1339
  %v1362 = vadd.f32 %v1314, %v1341
  %v1363 = vadd.f32 %v1315, %v1343
  %v1364 = vadd.f32 %v1316, %v1345
  %v1365 = vadd.f32 %v1317, %v1347
  %v1366 = vadd.f32 %v1318, %v1349
  %v1367 = vadd.f32 %v1319, %v1351
  %vm1368 = vcmask 15368
  %1369 = vst.msk [vmem:[#allocation3] sm:$0xff] %vm1368, %v1352
  %1370 = vst.msk [vmem:[#allocation3 + $0x8] sm:$0xff] %vm1368, %v1353
  %1371 = vst.msk [vmem:[#allocation3 + $0x10] sm:$0xff] %vm1368, %v1354
  %1372 = vst.msk [vmem:[#allocation3 + $0x18] sm:$0xff] %vm1368, %v1355
  %1373 = vst.msk [vmem:[#allocation3 + $0x20] sm:$0xff] %vm1368, %v1356
  %1374 = vst.msk [vmem:[#allocation3 + $0x28] sm:$0xff] %vm1368, %v1357
  %1375 = vst.msk [vmem:[#allocation3 + $0x30] sm:$0xff] %vm1368, %v1358
  %1376 = vst.msk [vmem:[#allocation3 + $0x38] sm:$0xff] %vm1368, %v1359
  %1377 = vst.msk [vmem:[#allocation3 + $0x40] sm:$0xff] %vm1368, %v1360
  %1378 = vst.msk [vmem:[#allocation3 + $0x48] sm:$0xff] %vm1368, %v1361
  %1379 = vst.msk [vmem:[#allocation3 + $0x50] sm:$0xff] %vm1368, %v1362
  %1380 = vst.msk [vmem:[#allocation3 + $0x58] sm:$0xff] %vm1368, %v1363
  %1381 = vst.msk [vmem:[#allocation3 + $0x60] sm:$0xff] %vm1368, %v1364
  %1382 = vst.msk [vmem:[#allocation3 + $0x68] sm:$0xff] %vm1368, %v1365
  %1383 = vst.msk [vmem:[#allocation3 + $0x70] sm:$0xff] %vm1368, %v1366
  %1384 = vst.msk [vmem:[#allocation3 + $0x78] sm:$0xff] %vm1368, %v1367
  %v1385 = vld [vmem:[#allocation4] sm:$0xff]
  %v1386 = vld [vmem:[#allocation4 + $0x8] sm:$0xff]
  %v1387 = vld [vmem:[#allocation4 + $0x10] sm:$0xff]
  %v1388 = vld [vmem:[#allocation4 + $0x18] sm:$0xff]
  %v1389 = vld [vmem:[#allocation4 + $0x20] sm:$0xff]
  %v1390 = vld [vmem:[#allocation4 + $0x28] sm:$0xff]
  %v1391 = vld [vmem:[#allocation4 + $0x30] sm:$0xff]
  %v1392 = vld [vmem:[#allocation4 + $0x38] sm:$0xff]
  %v1393 = vld [vmem:[#allocation4 + $0x40] sm:$0xff]
  %v1394 = vld [vmem:[#allocation4 + $0x48] sm:$0xff]
  %v1395 = vld [vmem:[#allocation4 + $0x50] sm:$0xff]
  %v1396 = vld [vmem:[#allocation4 + $0x58] sm:$0xff]
  %v1397 = vld [vmem:[#allocation4 + $0x60] sm:$0xff]
  %v1398 = vld [vmem:[#allocation4 + $0x68] sm:$0xff]
  %v1399 = vld [vmem:[#allocation4 + $0x70] sm:$0xff]
  %v1400 = vld [vmem:[#allocation4 + $0x78] sm:$0xff]
  %1402 = vset.pattern.permute.xlu0 1
  %1403 = vperm.xlu0 %1402, %v1129
  %v1404 = vpop.permute.xlu0 %1403
  %1407 = vset.pattern.permute.xlu0 1
  %1408 = vperm.xlu0 %1407, %v1131
  %v1409 = vpop.permute.xlu0 %1408
  %1412 = vset.pattern.permute.xlu0 1
  %1413 = vperm.xlu0 %1412, %v1133
  %v1414 = vpop.permute.xlu0 %1413
  %1417 = vset.pattern.permute.xlu0 1
  %1418 = vperm.xlu0 %1417, %v1135
  %v1419 = vpop.permute.xlu0 %1418
  %1422 = vset.pattern.permute.xlu0 1
  %1423 = vperm.xlu0 %1422, %v1137
  %v1424 = vpop.permute.xlu0 %1423
  %1427 = vset.pattern.permute.xlu0 1
  %1428 = vperm.xlu0 %1427, %v1139
  %v1429 = vpop.permute.xlu0 %1428
  %1432 = vset.pattern.permute.xlu0 1
  %1433 = vperm.xlu0 %1432, %v1141
  %v1434 = vpop.permute.xlu0 %1433
  %1437 = vset.pattern.permute.xlu0 1
  %1438 = vperm.xlu0 %1437, %v1143
  %v1439 = vpop.permute.xlu0 %1438
  %1442 = vset.pattern.permute.xlu0 1
  %1443 = vperm.xlu0 %1442, %v1145
  %v1444 = vpop.permute.xlu0 %1443
  %1447 = vset.pattern.permute.xlu0 1
  %1448 = vperm.xlu0 %1447, %v1147
  %v1449 = vpop.permute.xlu0 %1448
  %1452 = vset.pattern.permute.xlu0 1
  %1453 = vperm.xlu0 %1452, %v1149
  %v1454 = vpop.permute.xlu0 %1453
  %1457 = vset.pattern.permute.xlu0 1
  %1458 = vperm.xlu0 %1457, %v1151
  %v1459 = vpop.permute.xlu0 %1458
  %1462 = vset.pattern.permute.xlu0 1
  %1463 = vperm.xlu0 %1462, %v1153
  %v1464 = vpop.permute.xlu0 %1463
  %1467 = vset.pattern.permute.xlu0 1
  %1468 = vperm.xlu0 %1467, %v1155
  %v1469 = vpop.permute.xlu0 %1468
  %1472 = vset.pattern.permute.xlu0 1
  %1473 = vperm.xlu0 %1472, %v1157
  %v1474 = vpop.permute.xlu0 %1473
  %1477 = vset.pattern.permute.xlu0 1
  %1478 = vperm.xlu0 %1477, %v1159
  %v1479 = vpop.permute.xlu0 %1478
  %v1481 = vmul.f32 %v1404, %v1385
  %v1482 = vmul.f32 %v1409, %v1386
  %v1483 = vmul.f32 %v1414, %v1387
  %v1484 = vmul.f32 %v1419, %v1388
  %v1485 = vmul.f32 %v1424, %v1389
  %v1486 = vmul.f32 %v1429, %v1390
  %v1487 = vmul.f32 %v1434, %v1391
  %v1488 = vmul.f32 %v1439, %v1392
  %v1489 = vmul.f32 %v1444, %v1393
  %v1490 = vmul.f32 %v1449, %v1394
  %v1491 = vmul.f32 %v1454, %v1395
  %v1492 = vmul.f32 %v1459, %v1396
  %v1493 = vmul.f32 %v1464, %v1397
  %v1494 = vmul.f32 %v1469, %v1398
  %v1495 = vmul.f32 %v1474, %v1399
  %v1496 = vmul.f32 %v1479, %v1400
  %v1497 = vpack.c.bf16 %v1259, %v1257
  %v1498 = vpack.c.bf16 %v1263, %v1261
  %v1499 = vpack.c.bf16 %v1267, %v1265
  %v1500 = vpack.c.bf16 %v1271, %v1269
  %v1501 = vpack.c.bf16 %v1275, %v1273
  %v1502 = vpack.c.bf16 %v1279, %v1277
  %v1503 = vpack.c.bf16 %v1283, %v1281
  %v1504 = vpack.c.bf16 %v1287, %v1285
  %1505 = vrot.lane.b32.xlu0 %v789, 112
  %v1506 = vpop.permute.xlu0 %1505
  %1507 = vrot.lane.b32.xlu0 %v790, 112
  %v1508 = vpop.permute.xlu0 %1507
  %1509 = vrot.lane.b32.xlu0 %v791, 112
  %v1510 = vpop.permute.xlu0 %1509
  %1511 = vrot.lane.b32.xlu0 %v792, 112
  %v1512 = vpop.permute.xlu0 %1511
  %1513 = vrot.lane.b32.xlu0 %v793, 112
  %v1514 = vpop.permute.xlu0 %1513
  %1515 = vrot.lane.b32.xlu0 %v794, 112
  %v1516 = vpop.permute.xlu0 %1515
  %1517 = vrot.lane.b32.xlu0 %v795, 112
  %v1518 = vpop.permute.xlu0 %1517
  %1519 = vrot.lane.b32.xlu0 %v796, 112
  %v1520 = vpop.permute.xlu0 %1519
  %1529 = vmatpush.bf16.msra.mxu0 %v1520
  %1530 = vmatpush.bf16.msra.mxu0 %v1518
  %1531 = vmatpush.bf16.msra.mxu0 %v1516
  %1532 = vmatpush.bf16.msra.mxu0 %v1514
  %1533 = vmatpush.bf16.msra.mxu0 %v1512
  %1534 = vmatpush.bf16.msra.mxu0 %v1510
  %1535 = vmatpush.bf16.msra.mxu0 %v1508
  %1536 = vmatpush.bf16.msra.mxu0 %v1506
  %1537 = vmatmul.bf16.gmra.mxu0 %v1497
  %v1538 = vpop.f32.mrf.mxu0
  %v1539 = vadd.f32 0.0, %v1538
  %v1540 = vpop.f32.mrf.mxu0
  %v1541 = vadd.f32 0.0, %v1540
  %1542 = vmatmul.bf16.gmra.mxu0 %v1498
  %v1543 = vpop.f32.mrf.mxu0
  %v1544 = vadd.f32 0.0, %v1543
  %v1545 = vpop.f32.mrf.mxu0
  %v1546 = vadd.f32 0.0, %v1545
  %1547 = vmatmul.bf16.gmra.mxu0 %v1499
  %v1548 = vpop.f32.mrf.mxu0
  %v1549 = vadd.f32 0.0, %v1548
  %v1550 = vpop.f32.mrf.mxu0
  %v1551 = vadd.f32 0.0, %v1550
  %1552 = vmatmul.bf16.gmra.mxu0 %v1500
  %v1553 = vpop.f32.mrf.mxu0
  %v1554 = vadd.f32 0.0, %v1553
  %v1555 = vpop.f32.mrf.mxu0
  %v1556 = vadd.f32 0.0, %v1555
  %1557 = vmatmul.bf16.gmra.mxu0 %v1501
  %v1558 = vpop.f32.mrf.mxu0
  %v1559 = vadd.f32 0.0, %v1558
  %v1560 = vpop.f32.mrf.mxu0
  %v1561 = vadd.f32 0.0, %v1560
  %1562 = vmatmul.bf16.gmra.mxu0 %v1502
  %v1563 = vpop.f32.mrf.mxu0
  %v1564 = vadd.f32 0.0, %v1563
  %v1565 = vpop.f32.mrf.mxu0
  %v1566 = vadd.f32 0.0, %v1565
  %1567 = vmatmul.bf16.gmra.mxu0 %v1503
  %v1568 = vpop.f32.mrf.mxu0
  %v1569 = vadd.f32 0.0, %v1568
  %v1570 = vpop.f32.mrf.mxu0
  %v1571 = vadd.f32 0.0, %v1570
  %1572 = vmatmul.bf16.gmra.mxu0 %v1504
  %v1573 = vpop.f32.mrf.mxu0
  %v1574 = vadd.f32 0.0, %v1573
  %v1575 = vpop.f32.mrf.mxu0
  %v1576 = vadd.f32 0.0, %v1575
  %1577 = vdwg.mxu0
  %1594 = vrot.lane.b32.xlu0 %v1539, 16
  %v1595 = vpop.permute.xlu0 %1594
  %1596 = vrot.lane.b32.xlu0 %v1541, 16
  %v1597 = vpop.permute.xlu0 %1596
  %1598 = vrot.lane.b32.xlu0 %v1544, 16
  %v1599 = vpop.permute.xlu0 %1598
  %1600 = vrot.lane.b32.xlu0 %v1546, 16
  %v1601 = vpop.permute.xlu0 %1600
  %1602 = vrot.lane.b32.xlu0 %v1549, 16
  %v1603 = vpop.permute.xlu0 %1602
  %1604 = vrot.lane.b32.xlu0 %v1551, 16
  %v1605 = vpop.permute.xlu0 %1604
  %1606 = vrot.lane.b32.xlu0 %v1554, 16
  %v1607 = vpop.permute.xlu0 %1606
  %1608 = vrot.lane.b32.xlu0 %v1556, 16
  %v1609 = vpop.permute.xlu0 %1608
  %1610 = vrot.lane.b32.xlu0 %v1559, 16
  %v1611 = vpop.permute.xlu0 %1610
  %1612 = vrot.lane.b32.xlu0 %v1561, 16
  %v1613 = vpop.permute.xlu0 %1612
  %1614 = vrot.lane.b32.xlu0 %v1564, 16
  %v1615 = vpop.permute.xlu0 %1614
  %1616 = vrot.lane.b32.xlu0 %v1566, 16
  %v1617 = vpop.permute.xlu0 %1616
  %1618 = vrot.lane.b32.xlu0 %v1569, 16
  %v1619 = vpop.permute.xlu0 %1618
  %1620 = vrot.lane.b32.xlu0 %v1571, 16
  %v1621 = vpop.permute.xlu0 %1620
  %1622 = vrot.lane.b32.xlu0 %v1574, 16
  %v1623 = vpop.permute.xlu0 %1622
  %1624 = vrot.lane.b32.xlu0 %v1576, 16
  %v1625 = vpop.permute.xlu0 %1624
  %v1642 = vadd.f32 %v1481, %v1595
  %v1643 = vadd.f32 %v1482, %v1597
  %v1644 = vadd.f32 %v1483, %v1599
  %v1645 = vadd.f32 %v1484, %v1601
  %v1646 = vadd.f32 %v1485, %v1603
  %v1647 = vadd.f32 %v1486, %v1605
  %v1648 = vadd.f32 %v1487, %v1607
  %v1649 = vadd.f32 %v1488, %v1609
  %v1650 = vadd.f32 %v1489, %v1611
  %v1651 = vadd.f32 %v1490, %v1613
  %v1652 = vadd.f32 %v1491, %v1615
  %v1653 = vadd.f32 %v1492, %v1617
  %v1654 = vadd.f32 %v1493, %v1619
  %v1655 = vadd.f32 %v1494, %v1621
  %v1656 = vadd.f32 %v1495, %v1623
  %v1657 = vadd.f32 %v1496, %v1625
  %vm1658 = vcmask 261248
  %1659 = vst.msk [vmem:[#allocation4] sm:$0xff] %vm1658, %v1642
  %1660 = vst.msk [vmem:[#allocation4 + $0x8] sm:$0xff] %vm1658, %v1643
  %1661 = vst.msk [vmem:[#allocation4 + $0x10] sm:$0xff] %vm1658, %v1644
  %1662 = vst.msk [vmem:[#allocation4 + $0x18] sm:$0xff] %vm1658, %v1645
  %1663 = vst.msk [vmem:[#allocation4 + $0x20] sm:$0xff] %vm1658, %v1646
  %1664 = vst.msk [vmem:[#allocation4 + $0x28] sm:$0xff] %vm1658, %v1647
  %1665 = vst.msk [vmem:[#allocation4 + $0x30] sm:$0xff] %vm1658, %v1648
  %1666 = vst.msk [vmem:[#allocation4 + $0x38] sm:$0xff] %vm1658, %v1649
  %1667 = vst.msk [vmem:[#allocation4 + $0x40] sm:$0xff] %vm1658, %v1650
  %1668 = vst.msk [vmem:[#allocation4 + $0x48] sm:$0xff] %vm1658, %v1651
  %1669 = vst.msk [vmem:[#allocation4 + $0x50] sm:$0xff] %vm1658, %v1652
  %1670 = vst.msk [vmem:[#allocation4 + $0x58] sm:$0xff] %vm1658, %v1653
  %1671 = vst.msk [vmem:[#allocation4 + $0x60] sm:$0xff] %vm1658, %v1654
  %1672 = vst.msk [vmem:[#allocation4 + $0x68] sm:$0xff] %vm1658, %v1655
  %1673 = vst.msk [vmem:[#allocation4 + $0x70] sm:$0xff] %vm1658, %v1656
  %1674 = vst.msk [vmem:[#allocation4 + $0x78] sm:$0xff] %vm1658, %v1657
  %1675 = vst.msk [vmem:[#allocation2] sm:$0xff] %vm1368, %v1096
  %1676 = vst.msk [vmem:[#allocation2 + $0x8] sm:$0xff] %vm1368, %v1097
  %1677 = vst.msk [vmem:[#allocation2 + $0x10] sm:$0xff] %vm1368, %v1098
  %1678 = vst.msk [vmem:[#allocation2 + $0x18] sm:$0xff] %vm1368, %v1099
  %1679 = vst.msk [vmem:[#allocation2 + $0x20] sm:$0xff] %vm1368, %v1100
  %1680 = vst.msk [vmem:[#allocation2 + $0x28] sm:$0xff] %vm1368, %v1101
  %1681 = vst.msk [vmem:[#allocation2 + $0x30] sm:$0xff] %vm1368, %v1102
  %1682 = vst.msk [vmem:[#allocation2 + $0x38] sm:$0xff] %vm1368, %v1103
  %1683 = vst.msk [vmem:[#allocation2 + $0x40] sm:$0xff] %vm1368, %v1104
  %1684 = vst.msk [vmem:[#allocation2 + $0x48] sm:$0xff] %vm1368, %v1105
  %1685 = vst.msk [vmem:[#allocation2 + $0x50] sm:$0xff] %vm1368, %v1106
  %1686 = vst.msk [vmem:[#allocation2 + $0x58] sm:$0xff] %vm1368, %v1107
  %1687 = vst.msk [vmem:[#allocation2 + $0x60] sm:$0xff] %vm1368, %v1108
  %1688 = vst.msk [vmem:[#allocation2 + $0x68] sm:$0xff] %vm1368, %v1109
  %1689 = vst.msk [vmem:[#allocation2 + $0x70] sm:$0xff] %vm1368, %v1110
  %1690 = vst.msk [vmem:[#allocation2 + $0x78] sm:$0xff] %vm1368, %v1111
  // Predicated region
  $region26: #{gat_forward.5} parent=0 // pred_check
    %p1691 = pneg %p20
  $region27: #{gat_forward.5} parent=0 // pred_check_branch
    %1693 = sbr.rel (%p1691) target = $region29
  $region28: #{gat_forward.5} parent=0 // pred_region
    %v1694 = vld [vmem:[#allocation3] sm:$0xff]
    %v1695 = vld [vmem:[#allocation3 + $0x8] sm:$0xff]
    %v1696 = vld [vmem:[#allocation3 + $0x10] sm:$0xff]
    %v1697 = vld [vmem:[#allocation3 + $0x18] sm:$0xff]
    %v1698 = vld [vmem:[#allocation3 + $0x20] sm:$0xff]
    %v1699 = vld [vmem:[#allocation3 + $0x28] sm:$0xff]
    %v1700 = vld [vmem:[#allocation3 + $0x30] sm:$0xff]
    %v1701 = vld [vmem:[#allocation3 + $0x38] sm:$0xff]
    %v1702 = vld [vmem:[#allocation3 + $0x40] sm:$0xff]
    %v1703 = vld [vmem:[#allocation3 + $0x48] sm:$0xff]
    %v1704 = vld [vmem:[#allocation3 + $0x50] sm:$0xff]
    %v1705 = vld [vmem:[#allocation3 + $0x58] sm:$0xff]
    %v1706 = vld [vmem:[#allocation3 + $0x60] sm:$0xff]
    %v1707 = vld [vmem:[#allocation3 + $0x68] sm:$0xff]
    %v1708 = vld [vmem:[#allocation3 + $0x70] sm:$0xff]
    %v1709 = vld [vmem:[#allocation3 + $0x78] sm:$0xff]
    %v1710 = vrcp.pop %v1694
    %v1711 = vrcp.pop %v1695
    %v1712 = vrcp.pop %v1696
    %v1713 = vrcp.pop %v1697
    %v1714 = vrcp.pop %v1698
    %v1715 = vrcp.pop %v1699
    %v1716 = vrcp.pop %v1700
    %v1717 = vrcp.pop %v1701
    %v1718 = vrcp.pop %v1702
    %v1719 = vrcp.pop %v1703
    %v1720 = vrcp.pop %v1704
    %v1721 = vrcp.pop %v1705
    %v1722 = vrcp.pop %v1706
    %v1723 = vrcp.pop %v1707
    %v1724 = vrcp.pop %v1708
    %v1725 = vrcp.pop %v1709
    %v1726 = vld [vmem:[#allocation4] sm:$0xff]
    %v1727 = vld [vmem:[#allocation4 + $0x8] sm:$0xff]
    %v1728 = vld [vmem:[#allocation4 + $0x10] sm:$0xff]
    %v1729 = vld [vmem:[#allocation4 + $0x18] sm:$0xff]
    %v1730 = vld [vmem:[#allocation4 + $0x20] sm:$0xff]
    %v1731 = vld [vmem:[#allocation4 + $0x28] sm:$0xff]
    %v1732 = vld [vmem:[#allocation4 + $0x30] sm:$0xff]
    %v1733 = vld [vmem:[#allocation4 + $0x38] sm:$0xff]
    %v1734 = vld [vmem:[#allocation4 + $0x40] sm:$0xff]
    %v1735 = vld [vmem:[#allocation4 + $0x48] sm:$0xff]
    %v1736 = vld [vmem:[#allocation4 + $0x50] sm:$0xff]
    %v1737 = vld [vmem:[#allocation4 + $0x58] sm:$0xff]
    %v1738 = vld [vmem:[#allocation4 + $0x60] sm:$0xff]
    %v1739 = vld [vmem:[#allocation4 + $0x68] sm:$0xff]
    %v1740 = vld [vmem:[#allocation4 + $0x70] sm:$0xff]
    %v1741 = vld [vmem:[#allocation4 + $0x78] sm:$0xff]
    %1743 = vset.pattern.permute.xlu0 0
    %1744 = vperm.xlu0 %1743, %v1710
    %v1745 = vpop.permute.xlu0 %1744
    %1748 = vset.pattern.permute.xlu0 0
    %1749 = vperm.xlu0 %1748, %v1711
    %v1750 = vpop.permute.xlu0 %1749
    %1753 = vset.pattern.permute.xlu0 0
    %1754 = vperm.xlu0 %1753, %v1712
    %v1755 = vpop.permute.xlu0 %1754
    %1758 = vset.pattern.permute.xlu0 0
    %1759 = vperm.xlu0 %1758, %v1713
    %v1760 = vpop.permute.xlu0 %1759
    %1763 = vset.pattern.permute.xlu0 0
    %1764 = vperm.xlu0 %1763, %v1714
    %v1765 = vpop.permute.xlu0 %1764
    %1768 = vset.pattern.permute.xlu0 0
    %1769 = vperm.xlu0 %1768, %v1715
    %v1770 = vpop.permute.xlu0 %1769
    %1773 = vset.pattern.permute.xlu0 0
    %1774 = vperm.xlu0 %1773, %v1716
    %v1775 = vpop.permute.xlu0 %1774
    %1778 = vset.pattern.permute.xlu0 0
    %1779 = vperm.xlu0 %1778, %v1717
    %v1780 = vpop.permute.xlu0 %1779
    %1783 = vset.pattern.permute.xlu0 0
    %1784 = vperm.xlu0 %1783, %v1718
    %v1785 = vpop.permute.xlu0 %1784
    %1788 = vset.pattern.permute.xlu0 0
    %1789 = vperm.xlu0 %1788, %v1719
    %v1790 = vpop.permute.xlu0 %1789
    %1793 = vset.pattern.permute.xlu0 0
    %1794 = vperm.xlu0 %1793, %v1720
    %v1795 = vpop.permute.xlu0 %1794
    %1798 = vset.pattern.permute.xlu0 0
    %1799 = vperm.xlu0 %1798, %v1721
    %v1800 = vpop.permute.xlu0 %1799
    %1803 = vset.pattern.permute.xlu0 0
    %1804 = vperm.xlu0 %1803, %v1722
    %v1805 = vpop.permute.xlu0 %1804
    %1808 = vset.pattern.permute.xlu0 0
    %1809 = vperm.xlu0 %1808, %v1723
    %v1810 = vpop.permute.xlu0 %1809
    %1813 = vset.pattern.permute.xlu0 0
    %1814 = vperm.xlu0 %1813, %v1724
    %v1815 = vpop.permute.xlu0 %1814
    %1818 = vset.pattern.permute.xlu0 0
    %1819 = vperm.xlu0 %1818, %v1725
    %v1820 = vpop.permute.xlu0 %1819
    %v1822 = vmul.f32 %v1726, %v1745
    %v1823 = vmul.f32 %v1727, %v1750
    %v1824 = vmul.f32 %v1728, %v1755
    %v1825 = vmul.f32 %v1729, %v1760
    %v1826 = vmul.f32 %v1730, %v1765
    %v1827 = vmul.f32 %v1731, %v1770
    %v1828 = vmul.f32 %v1732, %v1775
    %v1829 = vmul.f32 %v1733, %v1780
    %v1830 = vmul.f32 %v1734, %v1785
    %v1831 = vmul.f32 %v1735, %v1790
    %v1832 = vmul.f32 %v1736, %v1795
    %v1833 = vmul.f32 %v1737, %v1800
    %v1834 = vmul.f32 %v1738, %v1805
    %v1835 = vmul.f32 %v1739, %v1810
    %v1836 = vmul.f32 %v1740, %v1815
    %v1837 = vmul.f32 %v1741, %v1820
    %1838 = vst.msk [vmem:[#allocation4] sm:$0xff] %vm870, %v1822
    %1839 = vst.msk [vmem:[#allocation4 + $0x8] sm:$0xff] %vm870, %v1823
    %1840 = vst.msk [vmem:[#allocation4 + $0x10] sm:$0xff] %vm870, %v1824
    %1841 = vst.msk [vmem:[#allocation4 + $0x18] sm:$0xff] %vm870, %v1825
    %1842 = vst.msk [vmem:[#allocation4 + $0x20] sm:$0xff] %vm870, %v1826
    %1843 = vst.msk [vmem:[#allocation4 + $0x28] sm:$0xff] %vm870, %v1827
    %1844 = vst.msk [vmem:[#allocation4 + $0x30] sm:$0xff] %vm870, %v1828
    %1845 = vst.msk [vmem:[#allocation4 + $0x38] sm:$0xff] %vm870, %v1829
    %1846 = vst.msk [vmem:[#allocation4 + $0x40] sm:$0xff] %vm870, %v1830
    %1847 = vst.msk [vmem:[#allocation4 + $0x48] sm:$0xff] %vm870, %v1831
    %1848 = vst.msk [vmem:[#allocation4 + $0x50] sm:$0xff] %vm870, %v1832
    %1849 = vst.msk [vmem:[#allocation4 + $0x58] sm:$0xff] %vm870, %v1833
    %1850 = vst.msk [vmem:[#allocation4 + $0x60] sm:$0xff] %vm870, %v1834
    %1851 = vst.msk [vmem:[#allocation4 + $0x68] sm:$0xff] %vm870, %v1835
    %1852 = vst.msk [vmem:[#allocation4 + $0x70] sm:$0xff] %vm870, %v1836
    %1853 = vst.msk [vmem:[#allocation4 + $0x78] sm:$0xff] %vm870, %v1837
    %v1854 = vld [vmem:[#allocation3] sm:$0xff]
    %v1855 = vld [vmem:[#allocation3 + $0x8] sm:$0xff]
    %v1856 = vld [vmem:[#allocation3 + $0x10] sm:$0xff]
    %v1857 = vld [vmem:[#allocation3 + $0x18] sm:$0xff]
    %v1858 = vld [vmem:[#allocation3 + $0x20] sm:$0xff]
    %v1859 = vld [vmem:[#allocation3 + $0x28] sm:$0xff]
    %v1860 = vld [vmem:[#allocation3 + $0x30] sm:$0xff]
    %v1861 = vld [vmem:[#allocation3 + $0x38] sm:$0xff]
    %v1862 = vld [vmem:[#allocation3 + $0x40] sm:$0xff]
    %v1863 = vld [vmem:[#allocation3 + $0x48] sm:$0xff]
    %v1864 = vld [vmem:[#allocation3 + $0x50] sm:$0xff]
    %v1865 = vld [vmem:[#allocation3 + $0x58] sm:$0xff]
    %v1866 = vld [vmem:[#allocation3 + $0x60] sm:$0xff]
    %v1867 = vld [vmem:[#allocation3 + $0x68] sm:$0xff]
    %v1868 = vld [vmem:[#allocation3 + $0x70] sm:$0xff]
    %v1869 = vld [vmem:[#allocation3 + $0x78] sm:$0xff]
    %v1870 = vrcp.pop %v1854
    %v1871 = vrcp.pop %v1855
    %v1872 = vrcp.pop %v1856
    %v1873 = vrcp.pop %v1857
    %v1874 = vrcp.pop %v1858
    %v1875 = vrcp.pop %v1859
    %v1876 = vrcp.pop %v1860
    %v1877 = vrcp.pop %v1861
    %v1878 = vrcp.pop %v1862
    %v1879 = vrcp.pop %v1863
    %v1880 = vrcp.pop %v1864
    %v1881 = vrcp.pop %v1865
    %v1882 = vrcp.pop %v1866
    %v1883 = vrcp.pop %v1867
    %v1884 = vrcp.pop %v1868
    %v1885 = vrcp.pop %v1869
    %v1886 = vld [vmem:[#allocation4] sm:$0xff]
    %v1887 = vld [vmem:[#allocation4 + $0x8] sm:$0xff]
    %v1888 = vld [vmem:[#allocation4 + $0x10] sm:$0xff]
    %v1889 = vld [vmem:[#allocation4 + $0x18] sm:$0xff]
    %v1890 = vld [vmem:[#allocation4 + $0x20] sm:$0xff]
    %v1891 = vld [vmem:[#allocation4 + $0x28] sm:$0xff]
    %v1892 = vld [vmem:[#allocation4 + $0x30] sm:$0xff]
    %v1893 = vld [vmem:[#allocation4 + $0x38] sm:$0xff]
    %v1894 = vld [vmem:[#allocation4 + $0x40] sm:$0xff]
    %v1895 = vld [vmem:[#allocation4 + $0x48] sm:$0xff]
    %v1896 = vld [vmem:[#allocation4 + $0x50] sm:$0xff]
    %v1897 = vld [vmem:[#allocation4 + $0x58] sm:$0xff]
    %v1898 = vld [vmem:[#allocation4 + $0x60] sm:$0xff]
    %v1899 = vld [vmem:[#allocation4 + $0x68] sm:$0xff]
    %v1900 = vld [vmem:[#allocation4 + $0x70] sm:$0xff]
    %v1901 = vld [vmem:[#allocation4 + $0x78] sm:$0xff]
    %1903 = vset.pattern.permute.xlu0 1
    %1904 = vperm.xlu0 %1903, %v1870
    %v1905 = vpop.permute.xlu0 %1904
    %1908 = vset.pattern.permute.xlu0 1
    %1909 = vperm.xlu0 %1908, %v1871
    %v1910 = vpop.permute.xlu0 %1909
    %1913 = vset.pattern.permute.xlu0 1
    %1914 = vperm.xlu0 %1913, %v1872
    %v1915 = vpop.permute.xlu0 %1914
    %1918 = vset.pattern.permute.xlu0 1
    %1919 = vperm.xlu0 %1918, %v1873
    %v1920 = vpop.permute.xlu0 %1919
    %1923 = vset.pattern.permute.xlu0 1
    %1924 = vperm.xlu0 %1923, %v1874
    %v1925 = vpop.permute.xlu0 %1924
    %1928 = vset.pattern.permute.xlu0 1
    %1929 = vperm.xlu0 %1928, %v1875
    %v1930 = vpop.permute.xlu0 %1929
    %1933 = vset.pattern.permute.xlu0 1
    %1934 = vperm.xlu0 %1933, %v1876
    %v1935 = vpop.permute.xlu0 %1934
    %1938 = vset.pattern.permute.xlu0 1
    %1939 = vperm.xlu0 %1938, %v1877
    %v1940 = vpop.permute.xlu0 %1939
    %1943 = vset.pattern.permute.xlu0 1
    %1944 = vperm.xlu0 %1943, %v1878
    %v1945 = vpop.permute.xlu0 %1944
    %1948 = vset.pattern.permute.xlu0 1
    %1949 = vperm.xlu0 %1948, %v1879
    %v1950 = vpop.permute.xlu0 %1949
    %1953 = vset.pattern.permute.xlu0 1
    %1954 = vperm.xlu0 %1953, %v1880
    %v1955 = vpop.permute.xlu0 %1954
    %1958 = vset.pattern.permute.xlu0 1
    %1959 = vperm.xlu0 %1958, %v1881
    %v1960 = vpop.permute.xlu0 %1959
    %1963 = vset.pattern.permute.xlu0 1
    %1964 = vperm.xlu0 %1963, %v1882
    %v1965 = vpop.permute.xlu0 %1964
    %1968 = vset.pattern.permute.xlu0 1
    %1969 = vperm.xlu0 %1968, %v1883
    %v1970 = vpop.permute.xlu0 %1969
    %1973 = vset.pattern.permute.xlu0 1
    %1974 = vperm.xlu0 %1973, %v1884
    %v1975 = vpop.permute.xlu0 %1974
    %1978 = vset.pattern.permute.xlu0 1
    %1979 = vperm.xlu0 %1978, %v1885
    %v1980 = vpop.permute.xlu0 %1979
    %v1982 = vmul.f32 %v1886, %v1905
    %v1983 = vmul.f32 %v1887, %v1910
    %v1984 = vmul.f32 %v1888, %v1915
    %v1985 = vmul.f32 %v1889, %v1920
    %v1986 = vmul.f32 %v1890, %v1925
    %v1987 = vmul.f32 %v1891, %v1930
    %v1988 = vmul.f32 %v1892, %v1935
    %v1989 = vmul.f32 %v1893, %v1940
    %v1990 = vmul.f32 %v1894, %v1945
    %v1991 = vmul.f32 %v1895, %v1950
    %v1992 = vmul.f32 %v1896, %v1955
    %v1993 = vmul.f32 %v1897, %v1960
    %v1994 = vmul.f32 %v1898, %v1965
    %v1995 = vmul.f32 %v1899, %v1970
    %v1996 = vmul.f32 %v1900, %v1975
    %v1997 = vmul.f32 %v1901, %v1980
    %1998 = vst.msk [vmem:[#allocation4] sm:$0xff] %vm1658, %v1982
    %1999 = vst.msk [vmem:[#allocation4 + $0x8] sm:$0xff] %vm1658, %v1983
    %2000 = vst.msk [vmem:[#allocation4 + $0x10] sm:$0xff] %vm1658, %v1984
    %2001 = vst.msk [vmem:[#allocation4 + $0x18] sm:$0xff] %vm1658, %v1985
    %2002 = vst.msk [vmem:[#allocation4 + $0x20] sm:$0xff] %vm1658, %v1986
    %2003 = vst.msk [vmem:[#allocation4 + $0x28] sm:$0xff] %vm1658, %v1987
    %2004 = vst.msk [vmem:[#allocation4 + $0x30] sm:$0xff] %vm1658, %v1988
    %2005 = vst.msk [vmem:[#allocation4 + $0x38] sm:$0xff] %vm1658, %v1989
    %2006 = vst.msk [vmem:[#allocation4 + $0x40] sm:$0xff] %vm1658, %v1990
    %2007 = vst.msk [vmem:[#allocation4 + $0x48] sm:$0xff] %vm1658, %v1991
    %2008 = vst.msk [vmem:[#allocation4 + $0x50] sm:$0xff] %vm1658, %v1992
    %2009 = vst.msk [vmem:[#allocation4 + $0x58] sm:$0xff] %vm1658, %v1993
    %2010 = vst.msk [vmem:[#allocation4 + $0x60] sm:$0xff] %vm1658, %v1994
    %2011 = vst.msk [vmem:[#allocation4 + $0x68] sm:$0xff] %vm1658, %v1995
    %2012 = vst.msk [vmem:[#allocation4 + $0x70] sm:$0xff] %vm1658, %v1996
    %2013 = vst.msk [vmem:[#allocation4 + $0x78] sm:$0xff] %vm1658, %v1997
    %v2014 = vld [vmem:[#allocation4] sm:$0xff]
    %v2015 = vld [vmem:[#allocation4 + $0x8] sm:$0xff]
    %v2016 = vld [vmem:[#allocation4 + $0x10] sm:$0xff]
    %v2017 = vld [vmem:[#allocation4 + $0x18] sm:$0xff]
    %v2018 = vld [vmem:[#allocation4 + $0x20] sm:$0xff]
    %v2019 = vld [vmem:[#allocation4 + $0x28] sm:$0xff]
    %v2020 = vld [vmem:[#allocation4 + $0x30] sm:$0xff]
    %v2021 = vld [vmem:[#allocation4 + $0x38] sm:$0xff]
    %v2022 = vld [vmem:[#allocation4 + $0x40] sm:$0xff]
    %v2023 = vld [vmem:[#allocation4 + $0x48] sm:$0xff]
    %v2024 = vld [vmem:[#allocation4 + $0x50] sm:$0xff]
    %v2025 = vld [vmem:[#allocation4 + $0x58] sm:$0xff]
    %v2026 = vld [vmem:[#allocation4 + $0x60] sm:$0xff]
    %v2027 = vld [vmem:[#allocation4 + $0x68] sm:$0xff]
    %v2028 = vld [vmem:[#allocation4 + $0x70] sm:$0xff]
    %v2029 = vld [vmem:[#allocation4 + $0x78] sm:$0xff]
    %v2030 = vld [vmem:[%s4] sm:$0x1]
    %v2032 = vperm.slane %v2030, 0
    %v2034 = vadd.f32 %v2014, %v2032
    %v2035 = vadd.f32 %v2015, %v2032
    %v2036 = vadd.f32 %v2016, %v2032
    %v2037 = vadd.f32 %v2017, %v2032
    %v2038 = vadd.f32 %v2018, %v2032
    %v2039 = vadd.f32 %v2019, %v2032
    %v2040 = vadd.f32 %v2020, %v2032
    %v2041 = vadd.f32 %v2021, %v2032
    %v2042 = vadd.f32 %v2022, %v2032
    %v2043 = vadd.f32 %v2023, %v2032
    %v2044 = vadd.f32 %v2024, %v2032
    %v2045 = vadd.f32 %v2025, %v2032
    %v2046 = vadd.f32 %v2026, %v2032
    %v2047 = vadd.f32 %v2027, %v2032
    %v2048 = vadd.f32 %v2028, %v2032
    %v2049 = vadd.f32 %v2029, %v2032
    %v2050 = vmax.f32 %v2034, 0.0
    %v2051 = vmax.f32 %v2035, 0.0
    %v2052 = vmax.f32 %v2036, 0.0
    %v2053 = vmax.f32 %v2037, 0.0
    %v2054 = vmax.f32 %v2038, 0.0
    %v2055 = vmax.f32 %v2039, 0.0
    %v2056 = vmax.f32 %v2040, 0.0
    %v2057 = vmax.f32 %v2041, 0.0
    %v2058 = vmax.f32 %v2042, 0.0
    %v2059 = vmax.f32 %v2043, 0.0
    %v2060 = vmax.f32 %v2044, 0.0
    %v2061 = vmax.f32 %v2045, 0.0
    %v2062 = vmax.f32 %v2046, 0.0
    %v2063 = vmax.f32 %v2047, 0.0
    %v2064 = vmax.f32 %v2048, 0.0
    %v2065 = vmax.f32 %v2049, 0.0
    %vm2066 = vcmask 261120
    %2067 = vst.msk [vmem:[%s5] sm:$0xff] %vm2066, %v2050
    %2068 = vst.msk [vmem:[%s5 + $0x8] sm:$0xff] %vm2066, %v2051
    %2069 = vst.msk [vmem:[%s5 + $0x10] sm:$0xff] %vm2066, %v2052
    %2070 = vst.msk [vmem:[%s5 + $0x18] sm:$0xff] %vm2066, %v2053
    %2071 = vst.msk [vmem:[%s5 + $0x20] sm:$0xff] %vm2066, %v2054
    %2072 = vst.msk [vmem:[%s5 + $0x28] sm:$0xff] %vm2066, %v2055
    %2073 = vst.msk [vmem:[%s5 + $0x30] sm:$0xff] %vm2066, %v2056
    %2074 = vst.msk [vmem:[%s5 + $0x38] sm:$0xff] %vm2066, %v2057
    %2075 = vst.msk [vmem:[%s5 + $0x40] sm:$0xff] %vm2066, %v2058
    %2076 = vst.msk [vmem:[%s5 + $0x48] sm:$0xff] %vm2066, %v2059
    %2077 = vst.msk [vmem:[%s5 + $0x50] sm:$0xff] %vm2066, %v2060
    %2078 = vst.msk [vmem:[%s5 + $0x58] sm:$0xff] %vm2066, %v2061
    %2079 = vst.msk [vmem:[%s5 + $0x60] sm:$0xff] %vm2066, %v2062
    %2080 = vst.msk [vmem:[%s5 + $0x68] sm:$0xff] %vm2066, %v2063
    %2081 = vst.msk [vmem:[%s5 + $0x70] sm:$0xff] %vm2066, %v2064
    %2082 = vst.msk [vmem:[%s5 + $0x78] sm:$0xff] %vm2066, %v2065
  $region29: #{gat_forward.5} parent=0 // pred_fallthru
    _
  // Predicated region
  $region30: #{gat_forward.5} parent=0 // pred_check
    _
  $region31: #{gat_forward.5} parent=0 // pred_check_branch
    %2084 = sbr.rel (0) target = $region33
  $region32: #{gat_forward.5} parent=0 // pred_region
    _
  $region33: #{gat_forward.5} parent=0 // pred_fallthru
    _
  // Predicated region
  $region34: #{gat_forward.5} parent=0 // pred_check
    _
  $region35: #{gat_forward.5} parent=0 // pred_check_branch
    %2086 = sbr.rel (0) target = $region37
  $region36: #{gat_forward.5} parent=0 // pred_region
    _
  $region37: #{gat_forward.5} parent=0 // pred_fallthru
    _

// kernel: gat_forward.7
$region0: #{gat_forward.7}
  #allocation0 [shape = 'u32[]', space=smem, size = 0x4, offset = 0x4, fixed_abs, tag = 'smem constant byte address 0x4 - core index']
  #allocation1 [shape = 'u32[72,128]{1,0:T(1,128)}', space=vmem, size = 0x9000, scoped, tag = 'internal scratch']
  #allocation2 [shape = 'f32[128,2]{1,0:T(8,128)}', space=vmem, size = 0x10000, scoped, tag = 'scratch operand']
  #allocation3 [shape = 'f32[128,2]{1,0:T(8,128)}', space=vmem, size = 0x10000, scoped, tag = 'scratch operand']
  #allocation4 [shape = 'f32[128,8]{1,0:T(8,128)}', space=vmem, size = 0x10000, scoped, tag = 'scratch operand']
  %s0 = inlined_call_operand.vmem [shape: f32[128,2], index: 0, kind: input, shape index: {}]
  %s1 = inlined_call_operand.vmem [shape: f32[2,128], index: 1, kind: input, shape index: {}]
  %s2 = inlined_call_operand.vmem [shape: bf16[128,8], index: 2, kind: input, shape index: {}]
  %s3 = inlined_call_operand.vmem [shape: bf16[128,128], index: 3, kind: input, shape index: {}]
  %s4 = inlined_call_operand.vmem [shape: f32[1,8], index: 4, kind: input, shape index: {}]
  %s5 = inlined_call_operand.vmem [shape: f32[128,8], index: 5, kind: output, shape index: {}]
  %s6 = sld [smem:[#allocation0]]
  $region38: #{gat_forward.7} parent=0
    _
  %s8 = ssub.s32 1, %s6
  %s9 = scalar_select 0, %s8, %s6
  // Predicated region
  $region2: #{gat_forward.7} parent=0 // pred_check
    _
  $region3: #{gat_forward.7} parent=0 // pred_check_branch
    %11 = sbr.rel (0) target = $region5
  $region4: #{gat_forward.7} parent=0 // pred_region
    _
  $region5: #{gat_forward.7} parent=0 // pred_fallthru
    _
  // Predicated region
  $region6: #{gat_forward.7} parent=0 // pred_check
    _
  $region7: #{gat_forward.7} parent=0 // pred_check_branch
    %13 = sbr.rel (0) target = $region9
  $region8: #{gat_forward.7} parent=0 // pred_region
    _
  $region9: #{gat_forward.7} parent=0 // pred_fallthru
    _
  // Predicated region
  $region10: #{gat_forward.7} parent=0 // pred_check
    _
  $region11: #{gat_forward.7} parent=0 // pred_check_branch
    %15 = sbr.rel (0) target = $region13
  $region12: #{gat_forward.7} parent=0 // pred_region
    _
  $region13: #{gat_forward.7} parent=0 // pred_fallthru
    _
  // Predicated region
  $region14: #{gat_forward.7} parent=0 // pred_check
    _
  $region15: #{gat_forward.7} parent=0 // pred_check_branch
    %17 = sbr.rel (0) target = $region17
  $region16: #{gat_forward.7} parent=0 // pred_region
    _
  $region17: #{gat_forward.7} parent=0 // pred_fallthru
    _
  // Predicated region
  $region18: #{gat_forward.7} parent=0 // pred_check
    _
  $region19: #{gat_forward.7} parent=0 // pred_check_branch
    %19 = sbr.rel (0) target = $region21
  $region20: #{gat_forward.7} parent=0 // pred_region
    _
  $region21: #{gat_forward.7} parent=0 // pred_fallthru
    _
  %p20 = scmp.eq.s32.totalorder 0, 0
  // Predicated region
  $region22: #{gat_forward.7} parent=0 // pred_check
    %p21 = pneg %p20
  $region23: #{gat_forward.7} parent=0 // pred_check_branch
    %23 = sbr.rel (%p21) target = $region25
  $region24: #{gat_forward.7} parent=0 // pred_region
    %vm24 = vcmask 15360
    %25 = vst.msk [vmem:[#allocation2] sm:$0xff] %vm24, -1e+30
    %26 = vst.msk [vmem:[#allocation2 + $0x8] sm:$0xff] %vm24, -1e+30
    %27 = vst.msk [vmem:[#allocation2 + $0x10] sm:$0xff] %vm24, -1e+30
    %28 = vst.msk [vmem:[#allocation2 + $0x18] sm:$0xff] %vm24, -1e+30
    %29 = vst.msk [vmem:[#allocation2 + $0x20] sm:$0xff] %vm24, -1e+30
    %30 = vst.msk [vmem:[#allocation2 + $0x28] sm:$0xff] %vm24, -1e+30
    %31 = vst.msk [vmem:[#allocation2 + $0x30] sm:$0xff] %vm24, -1e+30
    %32 = vst.msk [vmem:[#allocation2 + $0x38] sm:$0xff] %vm24, -1e+30
    %33 = vst.msk [vmem:[#allocation2 + $0x40] sm:$0xff] %vm24, -1e+30
    %34 = vst.msk [vmem:[#allocation2 + $0x48] sm:$0xff] %vm24, -1e+30
    %35 = vst.msk [vmem:[#allocation2 + $0x50] sm:$0xff] %vm24, -1e+30
    %36 = vst.msk [vmem:[#allocation2 + $0x58] sm:$0xff] %vm24, -1e+30
    %37 = vst.msk [vmem:[#allocation2 + $0x60] sm:$0xff] %vm24, -1e+30
    %38 = vst.msk [vmem:[#allocation2 + $0x68] sm:$0xff] %vm24, -1e+30
    %39 = vst.msk [vmem:[#allocation2 + $0x70] sm:$0xff] %vm24, -1e+30
    %40 = vst.msk [vmem:[#allocation2 + $0x78] sm:$0xff] %vm24, -1e+30
    %41 = vst.msk [vmem:[#allocation3] sm:$0xff] %vm24, 0.0
    %42 = vst.msk [vmem:[#allocation3 + $0x8] sm:$0xff] %vm24, 0.0
    %43 = vst.msk [vmem:[#allocation3 + $0x10] sm:$0xff] %vm24, 0.0
    %44 = vst.msk [vmem:[#allocation3 + $0x18] sm:$0xff] %vm24, 0.0
    %45 = vst.msk [vmem:[#allocation3 + $0x20] sm:$0xff] %vm24, 0.0
    %46 = vst.msk [vmem:[#allocation3 + $0x28] sm:$0xff] %vm24, 0.0
    %47 = vst.msk [vmem:[#allocation3 + $0x30] sm:$0xff] %vm24, 0.0
    %48 = vst.msk [vmem:[#allocation3 + $0x38] sm:$0xff] %vm24, 0.0
    %49 = vst.msk [vmem:[#allocation3 + $0x40] sm:$0xff] %vm24, 0.0
    %50 = vst.msk [vmem:[#allocation3 + $0x48] sm:$0xff] %vm24, 0.0
    %51 = vst.msk [vmem:[#allocation3 + $0x50] sm:$0xff] %vm24, 0.0
    %52 = vst.msk [vmem:[#allocation3 + $0x58] sm:$0xff] %vm24, 0.0
    %53 = vst.msk [vmem:[#allocation3 + $0x60] sm:$0xff] %vm24, 0.0
    %54 = vst.msk [vmem:[#allocation3 + $0x68] sm:$0xff] %vm24, 0.0
    %55 = vst.msk [vmem:[#allocation3 + $0x70] sm:$0xff] %vm24, 0.0
    %56 = vst.msk [vmem:[#allocation3 + $0x78] sm:$0xff] %vm24, 0.0
    %vm57 = vcmask 64512
    %58 = vst.msk [vmem:[#allocation4] sm:$0xff] %vm57, 0.0
    %59 = vst.msk [vmem:[#allocation4 + $0x8] sm:$0xff] %vm57, 0.0
    %60 = vst.msk [vmem:[#allocation4 + $0x10] sm:$0xff] %vm57, 0.0
    %61 = vst.msk [vmem:[#allocation4 + $0x18] sm:$0xff] %vm57, 0.0
    %62 = vst.msk [vmem:[#allocation4 + $0x20] sm:$0xff] %vm57, 0.0
    %63 = vst.msk [vmem:[#allocation4 + $0x28] sm:$0xff] %vm57, 0.0
    %64 = vst.msk [vmem:[#allocation4 + $0x30] sm:$0xff] %vm57, 0.0
    %65 = vst.msk [vmem:[#allocation4 + $0x38] sm:$0xff] %vm57, 0.0
    %66 = vst.msk [vmem:[#allocation4 + $0x40] sm:$0xff] %vm57, 0.0
    %67 = vst.msk [vmem:[#allocation4 + $0x48] sm:$0xff] %vm57, 0.0
    %68 = vst.msk [vmem:[#allocation4 + $0x50] sm:$0xff] %vm57, 0.0
    %69 = vst.msk [vmem:[#allocation4 + $0x58] sm:$0xff] %vm57, 0.0
    %70 = vst.msk [vmem:[#allocation4 + $0x60] sm:$0xff] %vm57, 0.0
    %71 = vst.msk [vmem:[#allocation4 + $0x68] sm:$0xff] %vm57, 0.0
    %72 = vst.msk [vmem:[#allocation4 + $0x70] sm:$0xff] %vm57, 0.0
    %73 = vst.msk [vmem:[#allocation4 + $0x78] sm:$0xff] %vm57, 0.0
  $region25: #{gat_forward.7} parent=0 // pred_fallthru
    _
  %v74 = vld [vmem:[%s0] sm:$0xff]
  %v75 = vld [vmem:[%s0 + $0x8] sm:$0xff]
  %v76 = vld [vmem:[%s0 + $0x10] sm:$0xff]
  %v77 = vld [vmem:[%s0 + $0x18] sm:$0xff]
  %v78 = vld [vmem:[%s0 + $0x20] sm:$0xff]
  %v79 = vld [vmem:[%s0 + $0x28] sm:$0xff]
  %v80 = vld [vmem:[%s0 + $0x30] sm:$0xff]
  %v81 = vld [vmem:[%s0 + $0x38] sm:$0xff]
  %v82 = vld [vmem:[%s0 + $0x40] sm:$0xff]
  %v83 = vld [vmem:[%s0 + $0x48] sm:$0xff]
  %v84 = vld [vmem:[%s0 + $0x50] sm:$0xff]
  %v85 = vld [vmem:[%s0 + $0x58] sm:$0xff]
  %v86 = vld [vmem:[%s0 + $0x60] sm:$0xff]
  %v87 = vld [vmem:[%s0 + $0x68] sm:$0xff]
  %v88 = vld [vmem:[%s0 + $0x70] sm:$0xff]
  %v89 = vld [vmem:[%s0 + $0x78] sm:$0xff]
  %v90 = vld [vmem:[%s1] sm:$0x3]
  %v91 = vld [vmem:[%s3] sm:$0xf]
  %v92 = vld [vmem:[%s3 + $0x4] sm:$0xf]
  %v93 = vld [vmem:[%s3 + $0x8] sm:$0xf]
  %v94 = vld [vmem:[%s3 + $0xc] sm:$0xf]
  %v95 = vld [vmem:[%s3 + $0x10] sm:$0xf]
  %v96 = vld [vmem:[%s3 + $0x14] sm:$0xf]
  %v97 = vld [vmem:[%s3 + $0x18] sm:$0xf]
  %v98 = vld [vmem:[%s3 + $0x1c] sm:$0xf]
  %v99 = vld [vmem:[%s3 + $0x20] sm:$0xf]
  %v100 = vld [vmem:[%s3 + $0x24] sm:$0xf]
  %v101 = vld [vmem:[%s3 + $0x28] sm:$0xf]
  %v102 = vld [vmem:[%s3 + $0x2c] sm:$0xf]
  %v103 = vld [vmem:[%s3 + $0x30] sm:$0xf]
  %v104 = vld [vmem:[%s3 + $0x34] sm:$0xf]
  %v105 = vld [vmem:[%s3 + $0x38] sm:$0xf]
  %v106 = vld [vmem:[%s3 + $0x3c] sm:$0xf]
  %v107 = vunpack.c.l.bf16 %v91
  %v108 = vunpack.c.l.bf16 %v92
  %v109 = vunpack.c.l.bf16 %v93
  %v110 = vunpack.c.l.bf16 %v94
  %v111 = vunpack.c.l.bf16 %v95
  %v112 = vunpack.c.l.bf16 %v96
  %v113 = vunpack.c.l.bf16 %v97
  %v114 = vunpack.c.l.bf16 %v98
  %v115 = vunpack.c.l.bf16 %v99
  %v116 = vunpack.c.l.bf16 %v100
  %v117 = vunpack.c.l.bf16 %v101
  %v118 = vunpack.c.l.bf16 %v102
  %v119 = vunpack.c.l.bf16 %v103
  %v120 = vunpack.c.l.bf16 %v104
  %v121 = vunpack.c.l.bf16 %v105
  %v122 = vunpack.c.l.bf16 %v106
  %v123 = vld [vmem:[%s2] sm:$0xf]
  %v124 = vld [vmem:[%s2 + $0x4] sm:$0xf]
  %v125 = vld [vmem:[%s2 + $0x8] sm:$0xf]
  %v126 = vld [vmem:[%s2 + $0xc] sm:$0xf]
  %v127 = vld [vmem:[%s2 + $0x10] sm:$0xf]
  %v128 = vld [vmem:[%s2 + $0x14] sm:$0xf]
  %v129 = vld [vmem:[%s2 + $0x18] sm:$0xf]
  %v130 = vld [vmem:[%s2 + $0x1c] sm:$0xf]
  %v131 = vld [vmem:[%s2 + $0x20] sm:$0xf]
  %v132 = vld [vmem:[%s2 + $0x24] sm:$0xf]
  %v133 = vld [vmem:[%s2 + $0x28] sm:$0xf]
  %v134 = vld [vmem:[%s2 + $0x2c] sm:$0xf]
  %v135 = vld [vmem:[%s2 + $0x30] sm:$0xf]
  %v136 = vld [vmem:[%s2 + $0x34] sm:$0xf]
  %v137 = vld [vmem:[%s2 + $0x38] sm:$0xf]
  %v138 = vld [vmem:[%s2 + $0x3c] sm:$0xf]
  %140 = vset.pattern.permute.xlu0 0
  %141 = vperm.xlu0 %140, %v74
  %v142 = vpop.permute.xlu0 %141
  %145 = vset.pattern.permute.xlu0 0
  %146 = vperm.xlu0 %145, %v75
  %v147 = vpop.permute.xlu0 %146
  %150 = vset.pattern.permute.xlu0 0
  %151 = vperm.xlu0 %150, %v76
  %v152 = vpop.permute.xlu0 %151
  %155 = vset.pattern.permute.xlu0 0
  %156 = vperm.xlu0 %155, %v77
  %v157 = vpop.permute.xlu0 %156
  %160 = vset.pattern.permute.xlu0 0
  %161 = vperm.xlu0 %160, %v78
  %v162 = vpop.permute.xlu0 %161
  %165 = vset.pattern.permute.xlu0 0
  %166 = vperm.xlu0 %165, %v79
  %v167 = vpop.permute.xlu0 %166
  %170 = vset.pattern.permute.xlu0 0
  %171 = vperm.xlu0 %170, %v80
  %v172 = vpop.permute.xlu0 %171
  %175 = vset.pattern.permute.xlu0 0
  %176 = vperm.xlu0 %175, %v81
  %v177 = vpop.permute.xlu0 %176
  %180 = vset.pattern.permute.xlu0 0
  %181 = vperm.xlu0 %180, %v82
  %v182 = vpop.permute.xlu0 %181
  %185 = vset.pattern.permute.xlu0 0
  %186 = vperm.xlu0 %185, %v83
  %v187 = vpop.permute.xlu0 %186
  %190 = vset.pattern.permute.xlu0 0
  %191 = vperm.xlu0 %190, %v84
  %v192 = vpop.permute.xlu0 %191
  %195 = vset.pattern.permute.xlu0 0
  %196 = vperm.xlu0 %195, %v85
  %v197 = vpop.permute.xlu0 %196
  %200 = vset.pattern.permute.xlu0 0
  %201 = vperm.xlu0 %200, %v86
  %v202 = vpop.permute.xlu0 %201
  %205 = vset.pattern.permute.xlu0 0
  %206 = vperm.xlu0 %205, %v87
  %v207 = vpop.permute.xlu0 %206
  %210 = vset.pattern.permute.xlu0 0
  %211 = vperm.xlu0 %210, %v88
  %v212 = vpop.permute.xlu0 %211
  %215 = vset.pattern.permute.xlu0 0
  %216 = vperm.xlu0 %215, %v89
  %v217 = vpop.permute.xlu0 %216
  %v219 = vperm.slane %v90, 0
  %v220 = vadd.f32 %v142, %v219
  %v221 = vadd.f32 %v147, %v219
  %v222 = vadd.f32 %v152, %v219
  %v223 = vadd.f32 %v157, %v219
  %v224 = vadd.f32 %v162, %v219
  %v225 = vadd.f32 %v167, %v219
  %v226 = vadd.f32 %v172, %v219
  %v227 = vadd.f32 %v177, %v219
  %v228 = vadd.f32 %v182, %v219
  %v229 = vadd.f32 %v187, %v219
  %v230 = vadd.f32 %v192, %v219
  %v231 = vadd.f32 %v197, %v219
  %v232 = vadd.f32 %v202, %v219
  %v233 = vadd.f32 %v207, %v219
  %v234 = vadd.f32 %v212, %v219
  %v235 = vadd.f32 %v217, %v219
  %vm236 = vcmp.gt.f32.partialorder %v220, 0.0
  %vm237 = vcmp.gt.f32.partialorder %v221, 0.0
  %vm238 = vcmp.gt.f32.partialorder %v222, 0.0
  %vm239 = vcmp.gt.f32.partialorder %v223, 0.0
  %vm240 = vcmp.gt.f32.partialorder %v224, 0.0
  %vm241 = vcmp.gt.f32.partialorder %v225, 0.0
  %vm242 = vcmp.gt.f32.partialorder %v226, 0.0
  %vm243 = vcmp.gt.f32.partialorder %v227, 0.0
  %vm244 = vcmp.gt.f32.partialorder %v228, 0.0
  %vm245 = vcmp.gt.f32.partialorder %v229, 0.0
  %vm246 = vcmp.gt.f32.partialorder %v230, 0.0
  %vm247 = vcmp.gt.f32.partialorder %v231, 0.0
  %vm248 = vcmp.gt.f32.partialorder %v232, 0.0
  %vm249 = vcmp.gt.f32.partialorder %v233, 0.0
  %vm250 = vcmp.gt.f32.partialorder %v234, 0.0
  %vm251 = vcmp.gt.f32.partialorder %v235, 0.0
  %v252 = vmul.f32 %v220, 0.2
  %v253 = vmul.f32 %v221, 0.2
  %v254 = vmul.f32 %v222, 0.2
  %v255 = vmul.f32 %v223, 0.2
  %v256 = vmul.f32 %v224, 0.2
  %v257 = vmul.f32 %v225, 0.2
  %v258 = vmul.f32 %v226, 0.2
  %v259 = vmul.f32 %v227, 0.2
  %v260 = vmul.f32 %v228, 0.2
  %v261 = vmul.f32 %v229, 0.2
  %v262 = vmul.f32 %v230, 0.2
  %v263 = vmul.f32 %v231, 0.2
  %v264 = vmul.f32 %v232, 0.2
  %v265 = vmul.f32 %v233, 0.2
  %v266 = vmul.f32 %v234, 0.2
  %v267 = vmul.f32 %v235, 0.2
  %v268 = vsel %vm236, %v220, %v252
  %v269 = vsel %vm237, %v221, %v253
  %v270 = vsel %vm238, %v222, %v254
  %v271 = vsel %vm239, %v223, %v255
  %v272 = vsel %vm240, %v224, %v256
  %v273 = vsel %vm241, %v225, %v257
  %v274 = vsel %vm242, %v226, %v258
  %v275 = vsel %vm243, %v227, %v259
  %v276 = vsel %vm244, %v228, %v260
  %v277 = vsel %vm245, %v229, %v261
  %v278 = vsel %vm246, %v230, %v262
  %v279 = vsel %vm247, %v231, %v263
  %v280 = vsel %vm248, %v232, %v264
  %v281 = vsel %vm249, %v233, %v265
  %v282 = vsel %vm250, %v234, %v266
  %v283 = vsel %vm251, %v235, %v267
  %v284 = vadd.f32 %v268, %v107
  %v285 = vadd.f32 %v269, %v108
  %v286 = vadd.f32 %v270, %v109
  %v287 = vadd.f32 %v271, %v110
  %v288 = vadd.f32 %v272, %v111
  %v289 = vadd.f32 %v273, %v112
  %v290 = vadd.f32 %v274, %v113
  %v291 = vadd.f32 %v275, %v114
  %v292 = vadd.f32 %v276, %v115
  %v293 = vadd.f32 %v277, %v116
  %v294 = vadd.f32 %v278, %v117
  %v295 = vadd.f32 %v279, %v118
  %v296 = vadd.f32 %v280, %v119
  %v297 = vadd.f32 %v281, %v120
  %v298 = vadd.f32 %v282, %v121
  %v299 = vadd.f32 %v283, %v122
  %v300 = vld [vmem:[#allocation2] sm:$0xff]
  %v301 = vld [vmem:[#allocation2 + $0x8] sm:$0xff]
  %v302 = vld [vmem:[#allocation2 + $0x10] sm:$0xff]
  %v303 = vld [vmem:[#allocation2 + $0x18] sm:$0xff]
  %v304 = vld [vmem:[#allocation2 + $0x20] sm:$0xff]
  %v305 = vld [vmem:[#allocation2 + $0x28] sm:$0xff]
  %v306 = vld [vmem:[#allocation2 + $0x30] sm:$0xff]
  %v307 = vld [vmem:[#allocation2 + $0x38] sm:$0xff]
  %v308 = vld [vmem:[#allocation2 + $0x40] sm:$0xff]
  %v309 = vld [vmem:[#allocation2 + $0x48] sm:$0xff]
  %v310 = vld [vmem:[#allocation2 + $0x50] sm:$0xff]
  %v311 = vld [vmem:[#allocation2 + $0x58] sm:$0xff]
  %v312 = vld [vmem:[#allocation2 + $0x60] sm:$0xff]
  %v313 = vld [vmem:[#allocation2 + $0x68] sm:$0xff]
  %v314 = vld [vmem:[#allocation2 + $0x70] sm:$0xff]
  %v315 = vld [vmem:[#allocation2 + $0x78] sm:$0xff]
  %316 = vmax.xlane.f32.xlu0 %v284
  %v317 = vpop.xlane.xlu0 %316
  %318 = vmax.xlane.f32.xlu0 %v285
  %v319 = vpop.xlane.xlu0 %318
  %320 = vmax.xlane.f32.xlu0 %v286
  %v321 = vpop.xlane.xlu0 %320
  %322 = vmax.xlane.f32.xlu0 %v287
  %v323 = vpop.xlane.xlu0 %322
  %324 = vmax.xlane.f32.xlu0 %v288
  %v325 = vpop.xlane.xlu0 %324
  %326 = vmax.xlane.f32.xlu0 %v289
  %v327 = vpop.xlane.xlu0 %326
  %328 = vmax.xlane.f32.xlu0 %v290
  %v329 = vpop.xlane.xlu0 %328
  %330 = vmax.xlane.f32.xlu0 %v291
  %v331 = vpop.xlane.xlu0 %330
  %332 = vmax.xlane.f32.xlu0 %v292
  %v333 = vpop.xlane.xlu0 %332
  %334 = vmax.xlane.f32.xlu0 %v293
  %v335 = vpop.xlane.xlu0 %334
  %336 = vmax.xlane.f32.xlu0 %v294
  %v337 = vpop.xlane.xlu0 %336
  %338 = vmax.xlane.f32.xlu0 %v295
  %v339 = vpop.xlane.xlu0 %338
  %340 = vmax.xlane.f32.xlu0 %v296
  %v341 = vpop.xlane.xlu0 %340
  %342 = vmax.xlane.f32.xlu0 %v297
  %v343 = vpop.xlane.xlu0 %342
  %344 = vmax.xlane.f32.xlu0 %v298
  %v345 = vpop.xlane.xlu0 %344
  %346 = vmax.xlane.f32.xlu0 %v299
  %v347 = vpop.xlane.xlu0 %346
  %v348 = vmax.f32 %v300, %v317
  %v349 = vmax.f32 %v301, %v319
  %v350 = vmax.f32 %v302, %v321
  %v351 = vmax.f32 %v303, %v323
  %v352 = vmax.f32 %v304, %v325
  %v353 = vmax.f32 %v305, %v327
  %v354 = vmax.f32 %v306, %v329
  %v355 = vmax.f32 %v307, %v331
  %v356 = vmax.f32 %v308, %v333
  %v357 = vmax.f32 %v309, %v335
  %v358 = vmax.f32 %v310, %v337
  %v359 = vmax.f32 %v311, %v339
  %v360 = vmax.f32 %v312, %v341
  %v361 = vmax.f32 %v313, %v343
  %v362 = vmax.f32 %v314, %v345
  %v363 = vmax.f32 %v315, %v347
  %v364 = vsub.f32 %v300, %v348
  %v365 = vsub.f32 %v301, %v349
  %v366 = vsub.f32 %v302, %v350
  %v367 = vsub.f32 %v303, %v351
  %v368 = vsub.f32 %v304, %v352
  %v369 = vsub.f32 %v305, %v353
  %v370 = vsub.f32 %v306, %v354
  %v371 = vsub.f32 %v307, %v355
  %v372 = vsub.f32 %v308, %v356
  %v373 = vsub.f32 %v309, %v357
  %v374 = vsub.f32 %v310, %v358
  %v375 = vsub.f32 %v311, %v359
  %v376 = vsub.f32 %v312, %v360
  %v377 = vsub.f32 %v313, %v361
  %v378 = vsub.f32 %v314, %v362
  %v379 = vsub.f32 %v315, %v363
  %v380 = vmul.f32 %v364, 1.442695
  %v381 = vpow.pop %v380
  %v382 = vmul.f32 %v365, 1.442695
  %v383 = vpow.pop %v382
  %v384 = vmul.f32 %v366, 1.442695
  %v385 = vpow.pop %v384
  %v386 = vmul.f32 %v367, 1.442695
  %v387 = vpow.pop %v386
  %v388 = vmul.f32 %v368, 1.442695
  %v389 = vpow.pop %v388
  %v390 = vmul.f32 %v369, 1.442695
  %v391 = vpow.pop %v390
  %v392 = vmul.f32 %v370, 1.442695
  %v393 = vpow.pop %v392
  %v394 = vmul.f32 %v371, 1.442695
  %v395 = vpow.pop %v394
  %v396 = vmul.f32 %v372, 1.442695
  %v397 = vpow.pop %v396
  %v398 = vmul.f32 %v373, 1.442695
  %v399 = vpow.pop %v398
  %v400 = vmul.f32 %v374, 1.442695
  %v401 = vpow.pop %v400
  %v402 = vmul.f32 %v375, 1.442695
  %v403 = vpow.pop %v402
  %v404 = vmul.f32 %v376, 1.442695
  %v405 = vpow.pop %v404
  %v406 = vmul.f32 %v377, 1.442695
  %v407 = vpow.pop %v406
  %v408 = vmul.f32 %v378, 1.442695
  %v409 = vpow.pop %v408
  %v410 = vmul.f32 %v379, 1.442695
  %v411 = vpow.pop %v410
  %413 = vset.pattern.permute.xlu0 0
  %414 = vperm.xlu0 %413, %v348
  %v415 = vpop.permute.xlu0 %414
  %418 = vset.pattern.permute.xlu0 0
  %419 = vperm.xlu0 %418, %v349
  %v420 = vpop.permute.xlu0 %419
  %423 = vset.pattern.permute.xlu0 0
  %424 = vperm.xlu0 %423, %v350
  %v425 = vpop.permute.xlu0 %424
  %428 = vset.pattern.permute.xlu0 0
  %429 = vperm.xlu0 %428, %v351
  %v430 = vpop.permute.xlu0 %429
  %433 = vset.pattern.permute.xlu0 0
  %434 = vperm.xlu0 %433, %v352
  %v435 = vpop.permute.xlu0 %434
  %438 = vset.pattern.permute.xlu0 0
  %439 = vperm.xlu0 %438, %v353
  %v440 = vpop.permute.xlu0 %439
  %443 = vset.pattern.permute.xlu0 0
  %444 = vperm.xlu0 %443, %v354
  %v445 = vpop.permute.xlu0 %444
  %448 = vset.pattern.permute.xlu0 0
  %449 = vperm.xlu0 %448, %v355
  %v450 = vpop.permute.xlu0 %449
  %453 = vset.pattern.permute.xlu0 0
  %454 = vperm.xlu0 %453, %v356
  %v455 = vpop.permute.xlu0 %454
  %458 = vset.pattern.permute.xlu0 0
  %459 = vperm.xlu0 %458, %v357
  %v460 = vpop.permute.xlu0 %459
  %463 = vset.pattern.permute.xlu0 0
  %464 = vperm.xlu0 %463, %v358
  %v465 = vpop.permute.xlu0 %464
  %468 = vset.pattern.permute.xlu0 0
  %469 = vperm.xlu0 %468, %v359
  %v470 = vpop.permute.xlu0 %469
  %473 = vset.pattern.permute.xlu0 0
  %474 = vperm.xlu0 %473, %v360
  %v475 = vpop.permute.xlu0 %474
  %478 = vset.pattern.permute.xlu0 0
  %479 = vperm.xlu0 %478, %v361
  %v480 = vpop.permute.xlu0 %479
  %483 = vset.pattern.permute.xlu0 0
  %484 = vperm.xlu0 %483, %v362
  %v485 = vpop.permute.xlu0 %484
  %488 = vset.pattern.permute.xlu0 0
  %489 = vperm.xlu0 %488, %v363
  %v490 = vpop.permute.xlu0 %489
  %v492 = vsub.f32 %v284, %v415
  %v493 = vsub.f32 %v285, %v420
  %v494 = vsub.f32 %v286, %v425
  %v495 = vsub.f32 %v287, %v430
  %v496 = vsub.f32 %v288, %v435
  %v497 = vsub.f32 %v289, %v440
  %v498 = vsub.f32 %v290, %v445
  %v499 = vsub.f32 %v291, %v450
  %v500 = vsub.f32 %v292, %v455
  %v501 = vsub.f32 %v293, %v460
  %v502 = vsub.f32 %v294, %v465
  %v503 = vsub.f32 %v295, %v470
  %v504 = vsub.f32 %v296, %v475
  %v505 = vsub.f32 %v297, %v480
  %v506 = vsub.f32 %v298, %v485
  %v507 = vsub.f32 %v299, %v490
  %v508 = vmul.f32 %v492, 1.442695
  %v509 = vpow.pop %v508
  %v510 = vmul.f32 %v493, 1.442695
  %v511 = vpow.pop %v510
  %v512 = vmul.f32 %v494, 1.442695
  %v513 = vpow.pop %v512
  %v514 = vmul.f32 %v495, 1.442695
  %v515 = vpow.pop %v514
  %v516 = vmul.f32 %v496, 1.442695
  %v517 = vpow.pop %v516
  %v518 = vmul.f32 %v497, 1.442695
  %v519 = vpow.pop %v518
  %v520 = vmul.f32 %v498, 1.442695
  %v521 = vpow.pop %v520
  %v522 = vmul.f32 %v499, 1.442695
  %v523 = vpow.pop %v522
  %v524 = vmul.f32 %v500, 1.442695
  %v525 = vpow.pop %v524
  %v526 = vmul.f32 %v501, 1.442695
  %v527 = vpow.pop %v526
  %v528 = vmul.f32 %v502, 1.442695
  %v529 = vpow.pop %v528
  %v530 = vmul.f32 %v503, 1.442695
  %v531 = vpow.pop %v530
  %v532 = vmul.f32 %v504, 1.442695
  %v533 = vpow.pop %v532
  %v534 = vmul.f32 %v505, 1.442695
  %v535 = vpow.pop %v534
  %v536 = vmul.f32 %v506, 1.442695
  %v537 = vpow.pop %v536
  %v538 = vmul.f32 %v507, 1.442695
  %v539 = vpow.pop %v538
  %v540 = vld [vmem:[#allocation3] sm:$0xff]
  %v541 = vld [vmem:[#allocation3 + $0x8] sm:$0xff]
  %v542 = vld [vmem:[#allocation3 + $0x10] sm:$0xff]
  %v543 = vld [vmem:[#allocation3 + $0x18] sm:$0xff]
  %v544 = vld [vmem:[#allocation3 + $0x20] sm:$0xff]
  %v545 = vld [vmem:[#allocation3 + $0x28] sm:$0xff]
  %v546 = vld [vmem:[#allocation3 + $0x30] sm:$0xff]
  %v547 = vld [vmem:[#allocation3 + $0x38] sm:$0xff]
  %v548 = vld [vmem:[#allocation3 + $0x40] sm:$0xff]
  %v549 = vld [vmem:[#allocation3 + $0x48] sm:$0xff]
  %v550 = vld [vmem:[#allocation3 + $0x50] sm:$0xff]
  %v551 = vld [vmem:[#allocation3 + $0x58] sm:$0xff]
  %v552 = vld [vmem:[#allocation3 + $0x60] sm:$0xff]
  %v553 = vld [vmem:[#allocation3 + $0x68] sm:$0xff]
  %v554 = vld [vmem:[#allocation3 + $0x70] sm:$0xff]
  %v555 = vld [vmem:[#allocation3 + $0x78] sm:$0xff]
  %v556 = vmul.f32 %v381, %v540
  %v557 = vmul.f32 %v383, %v541
  %v558 = vmul.f32 %v385, %v542
  %v559 = vmul.f32 %v387, %v543
  %v560 = vmul.f32 %v389, %v544
  %v561 = vmul.f32 %v391, %v545
  %v562 = vmul.f32 %v393, %v546
  %v563 = vmul.f32 %v395, %v547
  %v564 = vmul.f32 %v397, %v548
  %v565 = vmul.f32 %v399, %v549
  %v566 = vmul.f32 %v401, %v550
  %v567 = vmul.f32 %v403, %v551
  %v568 = vmul.f32 %v405, %v552
  %v569 = vmul.f32 %v407, %v553
  %v570 = vmul.f32 %v409, %v554
  %v571 = vmul.f32 %v411, %v555
  %572 = vadd.xlane.f32.xlu0 %v509
  %v573 = vpop.xlane.xlu0 %572
  %574 = vadd.xlane.f32.xlu0 %v511
  %v575 = vpop.xlane.xlu0 %574
  %576 = vadd.xlane.f32.xlu0 %v513
  %v577 = vpop.xlane.xlu0 %576
  %578 = vadd.xlane.f32.xlu0 %v515
  %v579 = vpop.xlane.xlu0 %578
  %580 = vadd.xlane.f32.xlu0 %v517
  %v581 = vpop.xlane.xlu0 %580
  %582 = vadd.xlane.f32.xlu0 %v519
  %v583 = vpop.xlane.xlu0 %582
  %584 = vadd.xlane.f32.xlu0 %v521
  %v585 = vpop.xlane.xlu0 %584
  %586 = vadd.xlane.f32.xlu0 %v523
  %v587 = vpop.xlane.xlu0 %586
  %588 = vadd.xlane.f32.xlu0 %v525
  %v589 = vpop.xlane.xlu0 %588
  %590 = vadd.xlane.f32.xlu0 %v527
  %v591 = vpop.xlane.xlu0 %590
  %592 = vadd.xlane.f32.xlu0 %v529
  %v593 = vpop.xlane.xlu0 %592
  %594 = vadd.xlane.f32.xlu0 %v531
  %v595 = vpop.xlane.xlu0 %594
  %596 = vadd.xlane.f32.xlu0 %v533
  %v597 = vpop.xlane.xlu0 %596
  %598 = vadd.xlane.f32.xlu0 %v535
  %v599 = vpop.xlane.xlu0 %598
  %600 = vadd.xlane.f32.xlu0 %v537
  %v601 = vpop.xlane.xlu0 %600
  %602 = vadd.xlane.f32.xlu0 %v539
  %v603 = vpop.xlane.xlu0 %602
  %v604 = vadd.f32 %v556, %v573
  %v605 = vadd.f32 %v557, %v575
  %v606 = vadd.f32 %v558, %v577
  %v607 = vadd.f32 %v559, %v579
  %v608 = vadd.f32 %v560, %v581
  %v609 = vadd.f32 %v561, %v583
  %v610 = vadd.f32 %v562, %v585
  %v611 = vadd.f32 %v563, %v587
  %v612 = vadd.f32 %v564, %v589
  %v613 = vadd.f32 %v565, %v591
  %v614 = vadd.f32 %v566, %v593
  %v615 = vadd.f32 %v567, %v595
  %v616 = vadd.f32 %v568, %v597
  %v617 = vadd.f32 %v569, %v599
  %v618 = vadd.f32 %v570, %v601
  %v619 = vadd.f32 %v571, %v603
  %vm620 = vcmask 7168
  %621 = vst.msk [vmem:[#allocation3] sm:$0xff] %vm620, %v604
  %622 = vst.msk [vmem:[#allocation3 + $0x8] sm:$0xff] %vm620, %v605
  %623 = vst.msk [vmem:[#allocation3 + $0x10] sm:$0xff] %vm620, %v606
  %624 = vst.msk [vmem:[#allocation3 + $0x18] sm:$0xff] %vm620, %v607
  %625 = vst.msk [vmem:[#allocation3 + $0x20] sm:$0xff] %vm620, %v608
  %626 = vst.msk [vmem:[#allocation3 + $0x28] sm:$0xff] %vm620, %v609
  %627 = vst.msk [vmem:[#allocation3 + $0x30] sm:$0xff] %vm620, %v610
  %628 = vst.msk [vmem:[#allocation3 + $0x38] sm:$0xff] %vm620, %v611
  %629 = vst.msk [vmem:[#allocation3 + $0x40] sm:$0xff] %vm620, %v612
  %630 = vst.msk [vmem:[#allocation3 + $0x48] sm:$0xff] %vm620, %v613
  %631 = vst.msk [vmem:[#allocation3 + $0x50] sm:$0xff] %vm620, %v614
  %632 = vst.msk [vmem:[#allocation3 + $0x58] sm:$0xff] %vm620, %v615
  %633 = vst.msk [vmem:[#allocation3 + $0x60] sm:$0xff] %vm620, %v616
  %634 = vst.msk [vmem:[#allocation3 + $0x68] sm:$0xff] %vm620, %v617
  %635 = vst.msk [vmem:[#allocation3 + $0x70] sm:$0xff] %vm620, %v618
  %636 = vst.msk [vmem:[#allocation3 + $0x78] sm:$0xff] %vm620, %v619
  %v637 = vld [vmem:[#allocation4] sm:$0xff]
  %v638 = vld [vmem:[#allocation4 + $0x8] sm:$0xff]
  %v639 = vld [vmem:[#allocation4 + $0x10] sm:$0xff]
  %v640 = vld [vmem:[#allocation4 + $0x18] sm:$0xff]
  %v641 = vld [vmem:[#allocation4 + $0x20] sm:$0xff]
  %v642 = vld [vmem:[#allocation4 + $0x28] sm:$0xff]
  %v643 = vld [vmem:[#allocation4 + $0x30] sm:$0xff]
  %v644 = vld [vmem:[#allocation4 + $0x38] sm:$0xff]
  %v645 = vld [vmem:[#allocation4 + $0x40] sm:$0xff]
  %v646 = vld [vmem:[#allocation4 + $0x48] sm:$0xff]
  %v647 = vld [vmem:[#allocation4 + $0x50] sm:$0xff]
  %v648 = vld [vmem:[#allocation4 + $0x58] sm:$0xff]
  %v649 = vld [vmem:[#allocation4 + $0x60] sm:$0xff]
  %v650 = vld [vmem:[#allocation4 + $0x68] sm:$0xff]
  %v651 = vld [vmem:[#allocation4 + $0x70] sm:$0xff]
  %v652 = vld [vmem:[#allocation4 + $0x78] sm:$0xff]
  %654 = vset.pattern.permute.xlu0 0
  %655 = vperm.xlu0 %654, %v381
  %v656 = vpop.permute.xlu0 %655
  %659 = vset.pattern.permute.xlu0 0
  %660 = vperm.xlu0 %659, %v383
  %v661 = vpop.permute.xlu0 %660
  %664 = vset.pattern.permute.xlu0 0
  %665 = vperm.xlu0 %664, %v385
  %v666 = vpop.permute.xlu0 %665
  %669 = vset.pattern.permute.xlu0 0
  %670 = vperm.xlu0 %669, %v387
  %v671 = vpop.permute.xlu0 %670
  %674 = vset.pattern.permute.xlu0 0
  %675 = vperm.xlu0 %674, %v389
  %v676 = vpop.permute.xlu0 %675
  %679 = vset.pattern.permute.xlu0 0
  %680 = vperm.xlu0 %679, %v391
  %v681 = vpop.permute.xlu0 %680
  %684 = vset.pattern.permute.xlu0 0
  %685 = vperm.xlu0 %684, %v393
  %v686 = vpop.permute.xlu0 %685
  %689 = vset.pattern.permute.xlu0 0
  %690 = vperm.xlu0 %689, %v395
  %v691 = vpop.permute.xlu0 %690
  %694 = vset.pattern.permute.xlu0 0
  %695 = vperm.xlu0 %694, %v397
  %v696 = vpop.permute.xlu0 %695
  %699 = vset.pattern.permute.xlu0 0
  %700 = vperm.xlu0 %699, %v399
  %v701 = vpop.permute.xlu0 %700
  %704 = vset.pattern.permute.xlu0 0
  %705 = vperm.xlu0 %704, %v401
  %v706 = vpop.permute.xlu0 %705
  %709 = vset.pattern.permute.xlu0 0
  %710 = vperm.xlu0 %709, %v403
  %v711 = vpop.permute.xlu0 %710
  %714 = vset.pattern.permute.xlu0 0
  %715 = vperm.xlu0 %714, %v405
  %v716 = vpop.permute.xlu0 %715
  %719 = vset.pattern.permute.xlu0 0
  %720 = vperm.xlu0 %719, %v407
  %v721 = vpop.permute.xlu0 %720
  %724 = vset.pattern.permute.xlu0 0
  %725 = vperm.xlu0 %724, %v409
  %v726 = vpop.permute.xlu0 %725
  %729 = vset.pattern.permute.xlu0 0
  %730 = vperm.xlu0 %729, %v411
  %v731 = vpop.permute.xlu0 %730
  %v733 = vmul.f32 %v656, %v637
  %v734 = vmul.f32 %v661, %v638
  %v735 = vmul.f32 %v666, %v639
  %v736 = vmul.f32 %v671, %v640
  %v737 = vmul.f32 %v676, %v641
  %v738 = vmul.f32 %v681, %v642
  %v739 = vmul.f32 %v686, %v643
  %v740 = vmul.f32 %v691, %v644
  %v741 = vmul.f32 %v696, %v645
  %v742 = vmul.f32 %v701, %v646
  %v743 = vmul.f32 %v706, %v647
  %v744 = vmul.f32 %v711, %v648
  %v745 = vmul.f32 %v716, %v649
  %v746 = vmul.f32 %v721, %v650
  %v747 = vmul.f32 %v726, %v651
  %v748 = vmul.f32 %v731, %v652
  %v749 = vpack.c.bf16 %v511, %v509
  %v750 = vpack.c.bf16 %v515, %v513
  %v751 = vpack.c.bf16 %v519, %v517
  %v752 = vpack.c.bf16 %v523, %v521
  %v753 = vpack.c.bf16 %v527, %v525
  %v754 = vpack.c.bf16 %v531, %v529
  %v755 = vpack.c.bf16 %v535, %v533
  %v756 = vpack.c.bf16 %v539, %v537
  %v773 = vunpack.c.l.b16 %v123
  %v774 = vunpack.c.l.b16 %v124
  %v775 = vunpack.c.l.b16 %v125
  %v776 = vunpack.c.l.b16 %v126
  %v777 = vunpack.c.l.b16 %v127
  %v778 = vunpack.c.l.b16 %v128
  %v779 = vunpack.c.l.b16 %v129
  %v780 = vunpack.c.l.b16 %v130
  %v781 = vunpack.c.l.b16 %v131
  %v782 = vunpack.c.l.b16 %v132
  %v783 = vunpack.c.l.b16 %v133
  %v784 = vunpack.c.l.b16 %v134
  %v785 = vunpack.c.l.b16 %v135
  %v786 = vunpack.c.l.b16 %v136
  %v787 = vunpack.c.l.b16 %v137
  %v788 = vunpack.c.l.b16 %v138
  %v789 = vpack.c.b16 %v774, %v773
  %v790 = vpack.c.b16 %v776, %v775
  %v791 = vpack.c.b16 %v778, %v777
  %v792 = vpack.c.b16 %v780, %v779
  %v793 = vpack.c.b16 %v782, %v781
  %v794 = vpack.c.b16 %v784, %v783
  %v795 = vpack.c.b16 %v786, %v785
  %v796 = vpack.c.b16 %v788, %v787
  %805 = vmatpush.bf16.msra.mxu0 %v796
  %806 = vmatpush.bf16.msra.mxu0 %v795
  %807 = vmatpush.bf16.msra.mxu0 %v794
  %808 = vmatpush.bf16.msra.mxu0 %v793
  %809 = vmatpush.bf16.msra.mxu0 %v792
  %810 = vmatpush.bf16.msra.mxu0 %v791
  %811 = vmatpush.bf16.msra.mxu0 %v790
  %812 = vmatpush.bf16.msra.mxu0 %v789
  %813 = vmatmul.bf16.gmra.mxu0 %v749
  %v814 = vpop.f32.mrf.mxu0
  %v815 = vadd.f32 0.0, %v814
  %v816 = vpop.f32.mrf.mxu0
  %v817 = vadd.f32 0.0, %v816
  %818 = vmatmul.bf16.gmra.mxu0 %v750
  %v819 = vpop.f32.mrf.mxu0
  %v820 = vadd.f32 0.0, %v819
  %v821 = vpop.f32.mrf.mxu0
  %v822 = vadd.f32 0.0, %v821
  %823 = vmatmul.bf16.gmra.mxu0 %v751
  %v824 = vpop.f32.mrf.mxu0
  %v825 = vadd.f32 0.0, %v824
  %v826 = vpop.f32.mrf.mxu0
  %v827 = vadd.f32 0.0, %v826
  %828 = vmatmul.bf16.gmra.mxu0 %v752
  %v829 = vpop.f32.mrf.mxu0
  %v830 = vadd.f32 0.0, %v829
  %v831 = vpop.f32.mrf.mxu0
  %v832 = vadd.f32 0.0, %v831
  %833 = vmatmul.bf16.gmra.mxu0 %v753
  %v834 = vpop.f32.mrf.mxu0
  %v835 = vadd.f32 0.0, %v834
  %v836 = vpop.f32.mrf.mxu0
  %v837 = vadd.f32 0.0, %v836
  %838 = vmatmul.bf16.gmra.mxu0 %v754
  %v839 = vpop.f32.mrf.mxu0
  %v840 = vadd.f32 0.0, %v839
  %v841 = vpop.f32.mrf.mxu0
  %v842 = vadd.f32 0.0, %v841
  %843 = vmatmul.bf16.gmra.mxu0 %v755
  %v844 = vpop.f32.mrf.mxu0
  %v845 = vadd.f32 0.0, %v844
  %v846 = vpop.f32.mrf.mxu0
  %v847 = vadd.f32 0.0, %v846
  %848 = vmatmul.bf16.gmra.mxu0 %v756
  %v849 = vpop.f32.mrf.mxu0
  %v850 = vadd.f32 0.0, %v849
  %v851 = vpop.f32.mrf.mxu0
  %v852 = vadd.f32 0.0, %v851
  %853 = vdwg.mxu0
  %v854 = vadd.f32 %v733, %v815
  %v855 = vadd.f32 %v734, %v817
  %v856 = vadd.f32 %v735, %v820
  %v857 = vadd.f32 %v736, %v822
  %v858 = vadd.f32 %v737, %v825
  %v859 = vadd.f32 %v738, %v827
  %v860 = vadd.f32 %v739, %v830
  %v861 = vadd.f32 %v740, %v832
  %v862 = vadd.f32 %v741, %v835
  %v863 = vadd.f32 %v742, %v837
  %v864 = vadd.f32 %v743, %v840
  %v865 = vadd.f32 %v744, %v842
  %v866 = vadd.f32 %v745, %v845
  %v867 = vadd.f32 %v746, %v847
  %v868 = vadd.f32 %v747, %v850
  %v869 = vadd.f32 %v748, %v852
  %vm870 = vcmask 31744
  %871 = vst.msk [vmem:[#allocation4] sm:$0xff] %vm870, %v854
  %872 = vst.msk [vmem:[#allocation4 + $0x8] sm:$0xff] %vm870, %v855
  %873 = vst.msk [vmem:[#allocation4 + $0x10] sm:$0xff] %vm870, %v856
  %874 = vst.msk [vmem:[#allocation4 + $0x18] sm:$0xff] %vm870, %v857
  %875 = vst.msk [vmem:[#allocation4 + $0x20] sm:$0xff] %vm870, %v858
  %876 = vst.msk [vmem:[#allocation4 + $0x28] sm:$0xff] %vm870, %v859
  %877 = vst.msk [vmem:[#allocation4 + $0x30] sm:$0xff] %vm870, %v860
  %878 = vst.msk [vmem:[#allocation4 + $0x38] sm:$0xff] %vm870, %v861
  %879 = vst.msk [vmem:[#allocation4 + $0x40] sm:$0xff] %vm870, %v862
  %880 = vst.msk [vmem:[#allocation4 + $0x48] sm:$0xff] %vm870, %v863
  %881 = vst.msk [vmem:[#allocation4 + $0x50] sm:$0xff] %vm870, %v864
  %882 = vst.msk [vmem:[#allocation4 + $0x58] sm:$0xff] %vm870, %v865
  %883 = vst.msk [vmem:[#allocation4 + $0x60] sm:$0xff] %vm870, %v866
  %884 = vst.msk [vmem:[#allocation4 + $0x68] sm:$0xff] %vm870, %v867
  %885 = vst.msk [vmem:[#allocation4 + $0x70] sm:$0xff] %vm870, %v868
  %886 = vst.msk [vmem:[#allocation4 + $0x78] sm:$0xff] %vm870, %v869
  %887 = vst.msk [vmem:[#allocation2] sm:$0xff] %vm620, %v348
  %888 = vst.msk [vmem:[#allocation2 + $0x8] sm:$0xff] %vm620, %v349
  %889 = vst.msk [vmem:[#allocation2 + $0x10] sm:$0xff] %vm620, %v350
  %890 = vst.msk [vmem:[#allocation2 + $0x18] sm:$0xff] %vm620, %v351
  %891 = vst.msk [vmem:[#allocation2 + $0x20] sm:$0xff] %vm620, %v352
  %892 = vst.msk [vmem:[#allocation2 + $0x28] sm:$0xff] %vm620, %v353
  %893 = vst.msk [vmem:[#allocation2 + $0x30] sm:$0xff] %vm620, %v354
  %894 = vst.msk [vmem:[#allocation2 + $0x38] sm:$0xff] %vm620, %v355
  %895 = vst.msk [vmem:[#allocation2 + $0x40] sm:$0xff] %vm620, %v356
  %896 = vst.msk [vmem:[#allocation2 + $0x48] sm:$0xff] %vm620, %v357
  %897 = vst.msk [vmem:[#allocation2 + $0x50] sm:$0xff] %vm620, %v358
  %898 = vst.msk [vmem:[#allocation2 + $0x58] sm:$0xff] %vm620, %v359
  %899 = vst.msk [vmem:[#allocation2 + $0x60] sm:$0xff] %vm620, %v360
  %900 = vst.msk [vmem:[#allocation2 + $0x68] sm:$0xff] %vm620, %v361
  %901 = vst.msk [vmem:[#allocation2 + $0x70] sm:$0xff] %vm620, %v362
  %902 = vst.msk [vmem:[#allocation2 + $0x78] sm:$0xff] %vm620, %v363
  %903 = vset.pattern.permute.xlu0 1
  %904 = vperm.xlu0 %903, %v74
  %v905 = vpop.permute.xlu0 %904
  %907 = vset.pattern.permute.xlu0 1
  %908 = vperm.xlu0 %907, %v75
  %v909 = vpop.permute.xlu0 %908
  %911 = vset.pattern.permute.xlu0 1
  %912 = vperm.xlu0 %911, %v76
  %v913 = vpop.permute.xlu0 %912
  %915 = vset.pattern.permute.xlu0 1
  %916 = vperm.xlu0 %915, %v77
  %v917 = vpop.permute.xlu0 %916
  %919 = vset.pattern.permute.xlu0 1
  %920 = vperm.xlu0 %919, %v78
  %v921 = vpop.permute.xlu0 %920
  %923 = vset.pattern.permute.xlu0 1
  %924 = vperm.xlu0 %923, %v79
  %v925 = vpop.permute.xlu0 %924
  %927 = vset.pattern.permute.xlu0 1
  %928 = vperm.xlu0 %927, %v80
  %v929 = vpop.permute.xlu0 %928
  %931 = vset.pattern.permute.xlu0 1
  %932 = vperm.xlu0 %931, %v81
  %v933 = vpop.permute.xlu0 %932
  %935 = vset.pattern.permute.xlu0 1
  %936 = vperm.xlu0 %935, %v82
  %v937 = vpop.permute.xlu0 %936
  %939 = vset.pattern.permute.xlu0 1
  %940 = vperm.xlu0 %939, %v83
  %v941 = vpop.permute.xlu0 %940
  %943 = vset.pattern.permute.xlu0 1
  %944 = vperm.xlu0 %943, %v84
  %v945 = vpop.permute.xlu0 %944
  %947 = vset.pattern.permute.xlu0 1
  %948 = vperm.xlu0 %947, %v85
  %v949 = vpop.permute.xlu0 %948
  %951 = vset.pattern.permute.xlu0 1
  %952 = vperm.xlu0 %951, %v86
  %v953 = vpop.permute.xlu0 %952
  %955 = vset.pattern.permute.xlu0 1
  %956 = vperm.xlu0 %955, %v87
  %v957 = vpop.permute.xlu0 %956
  %959 = vset.pattern.permute.xlu0 1
  %960 = vperm.xlu0 %959, %v88
  %v961 = vpop.permute.xlu0 %960
  %963 = vset.pattern.permute.xlu0 1
  %964 = vperm.xlu0 %963, %v89
  %v965 = vpop.permute.xlu0 %964
  %v967 = vperm.slane %v90, 1
  %v968 = vadd.f32 %v905, %v967
  %v969 = vadd.f32 %v909, %v967
  %v970 = vadd.f32 %v913, %v967
  %v971 = vadd.f32 %v917, %v967
  %v972 = vadd.f32 %v921, %v967
  %v973 = vadd.f32 %v925, %v967
  %v974 = vadd.f32 %v929, %v967
  %v975 = vadd.f32 %v933, %v967
  %v976 = vadd.f32 %v937, %v967
  %v977 = vadd.f32 %v941, %v967
  %v978 = vadd.f32 %v945, %v967
  %v979 = vadd.f32 %v949, %v967
  %v980 = vadd.f32 %v953, %v967
  %v981 = vadd.f32 %v957, %v967
  %v982 = vadd.f32 %v961, %v967
  %v983 = vadd.f32 %v965, %v967
  %vm984 = vcmp.gt.f32.partialorder %v968, 0.0
  %vm985 = vcmp.gt.f32.partialorder %v969, 0.0
  %vm986 = vcmp.gt.f32.partialorder %v970, 0.0
  %vm987 = vcmp.gt.f32.partialorder %v971, 0.0
  %vm988 = vcmp.gt.f32.partialorder %v972, 0.0
  %vm989 = vcmp.gt.f32.partialorder %v973, 0.0
  %vm990 = vcmp.gt.f32.partialorder %v974, 0.0
  %vm991 = vcmp.gt.f32.partialorder %v975, 0.0
  %vm992 = vcmp.gt.f32.partialorder %v976, 0.0
  %vm993 = vcmp.gt.f32.partialorder %v977, 0.0
  %vm994 = vcmp.gt.f32.partialorder %v978, 0.0
  %vm995 = vcmp.gt.f32.partialorder %v979, 0.0
  %vm996 = vcmp.gt.f32.partialorder %v980, 0.0
  %vm997 = vcmp.gt.f32.partialorder %v981, 0.0
  %vm998 = vcmp.gt.f32.partialorder %v982, 0.0
  %vm999 = vcmp.gt.f32.partialorder %v983, 0.0
  %v1000 = vmul.f32 %v968, 0.2
  %v1001 = vmul.f32 %v969, 0.2
  %v1002 = vmul.f32 %v970, 0.2
  %v1003 = vmul.f32 %v971, 0.2
  %v1004 = vmul.f32 %v972, 0.2
  %v1005 = vmul.f32 %v973, 0.2
  %v1006 = vmul.f32 %v974, 0.2
  %v1007 = vmul.f32 %v975, 0.2
  %v1008 = vmul.f32 %v976, 0.2
  %v1009 = vmul.f32 %v977, 0.2
  %v1010 = vmul.f32 %v978, 0.2
  %v1011 = vmul.f32 %v979, 0.2
  %v1012 = vmul.f32 %v980, 0.2
  %v1013 = vmul.f32 %v981, 0.2
  %v1014 = vmul.f32 %v982, 0.2
  %v1015 = vmul.f32 %v983, 0.2
  %v1016 = vsel %vm984, %v968, %v1000
  %v1017 = vsel %vm985, %v969, %v1001
  %v1018 = vsel %vm986, %v970, %v1002
  %v1019 = vsel %vm987, %v971, %v1003
  %v1020 = vsel %vm988, %v972, %v1004
  %v1021 = vsel %vm989, %v973, %v1005
  %v1022 = vsel %vm990, %v974, %v1006
  %v1023 = vsel %vm991, %v975, %v1007
  %v1024 = vsel %vm992, %v976, %v1008
  %v1025 = vsel %vm993, %v977, %v1009
  %v1026 = vsel %vm994, %v978, %v1010
  %v1027 = vsel %vm995, %v979, %v1011
  %v1028 = vsel %vm996, %v980, %v1012
  %v1029 = vsel %vm997, %v981, %v1013
  %v1030 = vsel %vm998, %v982, %v1014
  %v1031 = vsel %vm999, %v983, %v1015
  %v1032 = vadd.f32 %v1016, %v107
  %v1033 = vadd.f32 %v1017, %v108
  %v1034 = vadd.f32 %v1018, %v109
  %v1035 = vadd.f32 %v1019, %v110
  %v1036 = vadd.f32 %v1020, %v111
  %v1037 = vadd.f32 %v1021, %v112
  %v1038 = vadd.f32 %v1022, %v113
  %v1039 = vadd.f32 %v1023, %v114
  %v1040 = vadd.f32 %v1024, %v115
  %v1041 = vadd.f32 %v1025, %v116
  %v1042 = vadd.f32 %v1026, %v117
  %v1043 = vadd.f32 %v1027, %v118
  %v1044 = vadd.f32 %v1028, %v119
  %v1045 = vadd.f32 %v1029, %v120
  %v1046 = vadd.f32 %v1030, %v121
  %v1047 = vadd.f32 %v1031, %v122
  %v1048 = vld [vmem:[#allocation2] sm:$0xff]
  %v1049 = vld [vmem:[#allocation2 + $0x8] sm:$0xff]
  %v1050 = vld [vmem:[#allocation2 + $0x10] sm:$0xff]
  %v1051 = vld [vmem:[#allocation2 + $0x18] sm:$0xff]
  %v1052 = vld [vmem:[#allocation2 + $0x20] sm:$0xff]
  %v1053 = vld [vmem:[#allocation2 + $0x28] sm:$0xff]
  %v1054 = vld [vmem:[#allocation2 + $0x30] sm:$0xff]
  %v1055 = vld [vmem:[#allocation2 + $0x38] sm:$0xff]
  %v1056 = vld [vmem:[#allocation2 + $0x40] sm:$0xff]
  %v1057 = vld [vmem:[#allocation2 + $0x48] sm:$0xff]
  %v1058 = vld [vmem:[#allocation2 + $0x50] sm:$0xff]
  %v1059 = vld [vmem:[#allocation2 + $0x58] sm:$0xff]
  %v1060 = vld [vmem:[#allocation2 + $0x60] sm:$0xff]
  %v1061 = vld [vmem:[#allocation2 + $0x68] sm:$0xff]
  %v1062 = vld [vmem:[#allocation2 + $0x70] sm:$0xff]
  %v1063 = vld [vmem:[#allocation2 + $0x78] sm:$0xff]
  %1064 = vmax.xlane.f32.xlu0 %v1032
  %v1065 = vpop.xlane.xlu0 %1064
  %1066 = vmax.xlane.f32.xlu0 %v1033
  %v1067 = vpop.xlane.xlu0 %1066
  %1068 = vmax.xlane.f32.xlu0 %v1034
  %v1069 = vpop.xlane.xlu0 %1068
  %1070 = vmax.xlane.f32.xlu0 %v1035
  %v1071 = vpop.xlane.xlu0 %1070
  %1072 = vmax.xlane.f32.xlu0 %v1036
  %v1073 = vpop.xlane.xlu0 %1072
  %1074 = vmax.xlane.f32.xlu0 %v1037
  %v1075 = vpop.xlane.xlu0 %1074
  %1076 = vmax.xlane.f32.xlu0 %v1038
  %v1077 = vpop.xlane.xlu0 %1076
  %1078 = vmax.xlane.f32.xlu0 %v1039
  %v1079 = vpop.xlane.xlu0 %1078
  %1080 = vmax.xlane.f32.xlu0 %v1040
  %v1081 = vpop.xlane.xlu0 %1080
  %1082 = vmax.xlane.f32.xlu0 %v1041
  %v1083 = vpop.xlane.xlu0 %1082
  %1084 = vmax.xlane.f32.xlu0 %v1042
  %v1085 = vpop.xlane.xlu0 %1084
  %1086 = vmax.xlane.f32.xlu0 %v1043
  %v1087 = vpop.xlane.xlu0 %1086
  %1088 = vmax.xlane.f32.xlu0 %v1044
  %v1089 = vpop.xlane.xlu0 %1088
  %1090 = vmax.xlane.f32.xlu0 %v1045
  %v1091 = vpop.xlane.xlu0 %1090
  %1092 = vmax.xlane.f32.xlu0 %v1046
  %v1093 = vpop.xlane.xlu0 %1092
  %1094 = vmax.xlane.f32.xlu0 %v1047
  %v1095 = vpop.xlane.xlu0 %1094
  %v1096 = vmax.f32 %v1048, %v1065
  %v1097 = vmax.f32 %v1049, %v1067
  %v1098 = vmax.f32 %v1050, %v1069
  %v1099 = vmax.f32 %v1051, %v1071
  %v1100 = vmax.f32 %v1052, %v1073
  %v1101 = vmax.f32 %v1053, %v1075
  %v1102 = vmax.f32 %v1054, %v1077
  %v1103 = vmax.f32 %v1055, %v1079
  %v1104 = vmax.f32 %v1056, %v1081
  %v1105 = vmax.f32 %v1057, %v1083
  %v1106 = vmax.f32 %v1058, %v1085
  %v1107 = vmax.f32 %v1059, %v1087
  %v1108 = vmax.f32 %v1060, %v1089
  %v1109 = vmax.f32 %v1061, %v1091
  %v1110 = vmax.f32 %v1062, %v1093
  %v1111 = vmax.f32 %v1063, %v1095
  %v1112 = vsub.f32 %v1048, %v1096
  %v1113 = vsub.f32 %v1049, %v1097
  %v1114 = vsub.f32 %v1050, %v1098
  %v1115 = vsub.f32 %v1051, %v1099
  %v1116 = vsub.f32 %v1052, %v1100
  %v1117 = vsub.f32 %v1053, %v1101
  %v1118 = vsub.f32 %v1054, %v1102
  %v1119 = vsub.f32 %v1055, %v1103
  %v1120 = vsub.f32 %v1056, %v1104
  %v1121 = vsub.f32 %v1057, %v1105
  %v1122 = vsub.f32 %v1058, %v1106
  %v1123 = vsub.f32 %v1059, %v1107
  %v1124 = vsub.f32 %v1060, %v1108
  %v1125 = vsub.f32 %v1061, %v1109
  %v1126 = vsub.f32 %v1062, %v1110
  %v1127 = vsub.f32 %v1063, %v1111
  %v1128 = vmul.f32 %v1112, 1.442695
  %v1129 = vpow.pop %v1128
  %v1130 = vmul.f32 %v1113, 1.442695
  %v1131 = vpow.pop %v1130
  %v1132 = vmul.f32 %v1114, 1.442695
  %v1133 = vpow.pop %v1132
  %v1134 = vmul.f32 %v1115, 1.442695
  %v1135 = vpow.pop %v1134
  %v1136 = vmul.f32 %v1116, 1.442695
  %v1137 = vpow.pop %v1136
  %v1138 = vmul.f32 %v1117, 1.442695
  %v1139 = vpow.pop %v1138
  %v1140 = vmul.f32 %v1118, 1.442695
  %v1141 = vpow.pop %v1140
  %v1142 = vmul.f32 %v1119, 1.442695
  %v1143 = vpow.pop %v1142
  %v1144 = vmul.f32 %v1120, 1.442695
  %v1145 = vpow.pop %v1144
  %v1146 = vmul.f32 %v1121, 1.442695
  %v1147 = vpow.pop %v1146
  %v1148 = vmul.f32 %v1122, 1.442695
  %v1149 = vpow.pop %v1148
  %v1150 = vmul.f32 %v1123, 1.442695
  %v1151 = vpow.pop %v1150
  %v1152 = vmul.f32 %v1124, 1.442695
  %v1153 = vpow.pop %v1152
  %v1154 = vmul.f32 %v1125, 1.442695
  %v1155 = vpow.pop %v1154
  %v1156 = vmul.f32 %v1126, 1.442695
  %v1157 = vpow.pop %v1156
  %v1158 = vmul.f32 %v1127, 1.442695
  %v1159 = vpow.pop %v1158
  %1161 = vset.pattern.permute.xlu0 1
  %1162 = vperm.xlu0 %1161, %v1096
  %v1163 = vpop.permute.xlu0 %1162
  %1166 = vset.pattern.permute.xlu0 1
  %1167 = vperm.xlu0 %1166, %v1097
  %v1168 = vpop.permute.xlu0 %1167
  %1171 = vset.pattern.permute.xlu0 1
  %1172 = vperm.xlu0 %1171, %v1098
  %v1173 = vpop.permute.xlu0 %1172
  %1176 = vset.pattern.permute.xlu0 1
  %1177 = vperm.xlu0 %1176, %v1099
  %v1178 = vpop.permute.xlu0 %1177
  %1181 = vset.pattern.permute.xlu0 1
  %1182 = vperm.xlu0 %1181, %v1100
  %v1183 = vpop.permute.xlu0 %1182
  %1186 = vset.pattern.permute.xlu0 1
  %1187 = vperm.xlu0 %1186, %v1101
  %v1188 = vpop.permute.xlu0 %1187
  %1191 = vset.pattern.permute.xlu0 1
  %1192 = vperm.xlu0 %1191, %v1102
  %v1193 = vpop.permute.xlu0 %1192
  %1196 = vset.pattern.permute.xlu0 1
  %1197 = vperm.xlu0 %1196, %v1103
  %v1198 = vpop.permute.xlu0 %1197
  %1201 = vset.pattern.permute.xlu0 1
  %1202 = vperm.xlu0 %1201, %v1104
  %v1203 = vpop.permute.xlu0 %1202
  %1206 = vset.pattern.permute.xlu0 1
  %1207 = vperm.xlu0 %1206, %v1105
  %v1208 = vpop.permute.xlu0 %1207
  %1211 = vset.pattern.permute.xlu0 1
  %1212 = vperm.xlu0 %1211, %v1106
  %v1213 = vpop.permute.xlu0 %1212
  %1216 = vset.pattern.permute.xlu0 1
  %1217 = vperm.xlu0 %1216, %v1107
  %v1218 = vpop.permute.xlu0 %1217
  %1221 = vset.pattern.permute.xlu0 1
  %1222 = vperm.xlu0 %1221, %v1108
  %v1223 = vpop.permute.xlu0 %1222
  %1226 = vset.pattern.permute.xlu0 1
  %1227 = vperm.xlu0 %1226, %v1109
  %v1228 = vpop.permute.xlu0 %1227
  %1231 = vset.pattern.permute.xlu0 1
  %1232 = vperm.xlu0 %1231, %v1110
  %v1233 = vpop.permute.xlu0 %1232
  %1236 = vset.pattern.permute.xlu0 1
  %1237 = vperm.xlu0 %1236, %v1111
  %v1238 = vpop.permute.xlu0 %1237
  %v1240 = vsub.f32 %v1032, %v1163
  %v1241 = vsub.f32 %v1033, %v1168
  %v1242 = vsub.f32 %v1034, %v1173
  %v1243 = vsub.f32 %v1035, %v1178
  %v1244 = vsub.f32 %v1036, %v1183
  %v1245 = vsub.f32 %v1037, %v1188
  %v1246 = vsub.f32 %v1038, %v1193
  %v1247 = vsub.f32 %v1039, %v1198
  %v1248 = vsub.f32 %v1040, %v1203
  %v1249 = vsub.f32 %v1041, %v1208
  %v1250 = vsub.f32 %v1042, %v1213
  %v1251 = vsub.f32 %v1043, %v1218
  %v1252 = vsub.f32 %v1044, %v1223
  %v1253 = vsub.f32 %v1045, %v1228
  %v1254 = vsub.f32 %v1046, %v1233
  %v1255 = vsub.f32 %v1047, %v1238
  %v1256 = vmul.f32 %v1240, 1.442695
  %v1257 = vpow.pop %v1256
  %v1258 = vmul.f32 %v1241, 1.442695
  %v1259 = vpow.pop %v1258
  %v1260 = vmul.f32 %v1242, 1.442695
  %v1261 = vpow.pop %v1260
  %v1262 = vmul.f32 %v1243, 1.442695
  %v1263 = vpow.pop %v1262
  %v1264 = vmul.f32 %v1244, 1.442695
  %v1265 = vpow.pop %v1264
  %v1266 = vmul.f32 %v1245, 1.442695
  %v1267 = vpow.pop %v1266
  %v1268 = vmul.f32 %v1246, 1.442695
  %v1269 = vpow.pop %v1268
  %v1270 = vmul.f32 %v1247, 1.442695
  %v1271 = vpow.pop %v1270
  %v1272 = vmul.f32 %v1248, 1.442695
  %v1273 = vpow.pop %v1272
  %v1274 = vmul.f32 %v1249, 1.442695
  %v1275 = vpow.pop %v1274
  %v1276 = vmul.f32 %v1250, 1.442695
  %v1277 = vpow.pop %v1276
  %v1278 = vmul.f32 %v1251, 1.442695
  %v1279 = vpow.pop %v1278
  %v1280 = vmul.f32 %v1252, 1.442695
  %v1281 = vpow.pop %v1280
  %v1282 = vmul.f32 %v1253, 1.442695
  %v1283 = vpow.pop %v1282
  %v1284 = vmul.f32 %v1254, 1.442695
  %v1285 = vpow.pop %v1284
  %v1286 = vmul.f32 %v1255, 1.442695
  %v1287 = vpow.pop %v1286
  %v1288 = vld [vmem:[#allocation3] sm:$0xff]
  %v1289 = vld [vmem:[#allocation3 + $0x8] sm:$0xff]
  %v1290 = vld [vmem:[#allocation3 + $0x10] sm:$0xff]
  %v1291 = vld [vmem:[#allocation3 + $0x18] sm:$0xff]
  %v1292 = vld [vmem:[#allocation3 + $0x20] sm:$0xff]
  %v1293 = vld [vmem:[#allocation3 + $0x28] sm:$0xff]
  %v1294 = vld [vmem:[#allocation3 + $0x30] sm:$0xff]
  %v1295 = vld [vmem:[#allocation3 + $0x38] sm:$0xff]
  %v1296 = vld [vmem:[#allocation3 + $0x40] sm:$0xff]
  %v1297 = vld [vmem:[#allocation3 + $0x48] sm:$0xff]
  %v1298 = vld [vmem:[#allocation3 + $0x50] sm:$0xff]
  %v1299 = vld [vmem:[#allocation3 + $0x58] sm:$0xff]
  %v1300 = vld [vmem:[#allocation3 + $0x60] sm:$0xff]
  %v1301 = vld [vmem:[#allocation3 + $0x68] sm:$0xff]
  %v1302 = vld [vmem:[#allocation3 + $0x70] sm:$0xff]
  %v1303 = vld [vmem:[#allocation3 + $0x78] sm:$0xff]
  %v1304 = vmul.f32 %v1129, %v1288
  %v1305 = vmul.f32 %v1131, %v1289
  %v1306 = vmul.f32 %v1133, %v1290
  %v1307 = vmul.f32 %v1135, %v1291
  %v1308 = vmul.f32 %v1137, %v1292
  %v1309 = vmul.f32 %v1139, %v1293
  %v1310 = vmul.f32 %v1141, %v1294
  %v1311 = vmul.f32 %v1143, %v1295
  %v1312 = vmul.f32 %v1145, %v1296
  %v1313 = vmul.f32 %v1147, %v1297
  %v1314 = vmul.f32 %v1149, %v1298
  %v1315 = vmul.f32 %v1151, %v1299
  %v1316 = vmul.f32 %v1153, %v1300
  %v1317 = vmul.f32 %v1155, %v1301
  %v1318 = vmul.f32 %v1157, %v1302
  %v1319 = vmul.f32 %v1159, %v1303
  %1320 = vadd.xlane.f32.xlu0 %v1257
  %v1321 = vpop.xlane.xlu0 %1320
  %1322 = vadd.xlane.f32.xlu0 %v1259
  %v1323 = vpop.xlane.xlu0 %1322
  %1324 = vadd.xlane.f32.xlu0 %v1261
  %v1325 = vpop.xlane.xlu0 %1324
  %1326 = vadd.xlane.f32.xlu0 %v1263
  %v1327 = vpop.xlane.xlu0 %1326
  %1328 = vadd.xlane.f32.xlu0 %v1265
  %v1329 = vpop.xlane.xlu0 %1328
  %1330 = vadd.xlane.f32.xlu0 %v1267
  %v1331 = vpop.xlane.xlu0 %1330
  %1332 = vadd.xlane.f32.xlu0 %v1269
  %v1333 = vpop.xlane.xlu0 %1332
  %1334 = vadd.xlane.f32.xlu0 %v1271
  %v1335 = vpop.xlane.xlu0 %1334
  %1336 = vadd.xlane.f32.xlu0 %v1273
  %v1337 = vpop.xlane.xlu0 %1336
  %1338 = vadd.xlane.f32.xlu0 %v1275
  %v1339 = vpop.xlane.xlu0 %1338
  %1340 = vadd.xlane.f32.xlu0 %v1277
  %v1341 = vpop.xlane.xlu0 %1340
  %1342 = vadd.xlane.f32.xlu0 %v1279
  %v1343 = vpop.xlane.xlu0 %1342
  %1344 = vadd.xlane.f32.xlu0 %v1281
  %v1345 = vpop.xlane.xlu0 %1344
  %1346 = vadd.xlane.f32.xlu0 %v1283
  %v1347 = vpop.xlane.xlu0 %1346
  %1348 = vadd.xlane.f32.xlu0 %v1285
  %v1349 = vpop.xlane.xlu0 %1348
  %1350 = vadd.xlane.f32.xlu0 %v1287
  %v1351 = vpop.xlane.xlu0 %1350
  %v1352 = vadd.f32 %v1304, %v1321
  %v1353 = vadd.f32 %v1305, %v1323
  %v1354 = vadd.f32 %v1306, %v1325
  %v1355 = vadd.f32 %v1307, %v1327
  %v1356 = vadd.f32 %v1308, %v1329
  %v1357 = vadd.f32 %v1309, %v1331
  %v1358 = vadd.f32 %v1310, %v1333
  %v1359 = vadd.f32 %v1311, %v1335
  %v1360 = vadd.f32 %v1312, %v1337
  %v1361 = vadd.f32 %v1313, %v1339
  %v1362 = vadd.f32 %v1314, %v1341
  %v1363 = vadd.f32 %v1315, %v1343
  %v1364 = vadd.f32 %v1316, %v1345
  %v1365 = vadd.f32 %v1317, %v1347
  %v1366 = vadd.f32 %v1318, %v1349
  %v1367 = vadd.f32 %v1319, %v1351
  %vm1368 = vcmask 15368
  %1369 = vst.msk [vmem:[#allocation3] sm:$0xff] %vm1368, %v1352
  %1370 = vst.msk [vmem:[#allocation3 + $0x8] sm:$0xff] %vm1368, %v1353
  %1371 = vst.msk [vmem:[#allocation3 + $0x10] sm:$0xff] %vm1368, %v1354
  %1372 = vst.msk [vmem:[#allocation3 + $0x18] sm:$0xff] %vm1368, %v1355
  %1373 = vst.msk [vmem:[#allocation3 + $0x20] sm:$0xff] %vm1368, %v1356
  %1374 = vst.msk [vmem:[#allocation3 + $0x28] sm:$0xff] %vm1368, %v1357
  %1375 = vst.msk [vmem:[#allocation3 + $0x30] sm:$0xff] %vm1368, %v1358
  %1376 = vst.msk [vmem:[#allocation3 + $0x38] sm:$0xff] %vm1368, %v1359
  %1377 = vst.msk [vmem:[#allocation3 + $0x40] sm:$0xff] %vm1368, %v1360
  %1378 = vst.msk [vmem:[#allocation3 + $0x48] sm:$0xff] %vm1368, %v1361
  %1379 = vst.msk [vmem:[#allocation3 + $0x50] sm:$0xff] %vm1368, %v1362
  %1380 = vst.msk [vmem:[#allocation3 + $0x58] sm:$0xff] %vm1368, %v1363
  %1381 = vst.msk [vmem:[#allocation3 + $0x60] sm:$0xff] %vm1368, %v1364
  %1382 = vst.msk [vmem:[#allocation3 + $0x68] sm:$0xff] %vm1368, %v1365
  %1383 = vst.msk [vmem:[#allocation3 + $0x70] sm:$0xff] %vm1368, %v1366
  %1384 = vst.msk [vmem:[#allocation3 + $0x78] sm:$0xff] %vm1368, %v1367
  %v1385 = vld [vmem:[#allocation4] sm:$0xff]
  %v1386 = vld [vmem:[#allocation4 + $0x8] sm:$0xff]
  %v1387 = vld [vmem:[#allocation4 + $0x10] sm:$0xff]
  %v1388 = vld [vmem:[#allocation4 + $0x18] sm:$0xff]
  %v1389 = vld [vmem:[#allocation4 + $0x20] sm:$0xff]
  %v1390 = vld [vmem:[#allocation4 + $0x28] sm:$0xff]
  %v1391 = vld [vmem:[#allocation4 + $0x30] sm:$0xff]
  %v1392 = vld [vmem:[#allocation4 + $0x38] sm:$0xff]
  %v1393 = vld [vmem:[#allocation4 + $0x40] sm:$0xff]
  %v1394 = vld [vmem:[#allocation4 + $0x48] sm:$0xff]
  %v1395 = vld [vmem:[#allocation4 + $0x50] sm:$0xff]
  %v1396 = vld [vmem:[#allocation4 + $0x58] sm:$0xff]
  %v1397 = vld [vmem:[#allocation4 + $0x60] sm:$0xff]
  %v1398 = vld [vmem:[#allocation4 + $0x68] sm:$0xff]
  %v1399 = vld [vmem:[#allocation4 + $0x70] sm:$0xff]
  %v1400 = vld [vmem:[#allocation4 + $0x78] sm:$0xff]
  %1402 = vset.pattern.permute.xlu0 1
  %1403 = vperm.xlu0 %1402, %v1129
  %v1404 = vpop.permute.xlu0 %1403
  %1407 = vset.pattern.permute.xlu0 1
  %1408 = vperm.xlu0 %1407, %v1131
  %v1409 = vpop.permute.xlu0 %1408
  %1412 = vset.pattern.permute.xlu0 1
  %1413 = vperm.xlu0 %1412, %v1133
  %v1414 = vpop.permute.xlu0 %1413
  %1417 = vset.pattern.permute.xlu0 1
  %1418 = vperm.xlu0 %1417, %v1135
  %v1419 = vpop.permute.xlu0 %1418
  %1422 = vset.pattern.permute.xlu0 1
  %1423 = vperm.xlu0 %1422, %v1137
  %v1424 = vpop.permute.xlu0 %1423
  %1427 = vset.pattern.permute.xlu0 1
  %1428 = vperm.xlu0 %1427, %v1139
  %v1429 = vpop.permute.xlu0 %1428
  %1432 = vset.pattern.permute.xlu0 1
  %1433 = vperm.xlu0 %1432, %v1141
  %v1434 = vpop.permute.xlu0 %1433
  %1437 = vset.pattern.permute.xlu0 1
  %1438 = vperm.xlu0 %1437, %v1143
  %v1439 = vpop.permute.xlu0 %1438
  %1442 = vset.pattern.permute.xlu0 1
  %1443 = vperm.xlu0 %1442, %v1145
  %v1444 = vpop.permute.xlu0 %1443
  %1447 = vset.pattern.permute.xlu0 1
  %1448 = vperm.xlu0 %1447, %v1147
  %v1449 = vpop.permute.xlu0 %1448
  %1452 = vset.pattern.permute.xlu0 1
  %1453 = vperm.xlu0 %1452, %v1149
  %v1454 = vpop.permute.xlu0 %1453
  %1457 = vset.pattern.permute.xlu0 1
  %1458 = vperm.xlu0 %1457, %v1151
  %v1459 = vpop.permute.xlu0 %1458
  %1462 = vset.pattern.permute.xlu0 1
  %1463 = vperm.xlu0 %1462, %v1153
  %v1464 = vpop.permute.xlu0 %1463
  %1467 = vset.pattern.permute.xlu0 1
  %1468 = vperm.xlu0 %1467, %v1155
  %v1469 = vpop.permute.xlu0 %1468
  %1472 = vset.pattern.permute.xlu0 1
  %1473 = vperm.xlu0 %1472, %v1157
  %v1474 = vpop.permute.xlu0 %1473
  %1477 = vset.pattern.permute.xlu0 1
  %1478 = vperm.xlu0 %1477, %v1159
  %v1479 = vpop.permute.xlu0 %1478
  %v1481 = vmul.f32 %v1404, %v1385
  %v1482 = vmul.f32 %v1409, %v1386
  %v1483 = vmul.f32 %v1414, %v1387
  %v1484 = vmul.f32 %v1419, %v1388
  %v1485 = vmul.f32 %v1424, %v1389
  %v1486 = vmul.f32 %v1429, %v1390
  %v1487 = vmul.f32 %v1434, %v1391
  %v1488 = vmul.f32 %v1439, %v1392
  %v1489 = vmul.f32 %v1444, %v1393
  %v1490 = vmul.f32 %v1449, %v1394
  %v1491 = vmul.f32 %v1454, %v1395
  %v1492 = vmul.f32 %v1459, %v1396
  %v1493 = vmul.f32 %v1464, %v1397
  %v1494 = vmul.f32 %v1469, %v1398
  %v1495 = vmul.f32 %v1474, %v1399
  %v1496 = vmul.f32 %v1479, %v1400
  %v1497 = vpack.c.bf16 %v1259, %v1257
  %v1498 = vpack.c.bf16 %v1263, %v1261
  %v1499 = vpack.c.bf16 %v1267, %v1265
  %v1500 = vpack.c.bf16 %v1271, %v1269
  %v1501 = vpack.c.bf16 %v1275, %v1273
  %v1502 = vpack.c.bf16 %v1279, %v1277
  %v1503 = vpack.c.bf16 %v1283, %v1281
  %v1504 = vpack.c.bf16 %v1287, %v1285
  %1505 = vrot.lane.b32.xlu0 %v789, 124
  %v1506 = vpop.permute.xlu0 %1505
  %1507 = vrot.lane.b32.xlu0 %v790, 124
  %v1508 = vpop.permute.xlu0 %1507
  %1509 = vrot.lane.b32.xlu0 %v791, 124
  %v1510 = vpop.permute.xlu0 %1509
  %1511 = vrot.lane.b32.xlu0 %v792, 124
  %v1512 = vpop.permute.xlu0 %1511
  %1513 = vrot.lane.b32.xlu0 %v793, 124
  %v1514 = vpop.permute.xlu0 %1513
  %1515 = vrot.lane.b32.xlu0 %v794, 124
  %v1516 = vpop.permute.xlu0 %1515
  %1517 = vrot.lane.b32.xlu0 %v795, 124
  %v1518 = vpop.permute.xlu0 %1517
  %1519 = vrot.lane.b32.xlu0 %v796, 124
  %v1520 = vpop.permute.xlu0 %1519
  %1529 = vmatpush.bf16.msra.mxu0 %v1520
  %1530 = vmatpush.bf16.msra.mxu0 %v1518
  %1531 = vmatpush.bf16.msra.mxu0 %v1516
  %1532 = vmatpush.bf16.msra.mxu0 %v1514
  %1533 = vmatpush.bf16.msra.mxu0 %v1512
  %1534 = vmatpush.bf16.msra.mxu0 %v1510
  %1535 = vmatpush.bf16.msra.mxu0 %v1508
  %1536 = vmatpush.bf16.msra.mxu0 %v1506
  %1537 = vmatmul.bf16.gmra.mxu0 %v1497
  %v1538 = vpop.f32.mrf.mxu0
  %v1539 = vadd.f32 0.0, %v1538
  %v1540 = vpop.f32.mrf.mxu0
  %v1541 = vadd.f32 0.0, %v1540
  %1542 = vmatmul.bf16.gmra.mxu0 %v1498
  %v1543 = vpop.f32.mrf.mxu0
  %v1544 = vadd.f32 0.0, %v1543
  %v1545 = vpop.f32.mrf.mxu0
  %v1546 = vadd.f32 0.0, %v1545
  %1547 = vmatmul.bf16.gmra.mxu0 %v1499
  %v1548 = vpop.f32.mrf.mxu0
  %v1549 = vadd.f32 0.0, %v1548
  %v1550 = vpop.f32.mrf.mxu0
  %v1551 = vadd.f32 0.0, %v1550
  %1552 = vmatmul.bf16.gmra.mxu0 %v1500
  %v1553 = vpop.f32.mrf.mxu0
  %v1554 = vadd.f32 0.0, %v1553
  %v1555 = vpop.f32.mrf.mxu0
  %v1556 = vadd.f32 0.0, %v1555
  %1557 = vmatmul.bf16.gmra.mxu0 %v1501
  %v1558 = vpop.f32.mrf.mxu0
  %v1559 = vadd.f32 0.0, %v1558
  %v1560 = vpop.f32.mrf.mxu0
  %v1561 = vadd.f32 0.0, %v1560
  %1562 = vmatmul.bf16.gmra.mxu0 %v1502
  %v1563 = vpop.f32.mrf.mxu0
  %v1564 = vadd.f32 0.0, %v1563
  %v1565 = vpop.f32.mrf.mxu0
  %v1566 = vadd.f32 0.0, %v1565
  %1567 = vmatmul.bf16.gmra.mxu0 %v1503
  %v1568 = vpop.f32.mrf.mxu0
  %v1569 = vadd.f32 0.0, %v1568
  %v1570 = vpop.f32.mrf.mxu0
  %v1571 = vadd.f32 0.0, %v1570
  %1572 = vmatmul.bf16.gmra.mxu0 %v1504
  %v1573 = vpop.f32.mrf.mxu0
  %v1574 = vadd.f32 0.0, %v1573
  %v1575 = vpop.f32.mrf.mxu0
  %v1576 = vadd.f32 0.0, %v1575
  %1577 = vdwg.mxu0
  %1594 = vrot.lane.b32.xlu0 %v1539, 4
  %v1595 = vpop.permute.xlu0 %1594
  %1596 = vrot.lane.b32.xlu0 %v1541, 4
  %v1597 = vpop.permute.xlu0 %1596
  %1598 = vrot.lane.b32.xlu0 %v1544, 4
  %v1599 = vpop.permute.xlu0 %1598
  %1600 = vrot.lane.b32.xlu0 %v1546, 4
  %v1601 = vpop.permute.xlu0 %1600
  %1602 = vrot.lane.b32.xlu0 %v1549, 4
  %v1603 = vpop.permute.xlu0 %1602
  %1604 = vrot.lane.b32.xlu0 %v1551, 4
  %v1605 = vpop.permute.xlu0 %1604
  %1606 = vrot.lane.b32.xlu0 %v1554, 4
  %v1607 = vpop.permute.xlu0 %1606
  %1608 = vrot.lane.b32.xlu0 %v1556, 4
  %v1609 = vpop.permute.xlu0 %1608
  %1610 = vrot.lane.b32.xlu0 %v1559, 4
  %v1611 = vpop.permute.xlu0 %1610
  %1612 = vrot.lane.b32.xlu0 %v1561, 4
  %v1613 = vpop.permute.xlu0 %1612
  %1614 = vrot.lane.b32.xlu0 %v1564, 4
  %v1615 = vpop.permute.xlu0 %1614
  %1616 = vrot.lane.b32.xlu0 %v1566, 4
  %v1617 = vpop.permute.xlu0 %1616
  %1618 = vrot.lane.b32.xlu0 %v1569, 4
  %v1619 = vpop.permute.xlu0 %1618
  %1620 = vrot.lane.b32.xlu0 %v1571, 4
  %v1621 = vpop.permute.xlu0 %1620
  %1622 = vrot.lane.b32.xlu0 %v1574, 4
  %v1623 = vpop.permute.xlu0 %1622
  %1624 = vrot.lane.b32.xlu0 %v1576, 4
  %v1625 = vpop.permute.xlu0 %1624
  %v1642 = vadd.f32 %v1481, %v1595
  %v1643 = vadd.f32 %v1482, %v1597
  %v1644 = vadd.f32 %v1483, %v1599
  %v1645 = vadd.f32 %v1484, %v1601
  %v1646 = vadd.f32 %v1485, %v1603
  %v1647 = vadd.f32 %v1486, %v1605
  %v1648 = vadd.f32 %v1487, %v1607
  %v1649 = vadd.f32 %v1488, %v1609
  %v1650 = vadd.f32 %v1489, %v1611
  %v1651 = vadd.f32 %v1490, %v1613
  %v1652 = vadd.f32 %v1491, %v1615
  %v1653 = vadd.f32 %v1492, %v1617
  %v1654 = vadd.f32 %v1493, %v1619
  %v1655 = vadd.f32 %v1494, %v1621
  %v1656 = vadd.f32 %v1495, %v1623
  %v1657 = vadd.f32 %v1496, %v1625
  %vm1658 = vcmask 64544
  %1659 = vst.msk [vmem:[#allocation4] sm:$0xff] %vm1658, %v1642
  %1660 = vst.msk [vmem:[#allocation4 + $0x8] sm:$0xff] %vm1658, %v1643
  %1661 = vst.msk [vmem:[#allocation4 + $0x10] sm:$0xff] %vm1658, %v1644
  %1662 = vst.msk [vmem:[#allocation4 + $0x18] sm:$0xff] %vm1658, %v1645
  %1663 = vst.msk [vmem:[#allocation4 + $0x20] sm:$0xff] %vm1658, %v1646
  %1664 = vst.msk [vmem:[#allocation4 + $0x28] sm:$0xff] %vm1658, %v1647
  %1665 = vst.msk [vmem:[#allocation4 + $0x30] sm:$0xff] %vm1658, %v1648
  %1666 = vst.msk [vmem:[#allocation4 + $0x38] sm:$0xff] %vm1658, %v1649
  %1667 = vst.msk [vmem:[#allocation4 + $0x40] sm:$0xff] %vm1658, %v1650
  %1668 = vst.msk [vmem:[#allocation4 + $0x48] sm:$0xff] %vm1658, %v1651
  %1669 = vst.msk [vmem:[#allocation4 + $0x50] sm:$0xff] %vm1658, %v1652
  %1670 = vst.msk [vmem:[#allocation4 + $0x58] sm:$0xff] %vm1658, %v1653
  %1671 = vst.msk [vmem:[#allocation4 + $0x60] sm:$0xff] %vm1658, %v1654
  %1672 = vst.msk [vmem:[#allocation4 + $0x68] sm:$0xff] %vm1658, %v1655
  %1673 = vst.msk [vmem:[#allocation4 + $0x70] sm:$0xff] %vm1658, %v1656
  %1674 = vst.msk [vmem:[#allocation4 + $0x78] sm:$0xff] %vm1658, %v1657
  %1675 = vst.msk [vmem:[#allocation2] sm:$0xff] %vm1368, %v1096
  %1676 = vst.msk [vmem:[#allocation2 + $0x8] sm:$0xff] %vm1368, %v1097
  %1677 = vst.msk [vmem:[#allocation2 + $0x10] sm:$0xff] %vm1368, %v1098
  %1678 = vst.msk [vmem:[#allocation2 + $0x18] sm:$0xff] %vm1368, %v1099
  %1679 = vst.msk [vmem:[#allocation2 + $0x20] sm:$0xff] %vm1368, %v1100
  %1680 = vst.msk [vmem:[#allocation2 + $0x28] sm:$0xff] %vm1368, %v1101
  %1681 = vst.msk [vmem:[#allocation2 + $0x30] sm:$0xff] %vm1368, %v1102
  %1682 = vst.msk [vmem:[#allocation2 + $0x38] sm:$0xff] %vm1368, %v1103
  %1683 = vst.msk [vmem:[#allocation2 + $0x40] sm:$0xff] %vm1368, %v1104
  %1684 = vst.msk [vmem:[#allocation2 + $0x48] sm:$0xff] %vm1368, %v1105
  %1685 = vst.msk [vmem:[#allocation2 + $0x50] sm:$0xff] %vm1368, %v1106
  %1686 = vst.msk [vmem:[#allocation2 + $0x58] sm:$0xff] %vm1368, %v1107
  %1687 = vst.msk [vmem:[#allocation2 + $0x60] sm:$0xff] %vm1368, %v1108
  %1688 = vst.msk [vmem:[#allocation2 + $0x68] sm:$0xff] %vm1368, %v1109
  %1689 = vst.msk [vmem:[#allocation2 + $0x70] sm:$0xff] %vm1368, %v1110
  %1690 = vst.msk [vmem:[#allocation2 + $0x78] sm:$0xff] %vm1368, %v1111
  // Predicated region
  $region26: #{gat_forward.7} parent=0 // pred_check
    %p1691 = pneg %p20
  $region27: #{gat_forward.7} parent=0 // pred_check_branch
    %1693 = sbr.rel (%p1691) target = $region29
  $region28: #{gat_forward.7} parent=0 // pred_region
    %v1694 = vld [vmem:[#allocation3] sm:$0xff]
    %v1695 = vld [vmem:[#allocation3 + $0x8] sm:$0xff]
    %v1696 = vld [vmem:[#allocation3 + $0x10] sm:$0xff]
    %v1697 = vld [vmem:[#allocation3 + $0x18] sm:$0xff]
    %v1698 = vld [vmem:[#allocation3 + $0x20] sm:$0xff]
    %v1699 = vld [vmem:[#allocation3 + $0x28] sm:$0xff]
    %v1700 = vld [vmem:[#allocation3 + $0x30] sm:$0xff]
    %v1701 = vld [vmem:[#allocation3 + $0x38] sm:$0xff]
    %v1702 = vld [vmem:[#allocation3 + $0x40] sm:$0xff]
    %v1703 = vld [vmem:[#allocation3 + $0x48] sm:$0xff]
    %v1704 = vld [vmem:[#allocation3 + $0x50] sm:$0xff]
    %v1705 = vld [vmem:[#allocation3 + $0x58] sm:$0xff]
    %v1706 = vld [vmem:[#allocation3 + $0x60] sm:$0xff]
    %v1707 = vld [vmem:[#allocation3 + $0x68] sm:$0xff]
    %v1708 = vld [vmem:[#allocation3 + $0x70] sm:$0xff]
    %v1709 = vld [vmem:[#allocation3 + $0x78] sm:$0xff]
    %v1710 = vrcp.pop %v1694
    %v1711 = vrcp.pop %v1695
    %v1712 = vrcp.pop %v1696
    %v1713 = vrcp.pop %v1697
    %v1714 = vrcp.pop %v1698
    %v1715 = vrcp.pop %v1699
    %v1716 = vrcp.pop %v1700
    %v1717 = vrcp.pop %v1701
    %v1718 = vrcp.pop %v1702
    %v1719 = vrcp.pop %v1703
    %v1720 = vrcp.pop %v1704
    %v1721 = vrcp.pop %v1705
    %v1722 = vrcp.pop %v1706
    %v1723 = vrcp.pop %v1707
    %v1724 = vrcp.pop %v1708
    %v1725 = vrcp.pop %v1709
    %v1726 = vld [vmem:[#allocation4] sm:$0xff]
    %v1727 = vld [vmem:[#allocation4 + $0x8] sm:$0xff]
    %v1728 = vld [vmem:[#allocation4 + $0x10] sm:$0xff]
    %v1729 = vld [vmem:[#allocation4 + $0x18] sm:$0xff]
    %v1730 = vld [vmem:[#allocation4 + $0x20] sm:$0xff]
    %v1731 = vld [vmem:[#allocation4 + $0x28] sm:$0xff]
    %v1732 = vld [vmem:[#allocation4 + $0x30] sm:$0xff]
    %v1733 = vld [vmem:[#allocation4 + $0x38] sm:$0xff]
    %v1734 = vld [vmem:[#allocation4 + $0x40] sm:$0xff]
    %v1735 = vld [vmem:[#allocation4 + $0x48] sm:$0xff]
    %v1736 = vld [vmem:[#allocation4 + $0x50] sm:$0xff]
    %v1737 = vld [vmem:[#allocation4 + $0x58] sm:$0xff]
    %v1738 = vld [vmem:[#allocation4 + $0x60] sm:$0xff]
    %v1739 = vld [vmem:[#allocation4 + $0x68] sm:$0xff]
    %v1740 = vld [vmem:[#allocation4 + $0x70] sm:$0xff]
    %v1741 = vld [vmem:[#allocation4 + $0x78] sm:$0xff]
    %1743 = vset.pattern.permute.xlu0 0
    %1744 = vperm.xlu0 %1743, %v1710
    %v1745 = vpop.permute.xlu0 %1744
    %1748 = vset.pattern.permute.xlu0 0
    %1749 = vperm.xlu0 %1748, %v1711
    %v1750 = vpop.permute.xlu0 %1749
    %1753 = vset.pattern.permute.xlu0 0
    %1754 = vperm.xlu0 %1753, %v1712
    %v1755 = vpop.permute.xlu0 %1754
    %1758 = vset.pattern.permute.xlu0 0
    %1759 = vperm.xlu0 %1758, %v1713
    %v1760 = vpop.permute.xlu0 %1759
    %1763 = vset.pattern.permute.xlu0 0
    %1764 = vperm.xlu0 %1763, %v1714
    %v1765 = vpop.permute.xlu0 %1764
    %1768 = vset.pattern.permute.xlu0 0
    %1769 = vperm.xlu0 %1768, %v1715
    %v1770 = vpop.permute.xlu0 %1769
    %1773 = vset.pattern.permute.xlu0 0
    %1774 = vperm.xlu0 %1773, %v1716
    %v1775 = vpop.permute.xlu0 %1774
    %1778 = vset.pattern.permute.xlu0 0
    %1779 = vperm.xlu0 %1778, %v1717
    %v1780 = vpop.permute.xlu0 %1779
    %1783 = vset.pattern.permute.xlu0 0
    %1784 = vperm.xlu0 %1783, %v1718
    %v1785 = vpop.permute.xlu0 %1784
    %1788 = vset.pattern.permute.xlu0 0
    %1789 = vperm.xlu0 %1788, %v1719
    %v1790 = vpop.permute.xlu0 %1789
    %1793 = vset.pattern.permute.xlu0 0
    %1794 = vperm.xlu0 %1793, %v1720
    %v1795 = vpop.permute.xlu0 %1794
    %1798 = vset.pattern.permute.xlu0 0
    %1799 = vperm.xlu0 %1798, %v1721
    %v1800 = vpop.permute.xlu0 %1799
    %1803 = vset.pattern.permute.xlu0 0
    %1804 = vperm.xlu0 %1803, %v1722
    %v1805 = vpop.permute.xlu0 %1804
    %1808 = vset.pattern.permute.xlu0 0
    %1809 = vperm.xlu0 %1808, %v1723
    %v1810 = vpop.permute.xlu0 %1809
    %1813 = vset.pattern.permute.xlu0 0
    %1814 = vperm.xlu0 %1813, %v1724
    %v1815 = vpop.permute.xlu0 %1814
    %1818 = vset.pattern.permute.xlu0 0
    %1819 = vperm.xlu0 %1818, %v1725
    %v1820 = vpop.permute.xlu0 %1819
    %v1822 = vmul.f32 %v1726, %v1745
    %v1823 = vmul.f32 %v1727, %v1750
    %v1824 = vmul.f32 %v1728, %v1755
    %v1825 = vmul.f32 %v1729, %v1760
    %v1826 = vmul.f32 %v1730, %v1765
    %v1827 = vmul.f32 %v1731, %v1770
    %v1828 = vmul.f32 %v1732, %v1775
    %v1829 = vmul.f32 %v1733, %v1780
    %v1830 = vmul.f32 %v1734, %v1785
    %v1831 = vmul.f32 %v1735, %v1790
    %v1832 = vmul.f32 %v1736, %v1795
    %v1833 = vmul.f32 %v1737, %v1800
    %v1834 = vmul.f32 %v1738, %v1805
    %v1835 = vmul.f32 %v1739, %v1810
    %v1836 = vmul.f32 %v1740, %v1815
    %v1837 = vmul.f32 %v1741, %v1820
    %1838 = vst.msk [vmem:[#allocation4] sm:$0xff] %vm870, %v1822
    %1839 = vst.msk [vmem:[#allocation4 + $0x8] sm:$0xff] %vm870, %v1823
    %1840 = vst.msk [vmem:[#allocation4 + $0x10] sm:$0xff] %vm870, %v1824
    %1841 = vst.msk [vmem:[#allocation4 + $0x18] sm:$0xff] %vm870, %v1825
    %1842 = vst.msk [vmem:[#allocation4 + $0x20] sm:$0xff] %vm870, %v1826
    %1843 = vst.msk [vmem:[#allocation4 + $0x28] sm:$0xff] %vm870, %v1827
    %1844 = vst.msk [vmem:[#allocation4 + $0x30] sm:$0xff] %vm870, %v1828
    %1845 = vst.msk [vmem:[#allocation4 + $0x38] sm:$0xff] %vm870, %v1829
    %1846 = vst.msk [vmem:[#allocation4 + $0x40] sm:$0xff] %vm870, %v1830
    %1847 = vst.msk [vmem:[#allocation4 + $0x48] sm:$0xff] %vm870, %v1831
    %1848 = vst.msk [vmem:[#allocation4 + $0x50] sm:$0xff] %vm870, %v1832
    %1849 = vst.msk [vmem:[#allocation4 + $0x58] sm:$0xff] %vm870, %v1833
    %1850 = vst.msk [vmem:[#allocation4 + $0x60] sm:$0xff] %vm870, %v1834
    %1851 = vst.msk [vmem:[#allocation4 + $0x68] sm:$0xff] %vm870, %v1835
    %1852 = vst.msk [vmem:[#allocation4 + $0x70] sm:$0xff] %vm870, %v1836
    %1853 = vst.msk [vmem:[#allocation4 + $0x78] sm:$0xff] %vm870, %v1837
    %v1854 = vld [vmem:[#allocation3] sm:$0xff]
    %v1855 = vld [vmem:[#allocation3 + $0x8] sm:$0xff]
    %v1856 = vld [vmem:[#allocation3 + $0x10] sm:$0xff]
    %v1857 = vld [vmem:[#allocation3 + $0x18] sm:$0xff]
    %v1858 = vld [vmem:[#allocation3 + $0x20] sm:$0xff]
    %v1859 = vld [vmem:[#allocation3 + $0x28] sm:$0xff]
    %v1860 = vld [vmem:[#allocation3 + $0x30] sm:$0xff]
    %v1861 = vld [vmem:[#allocation3 + $0x38] sm:$0xff]
    %v1862 = vld [vmem:[#allocation3 + $0x40] sm:$0xff]
    %v1863 = vld [vmem:[#allocation3 + $0x48] sm:$0xff]
    %v1864 = vld [vmem:[#allocation3 + $0x50] sm:$0xff]
    %v1865 = vld [vmem:[#allocation3 + $0x58] sm:$0xff]
    %v1866 = vld [vmem:[#allocation3 + $0x60] sm:$0xff]
    %v1867 = vld [vmem:[#allocation3 + $0x68] sm:$0xff]
    %v1868 = vld [vmem:[#allocation3 + $0x70] sm:$0xff]
    %v1869 = vld [vmem:[#allocation3 + $0x78] sm:$0xff]
    %v1870 = vrcp.pop %v1854
    %v1871 = vrcp.pop %v1855
    %v1872 = vrcp.pop %v1856
    %v1873 = vrcp.pop %v1857
    %v1874 = vrcp.pop %v1858
    %v1875 = vrcp.pop %v1859
    %v1876 = vrcp.pop %v1860
    %v1877 = vrcp.pop %v1861
    %v1878 = vrcp.pop %v1862
    %v1879 = vrcp.pop %v1863
    %v1880 = vrcp.pop %v1864
    %v1881 = vrcp.pop %v1865
    %v1882 = vrcp.pop %v1866
    %v1883 = vrcp.pop %v1867
    %v1884 = vrcp.pop %v1868
    %v1885 = vrcp.pop %v1869
    %v1886 = vld [vmem:[#allocation4] sm:$0xff]
    %v1887 = vld [vmem:[#allocation4 + $0x8] sm:$0xff]
    %v1888 = vld [vmem:[#allocation4 + $0x10] sm:$0xff]
    %v1889 = vld [vmem:[#allocation4 + $0x18] sm:$0xff]
    %v1890 = vld [vmem:[#allocation4 + $0x20] sm:$0xff]
    %v1891 = vld [vmem:[#allocation4 + $0x28] sm:$0xff]
    %v1892 = vld [vmem:[#allocation4 + $0x30] sm:$0xff]
    %v1893 = vld [vmem:[#allocation4 + $0x38] sm:$0xff]
    %v1894 = vld [vmem:[#allocation4 + $0x40] sm:$0xff]
    %v1895 = vld [vmem:[#allocation4 + $0x48] sm:$0xff]
    %v1896 = vld [vmem:[#allocation4 + $0x50] sm:$0xff]
    %v1897 = vld [vmem:[#allocation4 + $0x58] sm:$0xff]
    %v1898 = vld [vmem:[#allocation4 + $0x60] sm:$0xff]
    %v1899 = vld [vmem:[#allocation4 + $0x68] sm:$0xff]
    %v1900 = vld [vmem:[#allocation4 + $0x70] sm:$0xff]
    %v1901 = vld [vmem:[#allocation4 + $0x78] sm:$0xff]
    %1903 = vset.pattern.permute.xlu0 1
    %1904 = vperm.xlu0 %1903, %v1870
    %v1905 = vpop.permute.xlu0 %1904
    %1908 = vset.pattern.permute.xlu0 1
    %1909 = vperm.xlu0 %1908, %v1871
    %v1910 = vpop.permute.xlu0 %1909
    %1913 = vset.pattern.permute.xlu0 1
    %1914 = vperm.xlu0 %1913, %v1872
    %v1915 = vpop.permute.xlu0 %1914
    %1918 = vset.pattern.permute.xlu0 1
    %1919 = vperm.xlu0 %1918, %v1873
    %v1920 = vpop.permute.xlu0 %1919
    %1923 = vset.pattern.permute.xlu0 1
    %1924 = vperm.xlu0 %1923, %v1874
    %v1925 = vpop.permute.xlu0 %1924
    %1928 = vset.pattern.permute.xlu0 1
    %1929 = vperm.xlu0 %1928, %v1875
    %v1930 = vpop.permute.xlu0 %1929
    %1933 = vset.pattern.permute.xlu0 1
    %1934 = vperm.xlu0 %1933, %v1876
    %v1935 = vpop.permute.xlu0 %1934
    %1938 = vset.pattern.permute.xlu0 1
    %1939 = vperm.xlu0 %1938, %v1877
    %v1940 = vpop.permute.xlu0 %1939
    %1943 = vset.pattern.permute.xlu0 1
    %1944 = vperm.xlu0 %1943, %v1878
    %v1945 = vpop.permute.xlu0 %1944
    %1948 = vset.pattern.permute.xlu0 1
    %1949 = vperm.xlu0 %1948, %v1879
    %v1950 = vpop.permute.xlu0 %1949
    %1953 = vset.pattern.permute.xlu0 1
    %1954 = vperm.xlu0 %1953, %v1880
    %v1955 = vpop.permute.xlu0 %1954
    %1958 = vset.pattern.permute.xlu0 1
    %1959 = vperm.xlu0 %1958, %v1881
    %v1960 = vpop.permute.xlu0 %1959
    %1963 = vset.pattern.permute.xlu0 1
    %1964 = vperm.xlu0 %1963, %v1882
    %v1965 = vpop.permute.xlu0 %1964
    %1968 = vset.pattern.permute.xlu0 1
    %1969 = vperm.xlu0 %1968, %v1883
    %v1970 = vpop.permute.xlu0 %1969
    %1973 = vset.pattern.permute.xlu0 1
    %1974 = vperm.xlu0 %1973, %v1884
    %v1975 = vpop.permute.xlu0 %1974
    %1978 = vset.pattern.permute.xlu0 1
    %1979 = vperm.xlu0 %1978, %v1885
    %v1980 = vpop.permute.xlu0 %1979
    %v1982 = vmul.f32 %v1886, %v1905
    %v1983 = vmul.f32 %v1887, %v1910
    %v1984 = vmul.f32 %v1888, %v1915
    %v1985 = vmul.f32 %v1889, %v1920
    %v1986 = vmul.f32 %v1890, %v1925
    %v1987 = vmul.f32 %v1891, %v1930
    %v1988 = vmul.f32 %v1892, %v1935
    %v1989 = vmul.f32 %v1893, %v1940
    %v1990 = vmul.f32 %v1894, %v1945
    %v1991 = vmul.f32 %v1895, %v1950
    %v1992 = vmul.f32 %v1896, %v1955
    %v1993 = vmul.f32 %v1897, %v1960
    %v1994 = vmul.f32 %v1898, %v1965
    %v1995 = vmul.f32 %v1899, %v1970
    %v1996 = vmul.f32 %v1900, %v1975
    %v1997 = vmul.f32 %v1901, %v1980
    %1998 = vst.msk [vmem:[#allocation4] sm:$0xff] %vm1658, %v1982
    %1999 = vst.msk [vmem:[#allocation4 + $0x8] sm:$0xff] %vm1658, %v1983
    %2000 = vst.msk [vmem:[#allocation4 + $0x10] sm:$0xff] %vm1658, %v1984
    %2001 = vst.msk [vmem:[#allocation4 + $0x18] sm:$0xff] %vm1658, %v1985
    %2002 = vst.msk [vmem:[#allocation4 + $0x20] sm:$0xff] %vm1658, %v1986
    %2003 = vst.msk [vmem:[#allocation4 + $0x28] sm:$0xff] %vm1658, %v1987
    %2004 = vst.msk [vmem:[#allocation4 + $0x30] sm:$0xff] %vm1658, %v1988
    %2005 = vst.msk [vmem:[#allocation4 + $0x38] sm:$0xff] %vm1658, %v1989
    %2006 = vst.msk [vmem:[#allocation4 + $0x40] sm:$0xff] %vm1658, %v1990
    %2007 = vst.msk [vmem:[#allocation4 + $0x48] sm:$0xff] %vm1658, %v1991
    %2008 = vst.msk [vmem:[#allocation4 + $0x50] sm:$0xff] %vm1658, %v1992
    %2009 = vst.msk [vmem:[#allocation4 + $0x58] sm:$0xff] %vm1658, %v1993
    %2010 = vst.msk [vmem:[#allocation4 + $0x60] sm:$0xff] %vm1658, %v1994
    %2011 = vst.msk [vmem:[#allocation4 + $0x68] sm:$0xff] %vm1658, %v1995
    %2012 = vst.msk [vmem:[#allocation4 + $0x70] sm:$0xff] %vm1658, %v1996
    %2013 = vst.msk [vmem:[#allocation4 + $0x78] sm:$0xff] %vm1658, %v1997
    %v2014 = vld [vmem:[#allocation4] sm:$0xff]
    %v2015 = vld [vmem:[#allocation4 + $0x8] sm:$0xff]
    %v2016 = vld [vmem:[#allocation4 + $0x10] sm:$0xff]
    %v2017 = vld [vmem:[#allocation4 + $0x18] sm:$0xff]
    %v2018 = vld [vmem:[#allocation4 + $0x20] sm:$0xff]
    %v2019 = vld [vmem:[#allocation4 + $0x28] sm:$0xff]
    %v2020 = vld [vmem:[#allocation4 + $0x30] sm:$0xff]
    %v2021 = vld [vmem:[#allocation4 + $0x38] sm:$0xff]
    %v2022 = vld [vmem:[#allocation4 + $0x40] sm:$0xff]
    %v2023 = vld [vmem:[#allocation4 + $0x48] sm:$0xff]
    %v2024 = vld [vmem:[#allocation4 + $0x50] sm:$0xff]
    %v2025 = vld [vmem:[#allocation4 + $0x58] sm:$0xff]
    %v2026 = vld [vmem:[#allocation4 + $0x60] sm:$0xff]
    %v2027 = vld [vmem:[#allocation4 + $0x68] sm:$0xff]
    %v2028 = vld [vmem:[#allocation4 + $0x70] sm:$0xff]
    %v2029 = vld [vmem:[#allocation4 + $0x78] sm:$0xff]
    %v2030 = vld [vmem:[%s4] sm:$0x1]
    %v2032 = vperm.slane %v2030, 0
    %v2034 = vadd.f32 %v2014, %v2032
    %v2035 = vadd.f32 %v2015, %v2032
    %v2036 = vadd.f32 %v2016, %v2032
    %v2037 = vadd.f32 %v2017, %v2032
    %v2038 = vadd.f32 %v2018, %v2032
    %v2039 = vadd.f32 %v2019, %v2032
    %v2040 = vadd.f32 %v2020, %v2032
    %v2041 = vadd.f32 %v2021, %v2032
    %v2042 = vadd.f32 %v2022, %v2032
    %v2043 = vadd.f32 %v2023, %v2032
    %v2044 = vadd.f32 %v2024, %v2032
    %v2045 = vadd.f32 %v2025, %v2032
    %v2046 = vadd.f32 %v2026, %v2032
    %v2047 = vadd.f32 %v2027, %v2032
    %v2048 = vadd.f32 %v2028, %v2032
    %v2049 = vadd.f32 %v2029, %v2032
    %vm2050 = vcmask 64512
    %v2051 = vsel %vm2050, %v2034, -inf
    %2052 = vmax.xlane.f32.xlu0 %v2051
    %v2053 = vpop.xlane.xlu0 %2052
    %v2054 = vsel %vm2050, %v2035, -inf
    %2055 = vmax.xlane.f32.xlu0 %v2054
    %v2056 = vpop.xlane.xlu0 %2055
    %v2057 = vsel %vm2050, %v2036, -inf
    %2058 = vmax.xlane.f32.xlu0 %v2057
    %v2059 = vpop.xlane.xlu0 %2058
    %v2060 = vsel %vm2050, %v2037, -inf
    %2061 = vmax.xlane.f32.xlu0 %v2060
    %v2062 = vpop.xlane.xlu0 %2061
    %v2063 = vsel %vm2050, %v2038, -inf
    %2064 = vmax.xlane.f32.xlu0 %v2063
    %v2065 = vpop.xlane.xlu0 %2064
    %v2066 = vsel %vm2050, %v2039, -inf
    %2067 = vmax.xlane.f32.xlu0 %v2066
    %v2068 = vpop.xlane.xlu0 %2067
    %v2069 = vsel %vm2050, %v2040, -inf
    %2070 = vmax.xlane.f32.xlu0 %v2069
    %v2071 = vpop.xlane.xlu0 %2070
    %v2072 = vsel %vm2050, %v2041, -inf
    %2073 = vmax.xlane.f32.xlu0 %v2072
    %v2074 = vpop.xlane.xlu0 %2073
    %v2075 = vsel %vm2050, %v2042, -inf
    %2076 = vmax.xlane.f32.xlu0 %v2075
    %v2077 = vpop.xlane.xlu0 %2076
    %v2078 = vsel %vm2050, %v2043, -inf
    %2079 = vmax.xlane.f32.xlu0 %v2078
    %v2080 = vpop.xlane.xlu0 %2079
    %v2081 = vsel %vm2050, %v2044, -inf
    %2082 = vmax.xlane.f32.xlu0 %v2081
    %v2083 = vpop.xlane.xlu0 %2082
    %v2084 = vsel %vm2050, %v2045, -inf
    %2085 = vmax.xlane.f32.xlu0 %v2084
    %v2086 = vpop.xlane.xlu0 %2085
    %v2087 = vsel %vm2050, %v2046, -inf
    %2088 = vmax.xlane.f32.xlu0 %v2087
    %v2089 = vpop.xlane.xlu0 %2088
    %v2090 = vsel %vm2050, %v2047, -inf
    %2091 = vmax.xlane.f32.xlu0 %v2090
    %v2092 = vpop.xlane.xlu0 %2091
    %v2093 = vsel %vm2050, %v2048, -inf
    %2094 = vmax.xlane.f32.xlu0 %v2093
    %v2095 = vpop.xlane.xlu0 %2094
    %v2096 = vsel %vm2050, %v2049, -inf
    %2097 = vmax.xlane.f32.xlu0 %v2096
    %v2098 = vpop.xlane.xlu0 %2097
    %v2099 = vsub.f32 %v2034, %v2053
    %v2100 = vsub.f32 %v2035, %v2056
    %v2101 = vsub.f32 %v2036, %v2059
    %v2102 = vsub.f32 %v2037, %v2062
    %v2103 = vsub.f32 %v2038, %v2065
    %v2104 = vsub.f32 %v2039, %v2068
    %v2105 = vsub.f32 %v2040, %v2071
    %v2106 = vsub.f32 %v2041, %v2074
    %v2107 = vsub.f32 %v2042, %v2077
    %v2108 = vsub.f32 %v2043, %v2080
    %v2109 = vsub.f32 %v2044, %v2083
    %v2110 = vsub.f32 %v2045, %v2086
    %v2111 = vsub.f32 %v2046, %v2089
    %v2112 = vsub.f32 %v2047, %v2092
    %v2113 = vsub.f32 %v2048, %v2095
    %v2114 = vsub.f32 %v2049, %v2098
    %v2115 = vmul.f32 %v2099, 1.442695
    %v2116 = vpow.pop %v2115
    %v2117 = vmul.f32 %v2100, 1.442695
    %v2118 = vpow.pop %v2117
    %v2119 = vmul.f32 %v2101, 1.442695
    %v2120 = vpow.pop %v2119
    %v2121 = vmul.f32 %v2102, 1.442695
    %v2122 = vpow.pop %v2121
    %v2123 = vmul.f32 %v2103, 1.442695
    %v2124 = vpow.pop %v2123
    %v2125 = vmul.f32 %v2104, 1.442695
    %v2126 = vpow.pop %v2125
    %v2127 = vmul.f32 %v2105, 1.442695
    %v2128 = vpow.pop %v2127
    %v2129 = vmul.f32 %v2106, 1.442695
    %v2130 = vpow.pop %v2129
    %v2131 = vmul.f32 %v2107, 1.442695
    %v2132 = vpow.pop %v2131
    %v2133 = vmul.f32 %v2108, 1.442695
    %v2134 = vpow.pop %v2133
    %v2135 = vmul.f32 %v2109, 1.442695
    %v2136 = vpow.pop %v2135
    %v2137 = vmul.f32 %v2110, 1.442695
    %v2138 = vpow.pop %v2137
    %v2139 = vmul.f32 %v2111, 1.442695
    %v2140 = vpow.pop %v2139
    %v2141 = vmul.f32 %v2112, 1.442695
    %v2142 = vpow.pop %v2141
    %v2143 = vmul.f32 %v2113, 1.442695
    %v2144 = vpow.pop %v2143
    %v2145 = vmul.f32 %v2114, 1.442695
    %v2146 = vpow.pop %v2145
    %v2147 = vsel %vm2050, %v2116, 0.0
    %2148 = vadd.xlane.f32.xlu0 %v2147
    %v2149 = vpop.xlane.xlu0 %2148
    %v2150 = vsel %vm2050, %v2118, 0.0
    %2151 = vadd.xlane.f32.xlu0 %v2150
    %v2152 = vpop.xlane.xlu0 %2151
    %v2153 = vsel %vm2050, %v2120, 0.0
    %2154 = vadd.xlane.f32.xlu0 %v2153
    %v2155 = vpop.xlane.xlu0 %2154
    %v2156 = vsel %vm2050, %v2122, 0.0
    %2157 = vadd.xlane.f32.xlu0 %v2156
    %v2158 = vpop.xlane.xlu0 %2157
    %v2159 = vsel %vm2050, %v2124, 0.0
    %2160 = vadd.xlane.f32.xlu0 %v2159
    %v2161 = vpop.xlane.xlu0 %2160
    %v2162 = vsel %vm2050, %v2126, 0.0
    %2163 = vadd.xlane.f32.xlu0 %v2162
    %v2164 = vpop.xlane.xlu0 %2163
    %v2165 = vsel %vm2050, %v2128, 0.0
    %2166 = vadd.xlane.f32.xlu0 %v2165
    %v2167 = vpop.xlane.xlu0 %2166
    %v2168 = vsel %vm2050, %v2130, 0.0
    %2169 = vadd.xlane.f32.xlu0 %v2168
    %v2170 = vpop.xlane.xlu0 %2169
    %v2171 = vsel %vm2050, %v2132, 0.0
    %2172 = vadd.xlane.f32.xlu0 %v2171
    %v2173 = vpop.xlane.xlu0 %2172
    %v2174 = vsel %vm2050, %v2134, 0.0
    %2175 = vadd.xlane.f32.xlu0 %v2174
    %v2176 = vpop.xlane.xlu0 %2175
    %v2177 = vsel %vm2050, %v2136, 0.0
    %2178 = vadd.xlane.f32.xlu0 %v2177
    %v2179 = vpop.xlane.xlu0 %2178
    %v2180 = vsel %vm2050, %v2138, 0.0
    %2181 = vadd.xlane.f32.xlu0 %v2180
    %v2182 = vpop.xlane.xlu0 %2181
    %v2183 = vsel %vm2050, %v2140, 0.0
    %2184 = vadd.xlane.f32.xlu0 %v2183
    %v2185 = vpop.xlane.xlu0 %2184
    %v2186 = vsel %vm2050, %v2142, 0.0
    %2187 = vadd.xlane.f32.xlu0 %v2186
    %v2188 = vpop.xlane.xlu0 %2187
    %v2189 = vsel %vm2050, %v2144, 0.0
    %2190 = vadd.xlane.f32.xlu0 %v2189
    %v2191 = vpop.xlane.xlu0 %2190
    %v2192 = vsel %vm2050, %v2146, 0.0
    %2193 = vadd.xlane.f32.xlu0 %v2192
    %v2194 = vpop.xlane.xlu0 %2193
    %v2195 = vlog2.pop %v2149
    %v2196 = vmul.f32 %v2195, 0.6931472
    %v2197 = vlog2.pop %v2152
    %v2198 = vmul.f32 %v2197, 0.6931472
    %v2199 = vlog2.pop %v2155
    %v2200 = vmul.f32 %v2199, 0.6931472
    %v2201 = vlog2.pop %v2158
    %v2202 = vmul.f32 %v2201, 0.6931472
    %v2203 = vlog2.pop %v2161
    %v2204 = vmul.f32 %v2203, 0.6931472
    %v2205 = vlog2.pop %v2164
    %v2206 = vmul.f32 %v2205, 0.6931472
    %v2207 = vlog2.pop %v2167
    %v2208 = vmul.f32 %v2207, 0.6931472
    %v2209 = vlog2.pop %v2170
    %v2210 = vmul.f32 %v2209, 0.6931472
    %v2211 = vlog2.pop %v2173
    %v2212 = vmul.f32 %v2211, 0.6931472
    %v2213 = vlog2.pop %v2176
    %v2214 = vmul.f32 %v2213, 0.6931472
    %v2215 = vlog2.pop %v2179
    %v2216 = vmul.f32 %v2215, 0.6931472
    %v2217 = vlog2.pop %v2182
    %v2218 = vmul.f32 %v2217, 0.6931472
    %v2219 = vlog2.pop %v2185
    %v2220 = vmul.f32 %v2219, 0.6931472
    %v2221 = vlog2.pop %v2188
    %v2222 = vmul.f32 %v2221, 0.6931472
    %v2223 = vlog2.pop %v2191
    %v2224 = vmul.f32 %v2223, 0.6931472
    %v2225 = vlog2.pop %v2194
    %v2226 = vmul.f32 %v2225, 0.6931472
    %v2227 = vsub.f32 %v2099, %v2196
    %v2228 = vsub.f32 %v2100, %v2198
    %v2229 = vsub.f32 %v2101, %v2200
    %v2230 = vsub.f32 %v2102, %v2202
    %v2231 = vsub.f32 %v2103, %v2204
    %v2232 = vsub.f32 %v2104, %v2206
    %v2233 = vsub.f32 %v2105, %v2208
    %v2234 = vsub.f32 %v2106, %v2210
    %v2235 = vsub.f32 %v2107, %v2212
    %v2236 = vsub.f32 %v2108, %v2214
    %v2237 = vsub.f32 %v2109, %v2216
    %v2238 = vsub.f32 %v2110, %v2218
    %v2239 = vsub.f32 %v2111, %v2220
    %v2240 = vsub.f32 %v2112, %v2222
    %v2241 = vsub.f32 %v2113, %v2224
    %v2242 = vsub.f32 %v2114, %v2226
    %2243 = vst.msk [vmem:[%s5] sm:$0xff] %vm2050, %v2227
    %2244 = vst.msk [vmem:[%s5 + $0x8] sm:$0xff] %vm2050, %v2228
    %2245 = vst.msk [vmem:[%s5 + $0x10] sm:$0xff] %vm2050, %v2229
    %2246 = vst.msk [vmem:[%s5 + $0x18] sm:$0xff] %vm2050, %v2230
    %2247 = vst.msk [vmem:[%s5 + $0x20] sm:$0xff] %vm2050, %v2231
    %2248 = vst.msk [vmem:[%s5 + $0x28] sm:$0xff] %vm2050, %v2232
    %2249 = vst.msk [vmem:[%s5 + $0x30] sm:$0xff] %vm2050, %v2233
    %2250 = vst.msk [vmem:[%s5 + $0x38] sm:$0xff] %vm2050, %v2234
    %2251 = vst.msk [vmem:[%s5 + $0x40] sm:$0xff] %vm2050, %v2235
    %2252 = vst.msk [vmem:[%s5 + $0x48] sm:$0xff] %vm2050, %v2236
    %2253 = vst.msk [vmem:[%s5 + $0x50] sm:$0xff] %vm2050, %v2237
    %2254 = vst.msk [vmem:[%s5 + $0x58] sm:$0xff] %vm2050, %v2238
    %2255 = vst.msk [vmem:[%s5 + $0x60] sm:$0xff] %vm2050, %v2239
    %2256 = vst.msk [vmem:[%s5 + $0x68] sm:$0xff] %vm2050, %v2240
    %2257 = vst.msk [vmem:[%s5 + $0x70] sm:$0xff] %vm2050, %v2241
    %2258 = vst.msk [vmem:[%s5 + $0x78] sm:$0xff] %vm2050, %v2242
  $region29: #{gat_forward.7} parent=0 // pred_fallthru
    _
  // Predicated region
  $region30: #{gat_forward.7} parent=0 // pred_check
    _
  $region31: #{gat_forward.7} parent=0 // pred_check_branch
    %2260 = sbr.rel (0) target = $region33
  $region32: #{gat_forward.7} parent=0 // pred_region
    _
  $region33: #{gat_forward.7} parent=0 // pred_fallthru
    _
  // Predicated region
  $region34: #{gat_forward.7} parent=0 // pred_check
    _
  $region35: #{gat_forward.7} parent=0 // pred_check_branch
    %2262 = sbr.rel (0) target = $region37
  $region36: #{gat_forward.7} parent=0 // pred_region
    _
  $region37: #{gat_forward.7} parent=0 // pred_fallthru
    _

</llo_original>
